<compile_context>
chip_gen: v6e
topology: v6e:2x2x1
jax: 0.10.0
libtpu: 0.0.40
codegen_flags: <defaults>
</compile_context>

<pallas_src>
import numpy as np
import jax
import jax.numpy as jnp
from jax.experimental import pallas as pl
from jax.experimental.pallas import tpu as pltpu  # noqa: F401  (TPU backend)

# ----------------------------- config ---------------------------------------
D_MODEL = 32
NHEAD = 4
HEAD_DIM = D_MODEL // NHEAD
DIM_FF = 64
L_TGT = 8          # target sequence length
S_MEM = 12         # memory sequence length
BATCH = 2
EPS = 1e-5
SCALE = 1.0 / float(np.sqrt(HEAD_DIM))
NEG_BIG = -1e30

# lane offsets inside the packed weight slabs (see prepare_params)
_W32_QK = 0                                   # self-attn [Wq|Wk]        (2D)
_W32_Q0 = 2 * D_MODEL                         # cross-attn 0 Wq          (D)
_W32_Q1 = 3 * D_MODEL                         # cross-attn 1 Wq          (D)
_W32_VO = 4 * D_MODEL                         # self-attn Wvo            (NH*D)
_W32_W1 = 4 * D_MODEL + NHEAD * D_MODEL       # FFN W1                   (DIM_FF)
_W64_K = 0                                    # blockdiag(Wk0, Wk1)      (2D)
_W64_VO = 2 * D_MODEL                         # blockdiag(Wvo0, Wvo1)    (2*NH*D)
_W64_W2 = 2 * D_MODEL + 2 * NHEAD * D_MODEL   # FFN W2                   (D)
_BW = max(2 * D_MODEL, DIM_FF)                # bias-slab lane width


# ------------------------- in-kernel building blocks -------------------------
def _cross_batch_mask(rows, cols, n):
    """Additive score bias generated in-kernel: 0 where query/key tokens belong
    to the same batch element, -1e30 otherwise.  Works for the sublane-stacked
    per-head score slab because rows-per-head is a multiple of n."""
    qb = jax.lax.broadcasted_iota(jnp.int32, (rows, cols), 0) % n
    kb = jax.lax.broadcasted_iota(jnp.int32, (rows, cols), 1) % n
    return jnp.where(qb == kb, 0.0, NEG_BIG).astype(jnp.float32)


def _heads(qp, kp, vproj, mask_all):
    """Multi-head attention core.  qp: (Tq, D), kp: (Tk, D),
    vproj: (Tk, NHEAD*D) with Wo already folded into the V projection,
    mask_all: (NHEAD*Tq, Tk).  Output bias is added by the caller."""
    tq = qp.shape[0]
    s_list = []
    for h in range(NHEAD):                       # static unroll, NHEAD = 4
        lo = h * HEAD_DIM
        qh = qp[:, lo:lo + HEAD_DIM]             # (Tq, hd)
        kh = kp[:, lo:lo + HEAD_DIM]             # (Tk, hd)
        s_list.append(jax.lax.dot_general(       # q @ k^T, no transpose op
            qh, kh, (((1,), (1,)), ((), ())),
            preferred_element_type=jnp.float32))
    # sublane-concat all heads: one max/exp/sum/div instead of four
    s = jnp.concatenate(s_list, axis=0) + mask_all          # (NH*Tq, Tk)
    s = s - jnp.max(s, axis=-1, keepdims=True)
    p = jnp.exp(s)
    p = p / jnp.sum(p, axis=-1, keepdims=True)               # exact reciprocal
    out = None
    for h in range(NHEAD):
        ph = p[h * tq:(h + 1) * tq, :]                        # (Tq, Tk)
        oh = jnp.dot(ph, vproj[:, h * D_MODEL:(h + 1) * D_MODEL],
                     preferred_element_type=jnp.float32)      # (Tq, D)
        out = oh if out is None else out + oh
    return out


def _ln_residual(x, r, gamma, beta):
    """LayerNorm(x + r) over the last dim.  gamma/beta: (1, D)."""
    z = x + r
    mean = jnp.mean(z, axis=-1, keepdims=True)
    cz = z - mean
    var = jnp.mean(cz * cz, axis=-1, keepdims=True)
    return cz * jax.lax.rsqrt(var + EPS) * gamma + beta


# ------------------------------ fused kernel ---------------------------------
def _make_kernel(T, TK, N):
    D = D_MODEL

    def kernel(tgt_pos_ref, mem_ref, w32_ref, w64_ref, b_ref, ln_ref, o_ref):
        mask_self = _cross_batch_mask(NHEAD * T, T, N)
        mask_cross = _cross_batch_mask(NHEAD * T, TK, N)

        tgt = tgt_pos_ref[:, 0:D]
        pos = tgt_pos_ref[:, D:2 * D]

        # ---- self-attention + norm1 (q == k == tgt+pos, fused [Wq|Wk]) -----
        q_in = tgt + pos
        qk = jnp.dot(q_in, w32_ref[:, _W32_QK:_W32_QK + 2 * D],
                     preferred_element_type=jnp.float32) + b_ref[0:1, 0:2 * D]
        vproj = jnp.dot(tgt, w32_ref[:, _W32_VO:_W32_VO + NHEAD * D],
                        preferred_element_type=jnp.float32)
        attn = _heads(qk[:, 0:D], qk[:, D:2 * D], vproj, mask_self) \
            + b_ref[3:4, 0:D]
        x = _ln_residual(tgt, attn, ln_ref[0:1, :], ln_ref[1:2, :])

        # ---- shared cross-attn K / V(o) projections (block-diag fused) -----
        v_in = mem_ref[:, 0:2 * D]                     # [mem0 | mem1]
        k_in = v_in + mem_ref[:, 2 * D:4 * D]          # [mem0+mpos0 | mem1+mpos1]
        kp_c = jnp.dot(k_in, w64_ref[:, _W64_K:_W64_K + 2 * D],
                       preferred_element_type=jnp.float32) + b_ref[2:3, 0:2 * D]
        vproj_c = jnp.dot(v_in, w64_ref[:, _W64_VO:_W64_VO + 2 * NHEAD * D],
                          preferred_element_type=jnp.float32)   # (TK, 2*NH*D)

        # ---- cross-attention 0 + norm2[0] -----------------------------------
        q0 = jnp.dot(x + pos, w32_ref[:, _W32_Q0:_W32_Q0 + D],
                     preferred_element_type=jnp.float32) + b_ref[1:2, 0:D]
        a0 = _heads(q0, kp_c[:, 0:D], vproj_c[:, 0:NHEAD * D], mask_cross) \
            + b_ref[4:5, 0:D]
        x = _ln_residual(x, a0, ln_ref[2:3, :], ln_ref[3:4, :])

        # ---- cross-attention 1 + norm2[1] -----------------------------------
        q1 = jnp.dot(x + pos, w32_ref[:, _W32_Q1:_W32_Q1 + D],
                     preferred_element_type=jnp.float32) + b_ref[1:2, D:2 * D]
        a1 = _heads(q1, kp_c[:, D:2 * D],
                    vproj_c[:, NHEAD * D:2 * NHEAD * D], mask_cross) \
            + b_ref[4:5, D:2 * D]
        x = _ln_residual(x, a1, ln_ref[4:5, :], ln_ref[5:6, :])

        # ---- feed-forward + norm3 -------------------------------------------
        h = jnp.dot(x, w32_ref[:, _W32_W1:_W32_W1 + DIM_FF],
                    preferred_element_type=jnp.float32) + b_ref[5:6, 0:DIM_FF]
        h = jnp.maximum(h, 0.0)
        f = jnp.dot(h, w64_ref[:, _W64_W2:_W64_W2 + D],
                    preferred_element_type=jnp.float32) + b_ref[6:7, 0:D]
        x = _ln_residual(x, f, ln_ref[6:7, :], ln_ref[7:8, :])

        o_ref[...] = x.astype(o_ref.dtype)

    return kernel


# ------------------------------ host-side packing ----------------------------
def prepare_params(params):
    """One-time parameter packing / algebraic folding:
      * 1/sqrt(head_dim) folded into Wq, bq (exact),
      * Wo folded into V: Wvo_h = Wv_h @ Wo_h, bo' = bo + bv @ Wo (exact),
      * self-attn [Wq|Wk] fused; both cross-attn K / Wvo as block-diag weights,
      * everything packed into 4 lane-dense slabs -> kernel takes 6 operands.
    """
    D, HD, NH = D_MODEL, HEAD_DIM, NHEAD

    def wvo_cat(wv, wo):
        return jnp.concatenate(
            [wv[:, h * HD:(h + 1) * HD] @ wo[h * HD:(h + 1) * HD, :]
             for h in range(NH)], axis=-1)                       # (D, NH*D)

    def block_diag(a, b):
        za = jnp.zeros((a.shape[0], b.shape[1]), a.dtype)
        zb = jnp.zeros((b.shape[0], a.shape[1]), b.dtype)
        return jnp.concatenate(
            [jnp.concatenate([a, za], axis=1),
             jnp.concatenate([zb, b], axis=1)], axis=0)

    wq_s, wk_s, wv_s, bq_s, bk_s, bv_s, wo_s, bo_s = params["self_attn"]
    wq0, wk0, wv0, bq0, bk0, bv0, wo0, bo0 = params["cross_attn"][0]
    wq1, wk1, wv1, bq1, bk1, bv1, wo1, bo1 = params["cross_attn"][1]
    w1, b1, w2, b2 = params["ffn"]

    wvo_s = wvo_cat(wv_s, wo_s)
    wvo_0 = wvo_cat(wv0, wo0)
    wvo_1 = wvo_cat(wv1, wo1)

    w32 = jnp.concatenate(
        [wq_s * SCALE, wk_s, wq0 * SCALE, wq1 * SCALE, wvo_s, w1], axis=-1)
    w64 = jnp.concatenate(
        [block_diag(wk0, wk1), block_diag(wvo_0, wvo_1), w2], axis=-1)

    def row(*parts):
        cat = jnp.concatenate(parts, axis=-1)
        return jnp.pad(cat, ((0, 0), (0, _BW - cat.shape[-1])))

    b_slab = jnp.concatenate([
        row(bq_s * SCALE, bk_s),                 # 0: self-attn fused q/k bias
        row(bq0 * SCALE, bq1 * SCALE),           # 1: cross-attn q biases
        row(bk0, bk1),                           # 2: cross-attn k biases
        row(bo_s + bv_s @ wo_s),                 # 3: self-attn out bias (bv folded)
        row(bo0 + bv0 @ wo0, bo1 + bv1 @ wo1),   # 4: cross-attn out biases
        row(b1),                                 # 5: FFN bias 1
        row(b2),                                 # 6: FFN bias 2
        jnp.zeros((1, _BW), jnp.float32),        # 7: pad to 8 sublanes
    ], axis=0)                                   # (8, _BW)

    (g2a, be2a), (g2b, be2b) = params["norm2"]
    ln = jnp.concatenate(
        [params["norm1"][0], params["norm1"][1],
         g2a, be2a, g2b, be2b,
         params["norm3"][0], params["norm3"][1]], axis=0)        # (8, D)

    return {"w32": w32, "w64": w64, "b": b_slab, "ln": ln}


def attn_layer_forward(tgt, memory_list, prep, pos=None, memory_pos=None):
    """forward_post of attnLayer as a single fused Pallas kernel.

    tgt/pos: (L, N, D); memory_list[i]/memory_pos[i]: (S, N, D).
    `prep` must come from prepare_params().
    """
    L, N, D = tgt.shape
    S = memory_list[0].shape[0]
    T, TK = L * N, S * N

    tgt_f = tgt.reshape(T, D)                                    # free reshape
    pos_f = (pos if pos is not None else jnp.zeros_like(tgt)).reshape(T, D)
    tgt_pos = jnp.concatenate([tgt_f, pos_f], axis=-1)           # (T, 2D)

    mem0 = memory_list[0].reshape(TK, D)
    mem1 = memory_list[1].reshape(TK, D)
    if memory_pos is None:
        mpos0 = jnp.zeros((TK, D), tgt.dtype)
        mpos1 = jnp.zeros((TK, D), tgt.dtype)
    else:
        mpos0 = memory_pos[0].reshape(TK, D)
        mpos1 = memory_pos[1].reshape(TK, D)
    mem_slab = jnp.concatenate([mem0, mem1, mpos0, mpos1], axis=-1)  # (TK, 4D)

    out = pl.pallas_call(
        _make_kernel(T, TK, N),
        out_shape=jax.ShapeDtypeStruct((T, D), tgt.dtype),
        # Grid-less: every operand is a full-array VMEM-resident block
        # (~100 KiB total), so there is exactly one launch, 6 input DMAs and
        # no pointless double-buffering of tiny constant weight tiles.
    )(tgt_pos, mem_slab, prep["w32"], prep["w64"], prep["b"], prep["ln"])
    return out.reshape(L, N, D)


# ------------------------- pure-JAX reference ---------------------------------
def _mha_ref(q_lnd, k_lnd, v_lnd, params):
    wq, wk, wv, bq, bk, bv, wo, bo = params
    L, N, D = q_lnd.shape
    S = k_lnd.shape[0]
    q = jnp.einsum("lnd,de->lne", q_lnd, wq) + bq[0]
    k = jnp.einsum("snd,de->sne", k_lnd, wk) + bk[0]
    v = jnp.einsum("snd,de->sne", v_lnd, wv) + bv[0]
    q = q.reshape(L, N, NHEAD, HEAD_DIM)
    k = k.reshape(S, N, NHEAD, HEAD_DIM)
    v = v.reshape(S, N, NHEAD, HEAD_DIM)
    s = jnp.einsum("lnhd,snhd->nhls", q, k) * SCALE
    p = jax.nn.softmax(s, axis=-1)
    o = jnp.einsum("nhls,snhd->lnhd", p, v).reshape(L, N, D)
    return jnp.einsum("lnd,de->lne", o, wo) + bo[0]


def _ln_ref(x, r, gamma, beta):
    z = x + r
    mean = jnp.mean(z, axis=-1, keepdims=True)
    var = jnp.mean((z - mean) ** 2, axis=-1, keepdims=True)
    return (z - mean) / jnp.sqrt(var + EPS) * gamma[0] + beta[0]


def attn_layer_ref(tgt, memory_list, params, pos, memory_pos):
    q = k = tgt + pos
    tgt2 = _mha_ref(q, k, tgt, params["self_attn"])
    tgt = _ln_ref(tgt, tgt2, *params["norm1"])
    for i, memory in enumerate(memory_list):
        q = tgt + pos
        k = memory + memory_pos[i]
        tgt2 = _mha_ref(q, k, memory, params["cross_attn"][i])
        tgt = _ln_ref(tgt, tgt2, *params["norm2"][i])
    w1, b1, w2, b2 = params["ffn"]
    h = jnp.maximum(jnp.einsum("lnd,df->lnf", tgt, w1) + b1[0], 0.0)
    tgt2 = jnp.einsum("lnf,fd->lnd", h, w2) + b2[0]
    return _ln_ref(tgt, tgt2, *params["norm3"])


# ------------------------------ param init ------------------------------------
def init_params(key):
    ks = iter(jax.random.split(key, 64))
    scale = 0.1

    def mha_params():
        wq = scale * jax.random.normal(next(ks), (D_MODEL, D_MODEL), jnp.float32)
        wk = scale * jax.random.normal(next(ks), (D_MODEL, D_MODEL), jnp.float32)
        wv = scale * jax.random.normal(next(ks), (D_MODEL, D_MODEL), jnp.float32)
        bq = scale * jax.random.normal(next(ks), (1, D_MODEL), jnp.float32)
        bk = scale * jax.random.normal(next(ks), (1, D_MODEL), jnp.float32)
        bv = scale * jax.random.normal(next(ks), (1, D_MODEL), jnp.float32)
        wo = scale * jax.random.normal(next(ks), (D_MODEL, D_MODEL), jnp.float32)
        bo = scale * jax.random.normal(next(ks), (1, D_MODEL), jnp.float32)
        return (wq, wk, wv, bq, bk, bv, wo, bo)

    def ln_params():
        g = jnp.ones((1, D_MODEL), jnp.float32) + 0.01 * jax.random.normal(next(ks), (1, D_MODEL))
        b = 0.01 * jax.random.normal(next(ks), (1, D_MODEL), jnp.float32)
        return (g, b)

    ffn = (scale * jax.random.normal(next(ks), (D_MODEL, DIM_FF), jnp.float32),
           scale * jax.random.normal(next(ks), (1, DIM_FF), jnp.float32),
           scale * jax.random.normal(next(ks), (DIM_FF, D_MODEL), jnp.float32),
           scale * jax.random.normal(next(ks), (1, D_MODEL), jnp.float32))

    return {
        "self_attn": mha_params(),
        "cross_attn": [mha_params(), mha_params()],
        "norm1": ln_params(),
        "norm2": [ln_params(), ln_params()],
        "norm3": ln_params(),
        "ffn": ffn,
    }


# --------------------------------- main ---------------------------------------
if __name__ == "__main__":
    key = jax.random.PRNGKey(0)
    k_in, k_par = jax.random.split(key)
    ks = jax.random.split(k_in, 6)

    tgt = jax.random.normal(ks[0], (L_TGT, BATCH, D_MODEL), jnp.float32)
    pos = jax.random.normal(ks[1], (L_TGT, BATCH, D_MODEL), jnp.float32)
    memory_list = [
        jax.random.normal(ks[2], (S_MEM, BATCH, D_MODEL), jnp.float32),
        jax.random.normal(ks[3], (S_MEM, BATCH, D_MODEL), jnp.float32),
    ]
    memory_pos = [
        jax.random.normal(ks[4], (S_MEM, BATCH, D_MODEL), jnp.float32),
        jax.random.normal(ks[5], (S_MEM, BATCH, D_MODEL), jnp.float32),
    ]

    params = init_params(k_par)
    prep = prepare_params(params)          # one-time packing/folding (outside jit)

    fwd = jax.jit(attn_layer_forward)
    out = fwd(tgt, memory_list, prep, pos=pos, memory_pos=memory_pos)
    out = jax.block_until_ready(out)

    ref = attn_layer_ref(tgt, memory_list, params, pos, memory_pos)
    # Exact softmax reciprocal restores the tight tolerance.
    np.testing.assert_allclose(np.asarray(out), np.asarray(ref), rtol=1e-4, atol=1e-4)

    print("KERNEL_OK")
</pallas_src>

<mosaic_0001>
module attributes {stable_mosaic.version = 11 : i64} {
  func.func @kernel(%arg0: memref<16x64xf32, #tpu.memory_space<vmem>>, %arg1: memref<24x128xf32, #tpu.memory_space<vmem>>, %arg2: memref<32x320xf32, #tpu.memory_space<vmem>>, %arg3: memref<64x352xf32, #tpu.memory_space<vmem>>, %arg4: memref<8x64xf32, #tpu.memory_space<vmem>>, %arg5: memref<8x32xf32, #tpu.memory_space<vmem>>, %arg6: memref<16x32xf32, #tpu.memory_space<vmem>>) attributes {dimension_semantics = [], scalar_prefetch = 0 : i64, scratch_operands = 0 : i64, tpu.core_type = #tpu.core_type<tc>} {
    %0 = tpu.iota {dimensions = array<i32: 0>} : vector<64x16xi32>
    %c2_i32 = arith.constant 2 : i32
    %c0_i32 = arith.constant 0 : i32
    %1 = arith.cmpi eq, %c2_i32, %c0_i32 : i32
    %c1_i32 = arith.constant 1 : i32
    %2 = arith.select %1, %c1_i32, %c2_i32 : i32
    %3 = vector.broadcast %2 : i32 to vector<64x16xi32>
    %4 = arith.remsi %0, %3 : vector<64x16xi32>
    %c0_i32_0 = arith.constant 0 : i32
    %5 = vector.broadcast %c0_i32_0 : i32 to vector<64x16xi32>
    %6 = arith.cmpi ne, %4, %5 : vector<64x16xi32>
    %c0_i32_1 = arith.constant 0 : i32
    %7 = vector.broadcast %c0_i32_1 : i32 to vector<64x16xi32>
    %8 = arith.cmpi slt, %4, %7 : vector<64x16xi32>
    %c0_i32_2 = arith.constant 0 : i32
    %9 = arith.cmpi slt, %2, %c0_i32_2 : i32
    %10 = vector.broadcast %9 : i1 to vector<64x16xi1>
    %11 = vector.broadcast %10 : vector<64x16xi1> to vector<64x16xi1>
    %12 = arith.xori %8, %11 : vector<64x16xi1>
    %13 = arith.andi %12, %6 : vector<64x16xi1>
    %14 = vector.broadcast %2 : i32 to vector<64x16xi32>
    %15 = arith.addi %4, %14 : vector<64x16xi32>
    %16 = arith.select %13, %15, %4 : vector<64x16xi1>, vector<64x16xi32>
    %17 = tpu.iota {dimensions = array<i32: 1>} : vector<64x16xi32>
    %c2_i32_3 = arith.constant 2 : i32
    %c0_i32_4 = arith.constant 0 : i32
    %18 = arith.cmpi eq, %c2_i32_3, %c0_i32_4 : i32
    %c1_i32_5 = arith.constant 1 : i32
    %19 = arith.select %18, %c1_i32_5, %c2_i32_3 : i32
    %20 = vector.broadcast %19 : i32 to vector<64x16xi32>
    %21 = arith.remsi %17, %20 : vector<64x16xi32>
    %c0_i32_6 = arith.constant 0 : i32
    %22 = vector.broadcast %c0_i32_6 : i32 to vector<64x16xi32>
    %23 = arith.cmpi ne, %21, %22 : vector<64x16xi32>
    %c0_i32_7 = arith.constant 0 : i32
    %24 = vector.broadcast %c0_i32_7 : i32 to vector<64x16xi32>
    %25 = arith.cmpi slt, %21, %24 : vector<64x16xi32>
    %c0_i32_8 = arith.constant 0 : i32
    %26 = arith.cmpi slt, %19, %c0_i32_8 : i32
    %27 = vector.broadcast %26 : i1 to vector<64x16xi1>
    %28 = vector.broadcast %27 : vector<64x16xi1> to vector<64x16xi1>
    %29 = arith.xori %25, %28 : vector<64x16xi1>
    %30 = arith.andi %29, %23 : vector<64x16xi1>
    %31 = vector.broadcast %19 : i32 to vector<64x16xi32>
    %32 = arith.addi %21, %31 : vector<64x16xi32>
    %33 = arith.select %30, %32, %21 : vector<64x16xi1>, vector<64x16xi32>
    %34 = arith.cmpi eq, %16, %33 : vector<64x16xi32>
    %cst = arith.constant 0.000000e+00 : f32
    %cst_9 = arith.constant -1.000000e+30 : f32
    %35 = vector.broadcast %cst : f32 to vector<64x16xf32>
    %36 = vector.broadcast %cst_9 : f32 to vector<64x16xf32>
    %37 = arith.select %34, %35, %36 : vector<64x16xi1>, vector<64x16xf32>
    %38 = tpu.iota {dimensions = array<i32: 0>} : vector<64x24xi32>
    %c2_i32_10 = arith.constant 2 : i32
    %c0_i32_11 = arith.constant 0 : i32
    %39 = arith.cmpi eq, %c2_i32_10, %c0_i32_11 : i32
    %c1_i32_12 = arith.constant 1 : i32
    %40 = arith.select %39, %c1_i32_12, %c2_i32_10 : i32
    %41 = vector.broadcast %40 : i32 to vector<64x24xi32>
    %42 = arith.remsi %38, %41 : vector<64x24xi32>
    %c0_i32_13 = arith.constant 0 : i32
    %43 = vector.broadcast %c0_i32_13 : i32 to vector<64x24xi32>
    %44 = arith.cmpi ne, %42, %43 : vector<64x24xi32>
    %c0_i32_14 = arith.constant 0 : i32
    %45 = vector.broadcast %c0_i32_14 : i32 to vector<64x24xi32>
    %46 = arith.cmpi slt, %42, %45 : vector<64x24xi32>
    %c0_i32_15 = arith.constant 0 : i32
    %47 = arith.cmpi slt, %40, %c0_i32_15 : i32
    %48 = vector.broadcast %47 : i1 to vector<64x24xi1>
    %49 = vector.broadcast %48 : vector<64x24xi1> to vector<64x24xi1>
    %50 = arith.xori %46, %49 : vector<64x24xi1>
    %51 = arith.andi %50, %44 : vector<64x24xi1>
    %52 = vector.broadcast %40 : i32 to vector<64x24xi32>
    %53 = arith.addi %42, %52 : vector<64x24xi32>
    %54 = arith.select %51, %53, %42 : vector<64x24xi1>, vector<64x24xi32>
    %55 = tpu.iota {dimensions = array<i32: 1>} : vector<64x24xi32>
    %c2_i32_16 = arith.constant 2 : i32
    %c0_i32_17 = arith.constant 0 : i32
    %56 = arith.cmpi eq, %c2_i32_16, %c0_i32_17 : i32
    %c1_i32_18 = arith.constant 1 : i32
    %57 = arith.select %56, %c1_i32_18, %c2_i32_16 : i32
    %58 = vector.broadcast %57 : i32 to vector<64x24xi32>
    %59 = arith.remsi %55, %58 : vector<64x24xi32>
    %c0_i32_19 = arith.constant 0 : i32
    %60 = vector.broadcast %c0_i32_19 : i32 to vector<64x24xi32>
    %61 = arith.cmpi ne, %59, %60 : vector<64x24xi32>
    %c0_i32_20 = arith.constant 0 : i32
    %62 = vector.broadcast %c0_i32_20 : i32 to vector<64x24xi32>
    %63 = arith.cmpi slt, %59, %62 : vector<64x24xi32>
    %c0_i32_21 = arith.constant 0 : i32
    %64 = arith.cmpi slt, %57, %c0_i32_21 : i32
    %65 = vector.broadcast %64 : i1 to vector<64x24xi1>
    %66 = vector.broadcast %65 : vector<64x24xi1> to vector<64x24xi1>
    %67 = arith.xori %63, %66 : vector<64x24xi1>
    %68 = arith.andi %67, %61 : vector<64x24xi1>
    %69 = vector.broadcast %57 : i32 to vector<64x24xi32>
    %70 = arith.addi %59, %69 : vector<64x24xi32>
    %71 = arith.select %68, %70, %59 : vector<64x24xi1>, vector<64x24xi32>
    %72 = arith.cmpi eq, %54, %71 : vector<64x24xi32>
    %cst_22 = arith.constant 0.000000e+00 : f32
    %cst_23 = arith.constant -1.000000e+30 : f32
    %73 = vector.broadcast %cst_22 : f32 to vector<64x24xf32>
    %74 = vector.broadcast %cst_23 : f32 to vector<64x24xf32>
    %75 = arith.select %72, %73, %74 : vector<64x24xi1>, vector<64x24xf32>
    %c0 = arith.constant 0 : index
    %c0_24 = arith.constant 0 : index
    %76 = vector.load %arg0[%c0, %c0_24] : memref<16x64xf32, #tpu.memory_space<vmem>>, vector<16x32xf32>
    %c0_25 = arith.constant 0 : index
    %c32 = arith.constant 32 : index
    %77 = vector.load %arg0[%c0_25, %c32] : memref<16x64xf32, #tpu.memory_space<vmem>>, vector<16x32xf32>
    %78 = arith.addf %76, %77 : vector<16x32xf32>
    %c0_26 = arith.constant 0 : index
    %c0_27 = arith.constant 0 : index
    %79 = vector.load %arg2[%c0_26, %c0_27] : memref<32x320xf32, #tpu.memory_space<vmem>>, vector<32x64xf32>
    %cst_28 = arith.constant dense<0.000000e+00> : vector<16x64xf32>
    %80 = tpu.matmul %78, %79, %cst_28 {dimension_numbers = #tpu.dot_dimension_numbers<[1], [0], [0], [1], [0, 0, 1, 1], [], []>} : vector<16x32xf32>, vector<32x64xf32>, vector<16x64xf32> -> vector<16x64xf32>
    %c0_29 = arith.constant 0 : index
    %c0_30 = arith.constant 0 : index
    %81 = vector.load %arg4[%c0_29, %c0_30] : memref<8x64xf32, #tpu.memory_space<vmem>>, vector<1x64xf32>
    %82 = vector.broadcast %81 : vector<1x64xf32> to vector<16x64xf32>
    %83 = arith.addf %80, %82 : vector<16x64xf32>
    %c0_31 = arith.constant 0 : index
    %c128 = arith.constant 128 : index
    %84 = vector.load %arg2[%c0_31, %c128] : memref<32x320xf32, #tpu.memory_space<vmem>>, vector<32x128xf32>
    %cst_32 = arith.constant dense<0.000000e+00> : vector<16x128xf32>
    %85 = tpu.matmul %76, %84, %cst_32 {dimension_numbers = #tpu.dot_dimension_numbers<[1], [0], [0], [1], [0, 0, 1, 1], [], []>} : vector<16x32xf32>, vector<32x128xf32>, vector<16x128xf32> -> vector<16x128xf32>
    %86 = vector.extract_strided_slice %83 {offsets = [0, 0], sizes = [16, 32], strides = [1, 1]} : vector<16x64xf32> to vector<16x32xf32>
    %87 = vector.extract_strided_slice %83 {offsets = [0, 32], sizes = [16, 32], strides = [1, 1]} : vector<16x64xf32> to vector<16x32xf32>
    %88 = vector.extract_strided_slice %86 {offsets = [0, 0], sizes = [16, 8], strides = [1, 1]} : vector<16x32xf32> to vector<16x8xf32>
    %89 = vector.extract_strided_slice %87 {offsets = [0, 0], sizes = [16, 8], strides = [1, 1]} : vector<16x32xf32> to vector<16x8xf32>
    %cst_33 = arith.constant dense<0.000000e+00> : vector<16x16xf32>
    %90 = tpu.matmul %88, %89, %cst_33 {dimension_numbers = #tpu.dot_dimension_numbers<[1], [1], [0], [0], [0, 0, 1, 0], [], []>} : vector<16x8xf32>, vector<16x8xf32>, vector<16x16xf32> -> vector<16x16xf32>
    %91 = vector.extract_strided_slice %86 {offsets = [0, 8], sizes = [16, 8], strides = [1, 1]} : vector<16x32xf32> to vector<16x8xf32>
    %92 = vector.extract_strided_slice %87 {offsets = [0, 8], sizes = [16, 8], strides = [1, 1]} : vector<16x32xf32> to vector<16x8xf32>
    %cst_34 = arith.constant dense<0.000000e+00> : vector<16x16xf32>
    %93 = tpu.matmul %91, %92, %cst_34 {dimension_numbers = #tpu.dot_dimension_numbers<[1], [1], [0], [0], [0, 0, 1, 0], [], []>} : vector<16x8xf32>, vector<16x8xf32>, vector<16x16xf32> -> vector<16x16xf32>
    %94 = vector.extract_strided_slice %86 {offsets = [0, 16], sizes = [16, 8], strides = [1, 1]} : vector<16x32xf32> to vector<16x8xf32>
    %95 = vector.extract_strided_slice %87 {offsets = [0, 16], sizes = [16, 8], strides = [1, 1]} : vector<16x32xf32> to vector<16x8xf32>
    %cst_35 = arith.constant dense<0.000000e+00> : vector<16x16xf32>
    %96 = tpu.matmul %94, %95, %cst_35 {dimension_numbers = #tpu.dot_dimension_numbers<[1], [1], [0], [0], [0, 0, 1, 0], [], []>} : vector<16x8xf32>, vector<16x8xf32>, vector<16x16xf32> -> vector<16x16xf32>
    %97 = vector.extract_strided_slice %86 {offsets = [0, 24], sizes = [16, 8], strides = [1, 1]} : vector<16x32xf32> to vector<16x8xf32>
    %98 = vector.extract_strided_slice %87 {offsets = [0, 24], sizes = [16, 8], strides = [1, 1]} : vector<16x32xf32> to vector<16x8xf32>
    %cst_36 = arith.constant dense<0.000000e+00> : vector<16x16xf32>
    %99 = tpu.matmul %97, %98, %cst_36 {dimension_numbers = #tpu.dot_dimension_numbers<[1], [1], [0], [0], [0, 0, 1, 0], [], []>} : vector<16x8xf32>, vector<16x8xf32>, vector<16x16xf32> -> vector<16x16xf32>
    %100 = tpu.concatenate %90, %93, %96, %99 in 0 : vector<16x16xf32>, vector<16x16xf32>, vector<16x16xf32>, vector<16x16xf32> -> vector<64x16xf32>
    %101 = arith.addf %100, %37 : vector<64x16xf32>
    %cst_37 = arith.constant dense<0xFF800000> : vector<64xf32>
    %102 = vector.multi_reduction <maximumf>, %101, %cst_37 [1] : vector<64x16xf32> to vector<64xf32>
    %103 = vector.shape_cast %102 : vector<64xf32> to vector<64x1xf32>
    %104 = vector.broadcast %103 : vector<64x1xf32> to vector<64x16xf32>
    %105 = arith.subf %101, %104 : vector<64x16xf32>
    %106 = math.exp %105 : vector<64x16xf32>
    %cst_38 = arith.constant dense<0.000000e+00> : vector<64xf32>
    %107 = vector.multi_reduction <add>, %106, %cst_38 [1] : vector<64x16xf32> to vector<64xf32>
    %108 = vector.shape_cast %107 : vector<64xf32> to vector<64x1xf32>
    %109 = vector.broadcast %108 : vector<64x1xf32> to vector<64x16xf32>
    %110 = arith.divf %106, %109 : vector<64x16xf32>
    %111 = vector.extract_strided_slice %110 {offsets = [0, 0], sizes = [16, 16], strides = [1, 1]} : vector<64x16xf32> to vector<16x16xf32>
    %112 = vector.extract_strided_slice %85 {offsets = [0, 0], sizes = [16, 32], strides = [1, 1]} : vector<16x128xf32> to vector<16x32xf32>
    %cst_39 = arith.constant dense<0.000000e+00> : vector<16x32xf32>
    %113 = tpu.matmul %111, %112, %cst_39 {dimension_numbers = #tpu.dot_dimension_numbers<[1], [0], [0], [1], [0, 0, 1, 1], [], []>} : vector<16x16xf32>, vector<16x32xf32>, vector<16x32xf32> -> vector<16x32xf32>
    %114 = vector.extract_strided_slice %110 {offsets = [16, 0], sizes = [16, 16], strides = [1, 1]} : vector<64x16xf32> to vector<16x16xf32>
    %115 = vector.extract_strided_slice %85 {offsets = [0, 32], sizes = [16, 32], strides = [1, 1]} : vector<16x128xf32> to vector<16x32xf32>
    %cst_40 = arith.constant dense<0.000000e+00> : vector<16x32xf32>
    %116 = tpu.matmul %114, %115, %cst_40 {dimension_numbers = #tpu.dot_dimension_numbers<[1], [0], [0], [1], [0, 0, 1, 1], [], []>} : vector<16x16xf32>, vector<16x32xf32>, vector<16x32xf32> -> vector<16x32xf32>
    %117 = arith.addf %113, %116 : vector<16x32xf32>
    %118 = vector.extract_strided_slice %110 {offsets = [32, 0], sizes = [16, 16], strides = [1, 1]} : vector<64x16xf32> to vector<16x16xf32>
    %119 = vector.extract_strided_slice %85 {offsets = [0, 64], sizes = [16, 32], strides = [1, 1]} : vector<16x128xf32> to vector<16x32xf32>
    %cst_41 = arith.constant dense<0.000000e+00> : vector<16x32xf32>
    %120 = tpu.matmul %118, %119, %cst_41 {dimension_numbers = #tpu.dot_dimension_numbers<[1], [0], [0], [1], [0, 0, 1, 1], [], []>} : vector<16x16xf32>, vector<16x32xf32>, vector<16x32xf32> -> vector<16x32xf32>
    %121 = arith.addf %117, %120 : vector<16x32xf32>
    %122 = vector.extract_strided_slice %110 {offsets = [48, 0], sizes = [16, 16], strides = [1, 1]} : vector<64x16xf32> to vector<16x16xf32>
    %123 = vector.extract_strided_slice %85 {offsets = [0, 96], sizes = [16, 32], strides = [1, 1]} : vector<16x128xf32> to vector<16x32xf32>
    %cst_42 = arith.constant dense<0.000000e+00> : vector<16x32xf32>
    %124 = tpu.matmul %122, %123, %cst_42 {dimension_numbers = #tpu.dot_dimension_numbers<[1], [0], [0], [1], [0, 0, 1, 1], [], []>} : vector<16x16xf32>, vector<16x32xf32>, vector<16x32xf32> -> vector<16x32xf32>
    %125 = arith.addf %121, %124 : vector<16x32xf32>
    %c3 = arith.constant 3 : index
    %c0_43 = arith.constant 0 : index
    %126 = vector.load %arg4[%c3, %c0_43] : memref<8x64xf32, #tpu.memory_space<vmem>>, vector<1x32xf32>
    %127 = vector.broadcast %126 : vector<1x32xf32> to vector<16x32xf32>
    %128 = arith.addf %125, %127 : vector<16x32xf32>
    %c0_44 = arith.constant 0 : index
    %c0_45 = arith.constant 0 : index
    %129 = vector.load %arg5[%c0_44, %c0_45] : memref<8x32xf32, #tpu.memory_space<vmem>>, vector<1x32xf32>
    %c1 = arith.constant 1 : index
    %c0_46 = arith.constant 0 : index
    %130 = vector.load %arg5[%c1, %c0_46] : memref<8x32xf32, #tpu.memory_space<vmem>>, vector<1x32xf32>
    %131 = arith.addf %76, %128 : vector<16x32xf32>
    %cst_47 = arith.constant dense<0.000000e+00> : vector<16xf32>
    %132 = vector.multi_reduction <add>, %131, %cst_47 [1] : vector<16x32xf32> to vector<16xf32>
    %133 = vector.shape_cast %132 : vector<16xf32> to vector<16x1xf32>
    %cst_48 = arith.constant 3.200000e+01 : f32
    %134 = vector.broadcast %cst_48 : f32 to vector<16x1xf32>
    %135 = arith.divf %133, %134 : vector<16x1xf32>
    %136 = vector.broadcast %135 : vector<16x1xf32> to vector<16x32xf32>
    %137 = arith.subf %131, %136 : vector<16x32xf32>
    %138 = arith.mulf %137, %137 : vector<16x32xf32>
    %cst_49 = arith.constant dense<0.000000e+00> : vector<16xf32>
    %139 = vector.multi_reduction <add>, %138, %cst_49 [1] : vector<16x32xf32> to vector<16xf32>
    %140 = vector.shape_cast %139 : vector<16xf32> to vector<16x1xf32>
    %cst_50 = arith.constant 3.200000e+01 : f32
    %141 = vector.broadcast %cst_50 : f32 to vector<16x1xf32>
    %142 = arith.divf %140, %141 : vector<16x1xf32>
    %cst_51 = arith.constant 9.99999974E-6 : f32
    %143 = vector.broadcast %cst_51 : f32 to vector<16x1xf32>
    %144 = arith.addf %142, %143 : vector<16x1xf32>
    %145 = math.rsqrt %144 : vector<16x1xf32>
    %146 = vector.broadcast %145 : vector<16x1xf32> to vector<16x32xf32>
    %147 = arith.mulf %137, %146 : vector<16x32xf32>
    %148 = vector.broadcast %129 : vector<1x32xf32> to vector<16x32xf32>
    %149 = arith.mulf %147, %148 : vector<16x32xf32>
    %150 = vector.broadcast %130 : vector<1x32xf32> to vector<16x32xf32>
    %151 = arith.addf %149, %150 : vector<16x32xf32>
    %c0_52 = arith.constant 0 : index
    %c0_53 = arith.constant 0 : index
    %152 = vector.load %arg1[%c0_52, %c0_53] : memref<24x128xf32, #tpu.memory_space<vmem>>, vector<24x64xf32>
    %c0_54 = arith.constant 0 : index
    %c64 = arith.constant 64 : index
    %153 = vector.load %arg1[%c0_54, %c64] : memref<24x128xf32, #tpu.memory_space<vmem>>, vector<24x64xf32>
    %154 = arith.addf %152, %153 : vector<24x64xf32>
    %c0_55 = arith.constant 0 : index
    %c0_56 = arith.constant 0 : index
    %155 = vector.load %arg3[%c0_55, %c0_56] : memref<64x352xf32, #tpu.memory_space<vmem>>, vector<64x64xf32>
    %cst_57 = arith.constant dense<0.000000e+00> : vector<24x64xf32>
    %156 = tpu.matmul %154, %155, %cst_57 {dimension_numbers = #tpu.dot_dimension_numbers<[1], [0], [0], [1], [0, 0, 1, 1], [], []>} : vector<24x64xf32>, vector<64x64xf32>, vector<24x64xf32> -> vector<24x64xf32>
    %c2 = arith.constant 2 : index
    %c0_58 = arith.constant 0 : index
    %157 = vector.load %arg4[%c2, %c0_58] : memref<8x64xf32, #tpu.memory_space<vmem>>, vector<1x64xf32>
    %158 = vector.broadcast %157 : vector<1x64xf32> to vector<24x64xf32>
    %159 = arith.addf %156, %158 : vector<24x64xf32>
    %c0_59 = arith.constant 0 : index
    %c64_60 = arith.constant 64 : index
    %160 = vector.load %arg3[%c0_59, %c64_60] : memref<64x352xf32, #tpu.memory_space<vmem>>, vector<64x256xf32>
    %cst_61 = arith.constant dense<0.000000e+00> : vector<24x256xf32>
    %161 = tpu.matmul %152, %160, %cst_61 {dimension_numbers = #tpu.dot_dimension_numbers<[1], [0], [0], [1], [0, 0, 1, 1], [], []>} : vector<24x64xf32>, vector<64x256xf32>, vector<24x256xf32> -> vector<24x256xf32>
    %162 = arith.addf %151, %77 : vector<16x32xf32>
    %c0_62 = arith.constant 0 : index
    %c64_63 = arith.constant 64 : index
    %163 = vector.load %arg2[%c0_62, %c64_63] : memref<32x320xf32, #tpu.memory_space<vmem>>, vector<32x32xf32>
    %cst_64 = arith.constant dense<0.000000e+00> : vector<16x32xf32>
    %164 = tpu.matmul %162, %163, %cst_64 {dimension_numbers = #tpu.dot_dimension_numbers<[1], [0], [0], [1], [0, 0, 1, 1], [], []>} : vector<16x32xf32>, vector<32x32xf32>, vector<16x32xf32> -> vector<16x32xf32>
    %c1_65 = arith.constant 1 : index
    %c0_66 = arith.constant 0 : index
    %165 = vector.load %arg4[%c1_65, %c0_66] : memref<8x64xf32, #tpu.memory_space<vmem>>, vector<1x32xf32>
    %166 = vector.broadcast %165 : vector<1x32xf32> to vector<16x32xf32>
    %167 = arith.addf %164, %166 : vector<16x32xf32>
    %168 = vector.extract_strided_slice %159 {offsets = [0, 0], sizes = [24, 32], strides = [1, 1]} : vector<24x64xf32> to vector<24x32xf32>
    %169 = vector.extract_strided_slice %161 {offsets = [0, 0], sizes = [24, 128], strides = [1, 1]} : vector<24x256xf32> to vector<24x128xf32>
    %170 = vector.extract_strided_slice %167 {offsets = [0, 0], sizes = [16, 8], strides = [1, 1]} : vector<16x32xf32> to vector<16x8xf32>
    %171 = vector.extract_strided_slice %168 {offsets = [0, 0], sizes = [24, 8], strides = [1, 1]} : vector<24x32xf32> to vector<24x8xf32>
    %cst_67 = arith.constant dense<0.000000e+00> : vector<16x24xf32>
    %172 = tpu.matmul %170, %171, %cst_67 {dimension_numbers = #tpu.dot_dimension_numbers<[1], [1], [0], [0], [0, 0, 1, 0], [], []>} : vector<16x8xf32>, vector<24x8xf32>, vector<16x24xf32> -> vector<16x24xf32>
    %173 = vector.extract_strided_slice %167 {offsets = [0, 8], sizes = [16, 8], strides = [1, 1]} : vector<16x32xf32> to vector<16x8xf32>
    %174 = vector.extract_strided_slice %168 {offsets = [0, 8], sizes = [24, 8], strides = [1, 1]} : vector<24x32xf32> to vector<24x8xf32>
    %cst_68 = arith.constant dense<0.000000e+00> : vector<16x24xf32>
    %175 = tpu.matmul %173, %174, %cst_68 {dimension_numbers = #tpu.dot_dimension_numbers<[1], [1], [0], [0], [0, 0, 1, 0], [], []>} : vector<16x8xf32>, vector<24x8xf32>, vector<16x24xf32> -> vector<16x24xf32>
    %176 = vector.extract_strided_slice %167 {offsets = [0, 16], sizes = [16, 8], strides = [1, 1]} : vector<16x32xf32> to vector<16x8xf32>
    %177 = vector.extract_strided_slice %168 {offsets = [0, 16], sizes = [24, 8], strides = [1, 1]} : vector<24x32xf32> to vector<24x8xf32>
    %cst_69 = arith.constant dense<0.000000e+00> : vector<16x24xf32>
    %178 = tpu.matmul %176, %177, %cst_69 {dimension_numbers = #tpu.dot_dimension_numbers<[1], [1], [0], [0], [0, 0, 1, 0], [], []>} : vector<16x8xf32>, vector<24x8xf32>, vector<16x24xf32> -> vector<16x24xf32>
    %179 = vector.extract_strided_slice %167 {offsets = [0, 24], sizes = [16, 8], strides = [1, 1]} : vector<16x32xf32> to vector<16x8xf32>
    %180 = vector.extract_strided_slice %168 {offsets = [0, 24], sizes = [24, 8], strides = [1, 1]} : vector<24x32xf32> to vector<24x8xf32>
    %cst_70 = arith.constant dense<0.000000e+00> : vector<16x24xf32>
    %181 = tpu.matmul %179, %180, %cst_70 {dimension_numbers = #tpu.dot_dimension_numbers<[1], [1], [0], [0], [0, 0, 1, 0], [], []>} : vector<16x8xf32>, vector<24x8xf32>, vector<16x24xf32> -> vector<16x24xf32>
    %182 = tpu.concatenate %172, %175, %178, %181 in 0 : vector<16x24xf32>, vector<16x24xf32>, vector<16x24xf32>, vector<16x24xf32> -> vector<64x24xf32>
    %183 = arith.addf %182, %75 : vector<64x24xf32>
    %cst_71 = arith.constant dense<0xFF800000> : vector<64xf32>
    %184 = vector.multi_reduction <maximumf>, %183, %cst_71 [1] : vector<64x24xf32> to vector<64xf32>
    %185 = vector.shape_cast %184 : vector<64xf32> to vector<64x1xf32>
    %186 = vector.broadcast %185 : vector<64x1xf32> to vector<64x24xf32>
    %187 = arith.subf %183, %186 : vector<64x24xf32>
    %188 = math.exp %187 : vector<64x24xf32>
    %cst_72 = arith.constant dense<0.000000e+00> : vector<64xf32>
    %189 = vector.multi_reduction <add>, %188, %cst_72 [1] : vector<64x24xf32> to vector<64xf32>
    %190 = vector.shape_cast %189 : vector<64xf32> to vector<64x1xf32>
    %191 = vector.broadcast %190 : vector<64x1xf32> to vector<64x24xf32>
    %192 = arith.divf %188, %191 : vector<64x24xf32>
    %193 = vector.extract_strided_slice %192 {offsets = [0, 0], sizes = [16, 24], strides = [1, 1]} : vector<64x24xf32> to vector<16x24xf32>
    %194 = vector.extract_strided_slice %169 {offsets = [0, 0], sizes = [24, 32], strides = [1, 1]} : vector<24x128xf32> to vector<24x32xf32>
    %cst_73 = arith.constant dense<0.000000e+00> : vector<16x32xf32>
    %195 = tpu.matmul %193, %194, %cst_73 {dimension_numbers = #tpu.dot_dimension_numbers<[1], [0], [0], [1], [0, 0, 1, 1], [], []>} : vector<16x24xf32>, vector<24x32xf32>, vector<16x32xf32> -> vector<16x32xf32>
    %196 = vector.extract_strided_slice %192 {offsets = [16, 0], sizes = [16, 24], strides = [1, 1]} : vector<64x24xf32> to vector<16x24xf32>
    %197 = vector.extract_strided_slice %169 {offsets = [0, 32], sizes = [24, 32], strides = [1, 1]} : vector<24x128xf32> to vector<24x32xf32>
    %cst_74 = arith.constant dense<0.000000e+00> : vector<16x32xf32>
    %198 = tpu.matmul %196, %197, %cst_74 {dimension_numbers = #tpu.dot_dimension_numbers<[1], [0], [0], [1], [0, 0, 1, 1], [], []>} : vector<16x24xf32>, vector<24x32xf32>, vector<16x32xf32> -> vector<16x32xf32>
    %199 = arith.addf %195, %198 : vector<16x32xf32>
    %200 = vector.extract_strided_slice %192 {offsets = [32, 0], sizes = [16, 24], strides = [1, 1]} : vector<64x24xf32> to vector<16x24xf32>
    %201 = vector.extract_strided_slice %169 {offsets = [0, 64], sizes = [24, 32], strides = [1, 1]} : vector<24x128xf32> to vector<24x32xf32>
    %cst_75 = arith.constant dense<0.000000e+00> : vector<16x32xf32>
    %202 = tpu.matmul %200, %201, %cst_75 {dimension_numbers = #tpu.dot_dimension_numbers<[1], [0], [0], [1], [0, 0, 1, 1], [], []>} : vector<16x24xf32>, vector<24x32xf32>, vector<16x32xf32> -> vector<16x32xf32>
    %203 = arith.addf %199, %202 : vector<16x32xf32>
    %204 = vector.extract_strided_slice %192 {offsets = [48, 0], sizes = [16, 24], strides = [1, 1]} : vector<64x24xf32> to vector<16x24xf32>
    %205 = vector.extract_strided_slice %169 {offsets = [0, 96], sizes = [24, 32], strides = [1, 1]} : vector<24x128xf32> to vector<24x32xf32>
    %cst_76 = arith.constant dense<0.000000e+00> : vector<16x32xf32>
    %206 = tpu.matmul %204, %205, %cst_76 {dimension_numbers = #tpu.dot_dimension_numbers<[1], [0], [0], [1], [0, 0, 1, 1], [], []>} : vector<16x24xf32>, vector<24x32xf32>, vector<16x32xf32> -> vector<16x32xf32>
    %207 = arith.addf %203, %206 : vector<16x32xf32>
    %c4 = arith.constant 4 : index
    %c0_77 = arith.constant 0 : index
    %208 = vector.load %arg4[%c4, %c0_77] : memref<8x64xf32, #tpu.memory_space<vmem>>, vector<1x32xf32>
    %209 = vector.broadcast %208 : vector<1x32xf32> to vector<16x32xf32>
    %210 = arith.addf %207, %209 : vector<16x32xf32>
    %c2_78 = arith.constant 2 : index
    %c0_79 = arith.constant 0 : index
    %211 = vector.load %arg5[%c2_78, %c0_79] : memref<8x32xf32, #tpu.memory_space<vmem>>, vector<1x32xf32>
    %c3_80 = arith.constant 3 : index
    %c0_81 = arith.constant 0 : index
    %212 = vector.load %arg5[%c3_80, %c0_81] : memref<8x32xf32, #tpu.memory_space<vmem>>, vector<1x32xf32>
    %213 = arith.addf %151, %210 : vector<16x32xf32>
    %cst_82 = arith.constant dense<0.000000e+00> : vector<16xf32>
    %214 = vector.multi_reduction <add>, %213, %cst_82 [1] : vector<16x32xf32> to vector<16xf32>
    %215 = vector.shape_cast %214 : vector<16xf32> to vector<16x1xf32>
    %cst_83 = arith.constant 3.200000e+01 : f32
    %216 = vector.broadcast %cst_83 : f32 to vector<16x1xf32>
    %217 = arith.divf %215, %216 : vector<16x1xf32>
    %218 = vector.broadcast %217 : vector<16x1xf32> to vector<16x32xf32>
    %219 = arith.subf %213, %218 : vector<16x32xf32>
    %220 = arith.mulf %219, %219 : vector<16x32xf32>
    %cst_84 = arith.constant dense<0.000000e+00> : vector<16xf32>
    %221 = vector.multi_reduction <add>, %220, %cst_84 [1] : vector<16x32xf32> to vector<16xf32>
    %222 = vector.shape_cast %221 : vector<16xf32> to vector<16x1xf32>
    %cst_85 = arith.constant 3.200000e+01 : f32
    %223 = vector.broadcast %cst_85 : f32 to vector<16x1xf32>
    %224 = arith.divf %222, %223 : vector<16x1xf32>
    %cst_86 = arith.constant 9.99999974E-6 : f32
    %225 = vector.broadcast %cst_86 : f32 to vector<16x1xf32>
    %226 = arith.addf %224, %225 : vector<16x1xf32>
    %227 = math.rsqrt %226 : vector<16x1xf32>
    %228 = vector.broadcast %227 : vector<16x1xf32> to vector<16x32xf32>
    %229 = arith.mulf %219, %228 : vector<16x32xf32>
    %230 = vector.broadcast %211 : vector<1x32xf32> to vector<16x32xf32>
    %231 = arith.mulf %229, %230 : vector<16x32xf32>
    %232 = vector.broadcast %212 : vector<1x32xf32> to vector<16x32xf32>
    %233 = arith.addf %231, %232 : vector<16x32xf32>
    %234 = arith.addf %233, %77 : vector<16x32xf32>
    %c0_87 = arith.constant 0 : index
    %c96 = arith.constant 96 : index
    %235 = vector.load %arg2[%c0_87, %c96] : memref<32x320xf32, #tpu.memory_space<vmem>>, vector<32x32xf32>
    %cst_88 = arith.constant dense<0.000000e+00> : vector<16x32xf32>
    %236 = tpu.matmul %234, %235, %cst_88 {dimension_numbers = #tpu.dot_dimension_numbers<[1], [0], [0], [1], [0, 0, 1, 1], [], []>} : vector<16x32xf32>, vector<32x32xf32>, vector<16x32xf32> -> vector<16x32xf32>
    %c1_89 = arith.constant 1 : index
    %c32_90 = arith.constant 32 : index
    %237 = vector.load %arg4[%c1_89, %c32_90] : memref<8x64xf32, #tpu.memory_space<vmem>>, vector<1x32xf32>
    %238 = vector.broadcast %237 : vector<1x32xf32> to vector<16x32xf32>
    %239 = arith.addf %236, %238 : vector<16x32xf32>
    %240 = vector.extract_strided_slice %159 {offsets = [0, 32], sizes = [24, 32], strides = [1, 1]} : vector<24x64xf32> to vector<24x32xf32>
    %241 = vector.extract_strided_slice %161 {offsets = [0, 128], sizes = [24, 128], strides = [1, 1]} : vector<24x256xf32> to vector<24x128xf32>
    %242 = vector.extract_strided_slice %239 {offsets = [0, 0], sizes = [16, 8], strides = [1, 1]} : vector<16x32xf32> to vector<16x8xf32>
    %243 = vector.extract_strided_slice %240 {offsets = [0, 0], sizes = [24, 8], strides = [1, 1]} : vector<24x32xf32> to vector<24x8xf32>
    %cst_91 = arith.constant dense<0.000000e+00> : vector<16x24xf32>
    %244 = tpu.matmul %242, %243, %cst_91 {dimension_numbers = #tpu.dot_dimension_numbers<[1], [1], [0], [0], [0, 0, 1, 0], [], []>} : vector<16x8xf32>, vector<24x8xf32>, vector<16x24xf32> -> vector<16x24xf32>
    %245 = vector.extract_strided_slice %239 {offsets = [0, 8], sizes = [16, 8], strides = [1, 1]} : vector<16x32xf32> to vector<16x8xf32>
    %246 = vector.extract_strided_slice %240 {offsets = [0, 8], sizes = [24, 8], strides = [1, 1]} : vector<24x32xf32> to vector<24x8xf32>
    %cst_92 = arith.constant dense<0.000000e+00> : vector<16x24xf32>
    %247 = tpu.matmul %245, %246, %cst_92 {dimension_numbers = #tpu.dot_dimension_numbers<[1], [1], [0], [0], [0, 0, 1, 0], [], []>} : vector<16x8xf32>, vector<24x8xf32>, vector<16x24xf32> -> vector<16x24xf32>
    %248 = vector.extract_strided_slice %239 {offsets = [0, 16], sizes = [16, 8], strides = [1, 1]} : vector<16x32xf32> to vector<16x8xf32>
    %249 = vector.extract_strided_slice %240 {offsets = [0, 16], sizes = [24, 8], strides = [1, 1]} : vector<24x32xf32> to vector<24x8xf32>
    %cst_93 = arith.constant dense<0.000000e+00> : vector<16x24xf32>
    %250 = tpu.matmul %248, %249, %cst_93 {dimension_numbers = #tpu.dot_dimension_numbers<[1], [1], [0], [0], [0, 0, 1, 0], [], []>} : vector<16x8xf32>, vector<24x8xf32>, vector<16x24xf32> -> vector<16x24xf32>
    %251 = vector.extract_strided_slice %239 {offsets = [0, 24], sizes = [16, 8], strides = [1, 1]} : vector<16x32xf32> to vector<16x8xf32>
    %252 = vector.extract_strided_slice %240 {offsets = [0, 24], sizes = [24, 8], strides = [1, 1]} : vector<24x32xf32> to vector<24x8xf32>
    %cst_94 = arith.constant dense<0.000000e+00> : vector<16x24xf32>
    %253 = tpu.matmul %251, %252, %cst_94 {dimension_numbers = #tpu.dot_dimension_numbers<[1], [1], [0], [0], [0, 0, 1, 0], [], []>} : vector<16x8xf32>, vector<24x8xf32>, vector<16x24xf32> -> vector<16x24xf32>
    %254 = tpu.concatenate %244, %247, %250, %253 in 0 : vector<16x24xf32>, vector<16x24xf32>, vector<16x24xf32>, vector<16x24xf32> -> vector<64x24xf32>
    %255 = arith.addf %254, %75 : vector<64x24xf32>
    %cst_95 = arith.constant dense<0xFF800000> : vector<64xf32>
    %256 = vector.multi_reduction <maximumf>, %255, %cst_95 [1] : vector<64x24xf32> to vector<64xf32>
    %257 = vector.shape_cast %256 : vector<64xf32> to vector<64x1xf32>
    %258 = vector.broadcast %257 : vector<64x1xf32> to vector<64x24xf32>
    %259 = arith.subf %255, %258 : vector<64x24xf32>
    %260 = math.exp %259 : vector<64x24xf32>
    %cst_96 = arith.constant dense<0.000000e+00> : vector<64xf32>
    %261 = vector.multi_reduction <add>, %260, %cst_96 [1] : vector<64x24xf32> to vector<64xf32>
    %262 = vector.shape_cast %261 : vector<64xf32> to vector<64x1xf32>
    %263 = vector.broadcast %262 : vector<64x1xf32> to vector<64x24xf32>
    %264 = arith.divf %260, %263 : vector<64x24xf32>
    %265 = vector.extract_strided_slice %264 {offsets = [0, 0], sizes = [16, 24], strides = [1, 1]} : vector<64x24xf32> to vector<16x24xf32>
    %266 = vector.extract_strided_slice %241 {offsets = [0, 0], sizes = [24, 32], strides = [1, 1]} : vector<24x128xf32> to vector<24x32xf32>
    %cst_97 = arith.constant dense<0.000000e+00> : vector<16x32xf32>
    %267 = tpu.matmul %265, %266, %cst_97 {dimension_numbers = #tpu.dot_dimension_numbers<[1], [0], [0], [1], [0, 0, 1, 1], [], []>} : vector<16x24xf32>, vector<24x32xf32>, vector<16x32xf32> -> vector<16x32xf32>
    %268 = vector.extract_strided_slice %264 {offsets = [16, 0], sizes = [16, 24], strides = [1, 1]} : vector<64x24xf32> to vector<16x24xf32>
    %269 = vector.extract_strided_slice %241 {offsets = [0, 32], sizes = [24, 32], strides = [1, 1]} : vector<24x128xf32> to vector<24x32xf32>
    %cst_98 = arith.constant dense<0.000000e+00> : vector<16x32xf32>
    %270 = tpu.matmul %268, %269, %cst_98 {dimension_numbers = #tpu.dot_dimension_numbers<[1], [0], [0], [1], [0, 0, 1, 1], [], []>} : vector<16x24xf32>, vector<24x32xf32>, vector<16x32xf32> -> vector<16x32xf32>
    %271 = arith.addf %267, %270 : vector<16x32xf32>
    %272 = vector.extract_strided_slice %264 {offsets = [32, 0], sizes = [16, 24], strides = [1, 1]} : vector<64x24xf32> to vector<16x24xf32>
    %273 = vector.extract_strided_slice %241 {offsets = [0, 64], sizes = [24, 32], strides = [1, 1]} : vector<24x128xf32> to vector<24x32xf32>
    %cst_99 = arith.constant dense<0.000000e+00> : vector<16x32xf32>
    %274 = tpu.matmul %272, %273, %cst_99 {dimension_numbers = #tpu.dot_dimension_numbers<[1], [0], [0], [1], [0, 0, 1, 1], [], []>} : vector<16x24xf32>, vector<24x32xf32>, vector<16x32xf32> -> vector<16x32xf32>
    %275 = arith.addf %271, %274 : vector<16x32xf32>
    %276 = vector.extract_strided_slice %264 {offsets = [48, 0], sizes = [16, 24], strides = [1, 1]} : vector<64x24xf32> to vector<16x24xf32>
    %277 = vector.extract_strided_slice %241 {offsets = [0, 96], sizes = [24, 32], strides = [1, 1]} : vector<24x128xf32> to vector<24x32xf32>
    %cst_100 = arith.constant dense<0.000000e+00> : vector<16x32xf32>
    %278 = tpu.matmul %276, %277, %cst_100 {dimension_numbers = #tpu.dot_dimension_numbers<[1], [0], [0], [1], [0, 0, 1, 1], [], []>} : vector<16x24xf32>, vector<24x32xf32>, vector<16x32xf32> -> vector<16x32xf32>
    %279 = arith.addf %275, %278 : vector<16x32xf32>
    %c4_101 = arith.constant 4 : index
    %c32_102 = arith.constant 32 : index
    %280 = vector.load %arg4[%c4_101, %c32_102] : memref<8x64xf32, #tpu.memory_space<vmem>>, vector<1x32xf32>
    %281 = vector.broadcast %280 : vector<1x32xf32> to vector<16x32xf32>
    %282 = arith.addf %279, %281 : vector<16x32xf32>
    %c4_103 = arith.constant 4 : index
    %c0_104 = arith.constant 0 : index
    %283 = vector.load %arg5[%c4_103, %c0_104] : memref<8x32xf32, #tpu.memory_space<vmem>>, vector<1x32xf32>
    %c5 = arith.constant 5 : index
    %c0_105 = arith.constant 0 : index
    %284 = vector.load %arg5[%c5, %c0_105] : memref<8x32xf32, #tpu.memory_space<vmem>>, vector<1x32xf32>
    %285 = arith.addf %233, %282 : vector<16x32xf32>
    %cst_106 = arith.constant dense<0.000000e+00> : vector<16xf32>
    %286 = vector.multi_reduction <add>, %285, %cst_106 [1] : vector<16x32xf32> to vector<16xf32>
    %287 = vector.shape_cast %286 : vector<16xf32> to vector<16x1xf32>
    %cst_107 = arith.constant 3.200000e+01 : f32
    %288 = vector.broadcast %cst_107 : f32 to vector<16x1xf32>
    %289 = arith.divf %287, %288 : vector<16x1xf32>
    %290 = vector.broadcast %289 : vector<16x1xf32> to vector<16x32xf32>
    %291 = arith.subf %285, %290 : vector<16x32xf32>
    %292 = arith.mulf %291, %291 : vector<16x32xf32>
    %cst_108 = arith.constant dense<0.000000e+00> : vector<16xf32>
    %293 = vector.multi_reduction <add>, %292, %cst_108 [1] : vector<16x32xf32> to vector<16xf32>
    %294 = vector.shape_cast %293 : vector<16xf32> to vector<16x1xf32>
    %cst_109 = arith.constant 3.200000e+01 : f32
    %295 = vector.broadcast %cst_109 : f32 to vector<16x1xf32>
    %296 = arith.divf %294, %295 : vector<16x1xf32>
    %cst_110 = arith.constant 9.99999974E-6 : f32
    %297 = vector.broadcast %cst_110 : f32 to vector<16x1xf32>
    %298 = arith.addf %296, %297 : vector<16x1xf32>
    %299 = math.rsqrt %298 : vector<16x1xf32>
    %300 = vector.broadcast %299 : vector<16x1xf32> to vector<16x32xf32>
    %301 = arith.mulf %291, %300 : vector<16x32xf32>
    %302 = vector.broadcast %283 : vector<1x32xf32> to vector<16x32xf32>
    %303 = arith.mulf %301, %302 : vector<16x32xf32>
    %304 = vector.broadcast %284 : vector<1x32xf32> to vector<16x32xf32>
    %305 = arith.addf %303, %304 : vector<16x32xf32>
    %c0_111 = arith.constant 0 : index
    %c256 = arith.constant 256 : index
    %306 = vector.load %arg2[%c0_111, %c256] : memref<32x320xf32, #tpu.memory_space<vmem>>, vector<32x64xf32>
    %cst_112 = arith.constant dense<0.000000e+00> : vector<16x64xf32>
    %307 = tpu.matmul %305, %306, %cst_112 {dimension_numbers = #tpu.dot_dimension_numbers<[1], [0], [0], [1], [0, 0, 1, 1], [], []>} : vector<16x32xf32>, vector<32x64xf32>, vector<16x64xf32> -> vector<16x64xf32>
    %c5_113 = arith.constant 5 : index
    %c0_114 = arith.constant 0 : index
    %308 = vector.load %arg4[%c5_113, %c0_114] : memref<8x64xf32, #tpu.memory_space<vmem>>, vector<1x64xf32>
    %309 = vector.broadcast %308 : vector<1x64xf32> to vector<16x64xf32>
    %310 = arith.addf %307, %309 : vector<16x64xf32>
    %cst_115 = arith.constant 0.000000e+00 : f32
    %311 = vector.broadcast %cst_115 : f32 to vector<16x64xf32>
    %312 = arith.maximumf %310, %311 : vector<16x64xf32>
    %c0_116 = arith.constant 0 : index
    %c320 = arith.constant 320 : index
    %313 = vector.load %arg3[%c0_116, %c320] : memref<64x352xf32, #tpu.memory_space<vmem>>, vector<64x32xf32>
    %cst_117 = arith.constant dense<0.000000e+00> : vector<16x32xf32>
    %314 = tpu.matmul %312, %313, %cst_117 {dimension_numbers = #tpu.dot_dimension_numbers<[1], [0], [0], [1], [0, 0, 1, 1], [], []>} : vector<16x64xf32>, vector<64x32xf32>, vector<16x32xf32> -> vector<16x32xf32>
    %c6 = arith.constant 6 : index
    %c0_118 = arith.constant 0 : index
    %315 = vector.load %arg4[%c6, %c0_118] : memref<8x64xf32, #tpu.memory_space<vmem>>, vector<1x32xf32>
    %316 = vector.broadcast %315 : vector<1x32xf32> to vector<16x32xf32>
    %317 = arith.addf %314, %316 : vector<16x32xf32>
    %c6_119 = arith.constant 6 : index
    %c0_120 = arith.constant 0 : index
    %318 = vector.load %arg5[%c6_119, %c0_120] : memref<8x32xf32, #tpu.memory_space<vmem>>, vector<1x32xf32>
    %c7 = arith.constant 7 : index
    %c0_121 = arith.constant 0 : index
    %319 = vector.load %arg5[%c7, %c0_121] : memref<8x32xf32, #tpu.memory_space<vmem>>, vector<1x32xf32>
    %320 = arith.addf %305, %317 : vector<16x32xf32>
    %cst_122 = arith.constant dense<0.000000e+00> : vector<16xf32>
    %321 = vector.multi_reduction <add>, %320, %cst_122 [1] : vector<16x32xf32> to vector<16xf32>
    %322 = vector.shape_cast %321 : vector<16xf32> to vector<16x1xf32>
    %cst_123 = arith.constant 3.200000e+01 : f32
    %323 = vector.broadcast %cst_123 : f32 to vector<16x1xf32>
    %324 = arith.divf %322, %323 : vector<16x1xf32>
    %325 = vector.broadcast %324 : vector<16x1xf32> to vector<16x32xf32>
    %326 = arith.subf %320, %325 : vector<16x32xf32>
    %327 = arith.mulf %326, %326 : vector<16x32xf32>
    %cst_124 = arith.constant dense<0.000000e+00> : vector<16xf32>
    %328 = vector.multi_reduction <add>, %327, %cst_124 [1] : vector<16x32xf32> to vector<16xf32>
    %329 = vector.shape_cast %328 : vector<16xf32> to vector<16x1xf32>
    %cst_125 = arith.constant 3.200000e+01 : f32
    %330 = vector.broadcast %cst_125 : f32 to vector<16x1xf32>
    %331 = arith.divf %329, %330 : vector<16x1xf32>
    %cst_126 = arith.constant 9.99999974E-6 : f32
    %332 = vector.broadcast %cst_126 : f32 to vector<16x1xf32>
    %333 = arith.addf %331, %332 : vector<16x1xf32>
    %334 = math.rsqrt %333 : vector<16x1xf32>
    %335 = vector.broadcast %334 : vector<16x1xf32> to vector<16x32xf32>
    %336 = arith.mulf %326, %335 : vector<16x32xf32>
    %337 = vector.broadcast %318 : vector<1x32xf32> to vector<16x32xf32>
    %338 = arith.mulf %336, %337 : vector<16x32xf32>
    %339 = vector.broadcast %319 : vector<1x32xf32> to vector<16x32xf32>
    %340 = arith.addf %338, %339 : vector<16x32xf32>
    %c0_127 = arith.constant 0 : index
    %c0_128 = arith.constant 0 : index
    %341 = vector.load %arg6[%c0_127, %c0_128] : memref<16x32xf32, #tpu.memory_space<vmem>>, vector<16x32xf32>
    tpu.vector_store %arg6[%c0_127, %c0_128], %340 {strides = array<i32>} : memref<16x32xf32, #tpu.memory_space<vmem>>, vector<16x32xf32>,
    return
  }
}

</mosaic_0001>

<llo_original>
// kernel: attn_layer_forward.1
$region0: #{attn_layer_forward.1}
  #allocation0 [shape = 'u32[]', space=smem, size = 0x4, offset = 0x4, fixed_abs, tag = 'smem constant byte address 0x4 - core index']
  #allocation1 [shape = 'u32[144,128]{1,0:T(1,128)}', space=vmem, size = 0x12000, scoped, tag = 'internal scratch']
  %s0 = inlined_call_operand.vmem [shape: f32[16,64], index: 0, kind: input, shape index: {}]
  %s1 = inlined_call_operand.vmem [shape: f32[24,128], index: 1, kind: input, shape index: {}]
  %s2 = inlined_call_operand.vmem [shape: f32[32,320], index: 2, kind: input, shape index: {}]
  %s3 = inlined_call_operand.hbm [shape: f32[64,352], index: 3, kind: input, shape index: {}]
  %s4 = inlined_call_operand.vmem [shape: f32[8,64], index: 4, kind: input, shape index: {}]
  %s5 = inlined_call_operand.vmem [shape: f32[8,32], index: 5, kind: input, shape index: {}]
  %s6 = inlined_call_operand.hbm [shape: f32[16,32], index: 6, kind: output, shape index: {}]
  %s7 = sld [smem:[#allocation0]]
  $region38: #{attn_layer_forward.1} parent=0
    _
  %s9 = ssub.s32 1, %s7
  %s10 = scalar_select 0, %s9, %s7
  $region1: #{attn_layer_forward.1} parent=0
    #allocation2 [shape = 'u8[98304]{0}', space=vmem, size = 0x18000, scoped, tag = 'input window, operand 3, single buffered']
    #allocation3 [shape = 's32[1]{0}', space=sflag, size = 0x4, scoped, tag = 'scoped memory for attn_layer_forward.1']
    #allocation4 [shape = 's32[1]{0}', space=sflag, size = 0x4, scoped, tag = 'scoped memory for attn_layer_forward.1']
    #allocation5 [shape = 'u8[8192]{0}', space=vmem, size = 0x2000, scoped, tag = 'output window, operand 0, single buffered']
    %11 = vsyncpa [#allocation3], 0
    %12 = vsyncpa [#allocation4], 0
    // Predicated region
    $region2: #{attn_layer_forward.1} parent=1 // pred_check
      _
    $region3: #{attn_layer_forward.1} parent=1 // pred_check_branch
      %14 = sbr.rel (0) target = $region5
    $region4: #{attn_layer_forward.1} parent=1 // pred_region
      _
    $region5: #{attn_layer_forward.1} parent=1 // pred_fallthru
      _
    // Predicated region
    $region6: #{attn_layer_forward.1} parent=1 // pred_check
      _
    $region7: #{attn_layer_forward.1} parent=1 // pred_check_branch
      %16 = sbr.rel (0) target = $region9
    $region8: #{attn_layer_forward.1} parent=1 // pred_region
      _
    $region9: #{attn_layer_forward.1} parent=1 // pred_fallthru
      _
    // Predicated region
    $region10: #{attn_layer_forward.1} parent=1 // pred_check
      _
    $region11: #{attn_layer_forward.1} parent=1 // pred_check_branch
      %18 = sbr.rel (0) target = $region13
    $region12: #{attn_layer_forward.1} parent=1 // pred_region
      _
    $region13: #{attn_layer_forward.1} parent=1 // pred_fallthru
      _
    // Predicated region
    $region14: #{attn_layer_forward.1} parent=1 // pred_check
      _
    $region15: #{attn_layer_forward.1} parent=1 // pred_check_branch
      %20 = sbr.rel (0) target = $region17
    $region16: #{attn_layer_forward.1} parent=1 // pred_region
      %s22 = ssub.s32 3072, 3072
      %23 = vsyncadd [#allocation3], %s22
      %s24 = sshll.u32 [#allocation2], 4
      %s25 = int_to_ptr.vmem [resolvable:$true] %s24
      %30 = dma.hbm_to_vmem [thread:$0]  %s3, 3072, %s25, [#allocation3], 384, 384, 24
    $region17: #{attn_layer_forward.1} parent=1 // pred_fallthru
      _
    // Predicated region
    $region18: #{attn_layer_forward.1} parent=1 // pred_check
      _
    $region19: #{attn_layer_forward.1} parent=1 // pred_check_branch
      %32 = sbr.rel (0) target = $region21
    $region20: #{attn_layer_forward.1} parent=1 // pred_region
      _
    $region21: #{attn_layer_forward.1} parent=1 // pred_fallthru
      _
    // Predicated region
    $region22: #{attn_layer_forward.1} parent=1 // pred_check
      _
    $region23: #{attn_layer_forward.1} parent=1 // pred_check_branch
      %34 = sbr.rel (0) target = $region25
    $region24: #{attn_layer_forward.1} parent=1 // pred_region
      _
    $region25: #{attn_layer_forward.1} parent=1 // pred_fallthru
      _
    // Predicated region
    $region26: #{attn_layer_forward.1} parent=1 // pred_check
      _
    $region27: #{attn_layer_forward.1} parent=1 // pred_check_branch
      %36 = sbr.rel (0) target = $region29
    $region28: #{attn_layer_forward.1} parent=1 // pred_region
      %37 = dma.done [#allocation3], 3072
    $region29: #{attn_layer_forward.1} parent=1 // pred_fallthru
      _
    %v38 = vlaneseq
    %v39 = vshrl.u32 %v38, 7
    %v40 = vadd.s32 %v39, 8
    %v41 = vadd.s32 %v39, 16
    %v42 = vadd.s32 %v39, 24
    %v43 = vadd.s32 %v39, 32
    %v44 = vadd.s32 %v39, 40
    %v45 = vadd.s32 %v39, 48
    %v46 = vadd.s32 %v39, 56
    %vm47 = vcmp.lt.s32.totalorder %v39, 0
    %v48 = vsub.s32 0, %v39
    %v49 = vsel %vm47, %v48, %v39
    %v50 = vshrl.u32 %v49, 1
    %v51 = vand.u32 %v49, 1
    %v52 = vsub.s32 0, %v51
    %v53 = vsel %vm47, %v52, %v51
    %vm54 = vcmp.lt.s32.totalorder %v40, 0
    %v55 = vsub.s32 0, %v40
    %v56 = vsel %vm54, %v55, %v40
    %v57 = vshrl.u32 %v56, 1
    %v58 = vand.u32 %v56, 1
    %v59 = vsub.s32 0, %v58
    %v60 = vsel %vm54, %v59, %v58
    %vm61 = vcmp.lt.s32.totalorder %v41, 0
    %v62 = vsub.s32 0, %v41
    %v63 = vsel %vm61, %v62, %v41
    %v64 = vshrl.u32 %v63, 1
    %v65 = vand.u32 %v63, 1
    %v66 = vsub.s32 0, %v65
    %v67 = vsel %vm61, %v66, %v65
    %vm68 = vcmp.lt.s32.totalorder %v42, 0
    %v69 = vsub.s32 0, %v42
    %v70 = vsel %vm68, %v69, %v42
    %v71 = vshrl.u32 %v70, 1
    %v72 = vand.u32 %v70, 1
    %v73 = vsub.s32 0, %v72
    %v74 = vsel %vm68, %v73, %v72
    %vm75 = vcmp.lt.s32.totalorder %v43, 0
    %v76 = vsub.s32 0, %v43
    %v77 = vsel %vm75, %v76, %v43
    %v78 = vshrl.u32 %v77, 1
    %v79 = vand.u32 %v77, 1
    %v80 = vsub.s32 0, %v79
    %v81 = vsel %vm75, %v80, %v79
    %vm82 = vcmp.lt.s32.totalorder %v44, 0
    %v83 = vsub.s32 0, %v44
    %v84 = vsel %vm82, %v83, %v44
    %v85 = vshrl.u32 %v84, 1
    %v86 = vand.u32 %v84, 1
    %v87 = vsub.s32 0, %v86
    %v88 = vsel %vm82, %v87, %v86
    %vm89 = vcmp.lt.s32.totalorder %v45, 0
    %v90 = vsub.s32 0, %v45
    %v91 = vsel %vm89, %v90, %v45
    %v92 = vshrl.u32 %v91, 1
    %v93 = vand.u32 %v91, 1
    %v94 = vsub.s32 0, %v93
    %v95 = vsel %vm89, %v94, %v93
    %vm96 = vcmp.lt.s32.totalorder %v46, 0
    %v97 = vsub.s32 0, %v46
    %v98 = vsel %vm96, %v97, %v46
    %v99 = vshrl.u32 %v98, 1
    %v100 = vand.u32 %v98, 1
    %v101 = vsub.s32 0, %v100
    %v102 = vsel %vm96, %v101, %v100
    %vm103 = vcmp.ne.s32.totalorder %v53, 0
    %vm104 = vcmp.ne.s32.totalorder %v60, 0
    %vm105 = vcmp.ne.s32.totalorder %v67, 0
    %vm106 = vcmp.ne.s32.totalorder %v74, 0
    %vm107 = vcmp.ne.s32.totalorder %v81, 0
    %vm108 = vcmp.ne.s32.totalorder %v88, 0
    %vm109 = vcmp.ne.s32.totalorder %v95, 0
    %vm110 = vcmp.ne.s32.totalorder %v102, 0
    %vm111 = vcmp.lt.s32.totalorder %v53, 0
    %vm112 = vcmp.lt.s32.totalorder %v60, 0
    %vm113 = vcmp.lt.s32.totalorder %v67, 0
    %vm114 = vcmp.lt.s32.totalorder %v74, 0
    %vm115 = vcmp.lt.s32.totalorder %v81, 0
    %vm116 = vcmp.lt.s32.totalorder %v88, 0
    %vm117 = vcmp.lt.s32.totalorder %v95, 0
    %vm118 = vcmp.lt.s32.totalorder %v102, 0
    %vm119 = vmand %vm111, %vm103
    %vm120 = vmand %vm112, %vm104
    %vm121 = vmand %vm113, %vm105
    %vm122 = vmand %vm114, %vm106
    %vm123 = vmand %vm115, %vm107
    %vm124 = vmand %vm116, %vm108
    %vm125 = vmand %vm117, %vm109
    %vm126 = vmand %vm118, %vm110
    %v127 = vadd.s32 %v53, 2
    %v128 = vadd.s32 %v60, 2
    %v129 = vadd.s32 %v67, 2
    %v130 = vadd.s32 %v74, 2
    %v131 = vadd.s32 %v81, 2
    %v132 = vadd.s32 %v88, 2
    %v133 = vadd.s32 %v95, 2
    %v134 = vadd.s32 %v102, 2
    %v135 = vsel %vm119, %v127, %v53
    %v136 = vsel %vm120, %v128, %v60
    %v137 = vsel %vm121, %v129, %v67
    %v138 = vsel %vm122, %v130, %v74
    %v139 = vsel %vm123, %v131, %v81
    %v140 = vsel %vm124, %v132, %v88
    %v141 = vsel %vm125, %v133, %v95
    %v142 = vsel %vm126, %v134, %v102
    %v143 = vlaneseq
    %v144 = vand.u32 %v143, 127
    %vm145 = vcmp.lt.s32.totalorder %v144, 0
    %v146 = vsub.s32 0, %v144
    %v147 = vsel %vm145, %v146, %v144
    %v148 = vshrl.u32 %v147, 1
    %v149 = vand.u32 %v147, 1
    %v150 = vsub.s32 0, %v149
    %v151 = vsel %vm145, %v150, %v149
    %vm152 = vcmp.ne.s32.totalorder %v151, 0
    %vm153 = vcmp.lt.s32.totalorder %v151, 0
    %vm154 = vmand %vm153, %vm152
    %v155 = vadd.s32 %v151, 2
    %v156 = vsel %vm154, %v155, %v151
    %vm157 = vcmp.eq.s32.totalorder %v135, %v156
    %vm158 = vcmp.eq.s32.totalorder %v136, %v156
    %vm159 = vcmp.eq.s32.totalorder %v137, %v156
    %vm160 = vcmp.eq.s32.totalorder %v138, %v156
    %vm161 = vcmp.eq.s32.totalorder %v139, %v156
    %vm162 = vcmp.eq.s32.totalorder %v140, %v156
    %vm163 = vcmp.eq.s32.totalorder %v141, %v156
    %vm164 = vcmp.eq.s32.totalorder %v142, %v156
    %v165 = vsel %vm157, 0.0, -1e+30
    %v166 = vsel %vm158, 0.0, -1e+30
    %v167 = vsel %vm159, 0.0, -1e+30
    %v168 = vsel %vm160, 0.0, -1e+30
    %v169 = vsel %vm161, 0.0, -1e+30
    %v170 = vsel %vm162, 0.0, -1e+30
    %v171 = vsel %vm163, 0.0, -1e+30
    %v172 = vsel %vm164, 0.0, -1e+30
    %v173 = vld [vmem:[%s0] sm:$0xff]
    %v174 = vld [vmem:[%s0 + $0x8] sm:$0xff]
    %177 = vrot.lane.b32.xlu0 %v173, 96
    %v178 = vpop.permute.xlu0 %177
    %179 = vrot.lane.b32.xlu0 %v174, 96
    %v180 = vpop.permute.xlu0 %179
    %v183 = vadd.f32 %v173, %v178
    %v184 = vadd.f32 %v174, %v180
    %v185 = vld [vmem:[%s2] sm:$0xff]
    %v186 = vld [vmem:[%s2 + $0x18] sm:$0xff]
    %v187 = vld [vmem:[%s2 + $0x30] sm:$0xff]
    %v188 = vld [vmem:[%s2 + $0x48] sm:$0xff]
    %v189 = vld [vmem:[%s4] sm:$0x1]
    %v190 = vlaneseq
    %v191 = vshrl.u32 %v190, 7
    %v192 = vsub.s32 0, %v191
    %v193 = vrot.slane %v189, %v192
    %vm194 = vcmask 261120
    %v196 = vsel %vm194, %v183, 0
    %v199 = vsel %vm194, %v184, 0
    %201 = vmatprep.subr.mxu0 0.0
    %202 = vmatpush1.msra.mxu0 0.0
    %203 = vmatprep.subr.mxu0 0.0
    %204 = vmatpush1.msra.mxu0 0.0
    %205 = vmatprep.subr.mxu0 0.0
    %206 = vmatpush1.msra.mxu0 0.0
    %207 = vmatprep.subr.mxu0 0.0
    %208 = vmatpush1.msra.mxu0 0.0
    %209 = vmatprep.subr.mxu0 0.0
    %210 = vmatpush1.msra.mxu0 0.0
    %211 = vmatprep.subr.mxu0 0.0
    %212 = vmatpush1.msra.mxu0 0.0
    %213 = vmatprep.subr.mxu0 0.0
    %214 = vmatpush1.msra.mxu0 0.0
    %215 = vmatprep.subr.mxu0 0.0
    %216 = vmatpush1.msra.mxu0 0.0
    %217 = vmatprep.subr.mxu0 0.0
    %218 = vmatpush1.msra.mxu0 0.0
    %219 = vmatprep.subr.mxu0 0.0
    %220 = vmatpush1.msra.mxu0 0.0
    %221 = vmatprep.subr.mxu0 0.0
    %222 = vmatpush1.msra.mxu0 0.0
    %223 = vmatprep.subr.mxu0 0.0
    %224 = vmatpush1.msra.mxu0 0.0
    %225 = vmatprep.subr.mxu0 0.0
    %226 = vmatpush1.msra.mxu0 %v188
    %227 = vmatprep.subr.mxu0 0.0
    %228 = vmatpush1.msra.mxu0 %v187
    %229 = vmatprep.subr.mxu0 0.0
    %230 = vmatpush1.msra.mxu0 %v186
    %231 = vmatprep.subr.mxu0 0.0
    %232 = vmatpush1.msra.mxu0 %v185
    %233 = vmatprep.subr.mxu0 0.0
    %234 = vmatpush2.msra.mxu0 0.0
    %235 = vmatprep.subr.mxu0 0.0
    %236 = vmatpush2.msra.mxu0 0.0
    %237 = vmatprep.subr.mxu0 0.0
    %238 = vmatpush2.msra.mxu0 0.0
    %239 = vmatprep.subr.mxu0 0.0
    %240 = vmatpush2.msra.mxu0 0.0
    %241 = vmatprep.subr.mxu0 0.0
    %242 = vmatpush2.msra.mxu0 0.0
    %243 = vmatprep.subr.mxu0 0.0
    %244 = vmatpush2.msra.mxu0 0.0
    %245 = vmatprep.subr.mxu0 0.0
    %246 = vmatpush2.msra.mxu0 0.0
    %247 = vmatprep.subr.mxu0 0.0
    %248 = vmatpush2.msra.mxu0 0.0
    %249 = vmatprep.subr.mxu0 0.0
    %250 = vmatpush2.msra.mxu0 0.0
    %251 = vmatprep.subr.mxu0 0.0
    %252 = vmatpush2.msra.mxu0 0.0
    %253 = vmatprep.subr.mxu0 0.0
    %254 = vmatpush2.msra.mxu0 0.0
    %255 = vmatprep.subr.mxu0 0.0
    %256 = vmatpush2.msra.mxu0 0.0
    %257 = vmatprep.subr.mxu0 0.0
    %258 = vmatpush2.msra.mxu0 0.0
    %259 = vmatprep.subr.mxu0 0.0
    %260 = vmatpush2.msra.mxu0 0.0
    %261 = vmatprep.subr.mxu0 0.0
    %262 = vmatpush2.msra.mxu0 0.0
    %263 = vmatprep.subr.mxu0 0.0
    %264 = vmatpush2.msra.mxu0 0.0
    %265 = vmatprep.mubr.f32.mxu0 0.0
    %266 = vmatmul.mubr.f32.gmra.mxu0 %v196
    %v267 = vpop.f32.mrf.mxu0
    %v268 = vadd.f32 %v193, %v267
    %v269 = vpop.f32.mrf.mxu0
    %270 = vmatprep.mubr.f32.mxu0 0.0
    %271 = vmatmul.mubr.f32.gmra.mxu0 %v199
    %v272 = vpop.f32.mrf.mxu0
    %v273 = vadd.f32 %v193, %v272
    %v274 = vpop.f32.mrf.mxu0
    %275 = vdwg.mxu0
    %v276 = vld [vmem:[%s2 + $0x8] sm:$0xff]
    %v277 = vld [vmem:[%s2 + $0x20] sm:$0xff]
    %v278 = vld [vmem:[%s2 + $0x38] sm:$0xff]
    %v279 = vld [vmem:[%s2 + $0x50] sm:$0xff]
    %v280 = vsel %vm194, %v173, 0
    %v282 = vsel %vm194, %v174, 0
    %284 = vmatprep.subr.mxu0 0.0
    %285 = vmatpush1.msra.mxu0 0.0
    %286 = vmatprep.subr.mxu0 0.0
    %287 = vmatpush1.msra.mxu0 0.0
    %288 = vmatprep.subr.mxu0 0.0
    %289 = vmatpush1.msra.mxu0 0.0
    %290 = vmatprep.subr.mxu0 0.0
    %291 = vmatpush1.msra.mxu0 0.0
    %292 = vmatprep.subr.mxu0 0.0
    %293 = vmatpush1.msra.mxu0 0.0
    %294 = vmatprep.subr.mxu0 0.0
    %295 = vmatpush1.msra.mxu0 0.0
    %296 = vmatprep.subr.mxu0 0.0
    %297 = vmatpush1.msra.mxu0 0.0
    %298 = vmatprep.subr.mxu0 0.0
    %299 = vmatpush1.msra.mxu0 0.0
    %300 = vmatprep.subr.mxu0 0.0
    %301 = vmatpush1.msra.mxu0 0.0
    %302 = vmatprep.subr.mxu0 0.0
    %303 = vmatpush1.msra.mxu0 0.0
    %304 = vmatprep.subr.mxu0 0.0
    %305 = vmatpush1.msra.mxu0 0.0
    %306 = vmatprep.subr.mxu0 0.0
    %307 = vmatpush1.msra.mxu0 0.0
    %308 = vmatprep.subr.mxu0 0.0
    %309 = vmatpush1.msra.mxu0 %v279
    %310 = vmatprep.subr.mxu0 0.0
    %311 = vmatpush1.msra.mxu0 %v278
    %312 = vmatprep.subr.mxu0 0.0
    %313 = vmatpush1.msra.mxu0 %v277
    %314 = vmatprep.subr.mxu0 0.0
    %315 = vmatpush1.msra.mxu0 %v276
    %316 = vmatprep.subr.mxu0 0.0
    %317 = vmatpush2.msra.mxu0 0.0
    %318 = vmatprep.subr.mxu0 0.0
    %319 = vmatpush2.msra.mxu0 0.0
    %320 = vmatprep.subr.mxu0 0.0
    %321 = vmatpush2.msra.mxu0 0.0
    %322 = vmatprep.subr.mxu0 0.0
    %323 = vmatpush2.msra.mxu0 0.0
    %324 = vmatprep.subr.mxu0 0.0
    %325 = vmatpush2.msra.mxu0 0.0
    %326 = vmatprep.subr.mxu0 0.0
    %327 = vmatpush2.msra.mxu0 0.0
    %328 = vmatprep.subr.mxu0 0.0
    %329 = vmatpush2.msra.mxu0 0.0
    %330 = vmatprep.subr.mxu0 0.0
    %331 = vmatpush2.msra.mxu0 0.0
    %332 = vmatprep.subr.mxu0 0.0
    %333 = vmatpush2.msra.mxu0 0.0
    %334 = vmatprep.subr.mxu0 0.0
    %335 = vmatpush2.msra.mxu0 0.0
    %336 = vmatprep.subr.mxu0 0.0
    %337 = vmatpush2.msra.mxu0 0.0
    %338 = vmatprep.subr.mxu0 0.0
    %339 = vmatpush2.msra.mxu0 0.0
    %340 = vmatprep.subr.mxu0 0.0
    %341 = vmatpush2.msra.mxu0 0.0
    %342 = vmatprep.subr.mxu0 0.0
    %343 = vmatpush2.msra.mxu0 0.0
    %344 = vmatprep.subr.mxu0 0.0
    %345 = vmatpush2.msra.mxu0 0.0
    %346 = vmatprep.subr.mxu0 0.0
    %347 = vmatpush2.msra.mxu0 0.0
    %348 = vmatprep.mubr.f32.mxu0 0.0
    %349 = vmatmul.mubr.f32.gmra.mxu0 %v280
    %v350 = vpop.f32.mrf.mxu0
    %v351 = vadd.f32 0.0, %v350
    %v352 = vpop.f32.mrf.mxu0
    %353 = vmatprep.mubr.f32.mxu0 0.0
    %354 = vmatmul.mubr.f32.gmra.mxu0 %v282
    %v355 = vpop.f32.mrf.mxu0
    %v356 = vadd.f32 0.0, %v355
    %v357 = vpop.f32.mrf.mxu0
    %358 = vdwg.mxu0
    %361 = vrot.lane.b32.xlu0 %v268, 96
    %v362 = vpop.permute.xlu0 %361
    %363 = vrot.lane.b32.xlu0 %v273, 96
    %v364 = vpop.permute.xlu0 %363
    %vm365 = vcmask 64512
    %v366 = vsel %vm365, %v268, 0
    %v368 = vsel %vm365, %v273, 0
    %v370 = vsel %vm365, %v362, 0
    %v372 = vsel %vm365, %v364, 0
    %374 = vmatprep.subr.mxu0 0.0
    %375 = vmatpush1.xpose.msra.mxu0 0.0
    %376 = vmatprep.subr.mxu0 0.0
    %377 = vmatpush1.xpose.msra.mxu0 0.0
    %378 = vmatprep.subr.mxu0 0.0
    %379 = vmatpush1.xpose.msra.mxu0 0.0
    %380 = vmatprep.subr.mxu0 0.0
    %381 = vmatpush1.xpose.msra.mxu0 0.0
    %382 = vmatprep.subr.mxu0 0.0
    %383 = vmatpush1.xpose.msra.mxu0 0.0
    %384 = vmatprep.subr.mxu0 0.0
    %385 = vmatpush1.xpose.msra.mxu0 0.0
    %386 = vmatprep.subr.mxu0 0.0
    %387 = vmatpush1.xpose.msra.mxu0 0.0
    %388 = vmatprep.subr.mxu0 0.0
    %389 = vmatpush1.xpose.msra.mxu0 0.0
    %390 = vmatprep.subr.mxu0 0.0
    %391 = vmatpush1.xpose.msra.mxu0 0.0
    %392 = vmatprep.subr.mxu0 0.0
    %393 = vmatpush1.xpose.msra.mxu0 0.0
    %394 = vmatprep.subr.mxu0 0.0
    %395 = vmatpush1.xpose.msra.mxu0 0.0
    %396 = vmatprep.subr.mxu0 0.0
    %397 = vmatpush1.xpose.msra.mxu0 0.0
    %398 = vmatprep.subr.mxu0 0.0
    %399 = vmatpush1.xpose.msra.mxu0 0.0
    %400 = vmatprep.subr.mxu0 0.0
    %401 = vmatpush1.xpose.msra.mxu0 0.0
    %402 = vmatprep.subr.mxu0 0.0
    %403 = vmatpush1.xpose.msra.mxu0 %v372
    %404 = vmatprep.subr.mxu0 0.0
    %405 = vmatpush1.xpose.msra.mxu0 %v370
    %406 = vmatprep.subr.mxu0 0.0
    %407 = vmatpush2.xpose.msra.mxu0 0.0
    %408 = vmatprep.subr.mxu0 0.0
    %409 = vmatpush2.xpose.msra.mxu0 0.0
    %410 = vmatprep.subr.mxu0 0.0
    %411 = vmatpush2.xpose.msra.mxu0 0.0
    %412 = vmatprep.subr.mxu0 0.0
    %413 = vmatpush2.xpose.msra.mxu0 0.0
    %414 = vmatprep.subr.mxu0 0.0
    %415 = vmatpush2.xpose.msra.mxu0 0.0
    %416 = vmatprep.subr.mxu0 0.0
    %417 = vmatpush2.xpose.msra.mxu0 0.0
    %418 = vmatprep.subr.mxu0 0.0
    %419 = vmatpush2.xpose.msra.mxu0 0.0
    %420 = vmatprep.subr.mxu0 0.0
    %421 = vmatpush2.xpose.msra.mxu0 0.0
    %422 = vmatprep.subr.mxu0 0.0
    %423 = vmatpush2.xpose.msra.mxu0 0.0
    %424 = vmatprep.subr.mxu0 0.0
    %425 = vmatpush2.xpose.msra.mxu0 0.0
    %426 = vmatprep.subr.mxu0 0.0
    %427 = vmatpush2.xpose.msra.mxu0 0.0
    %428 = vmatprep.subr.mxu0 0.0
    %429 = vmatpush2.xpose.msra.mxu0 0.0
    %430 = vmatprep.subr.mxu0 0.0
    %431 = vmatpush2.xpose.msra.mxu0 0.0
    %432 = vmatprep.subr.mxu0 0.0
    %433 = vmatpush2.xpose.msra.mxu0 0.0
    %434 = vmatprep.subr.mxu0 0.0
    %435 = vmatpush2.xpose.msra.mxu0 0.0
    %436 = vmatprep.subr.mxu0 0.0
    %437 = vmatpush2.xpose.msra.mxu0 0.0
    %438 = vmatprep.mubr.f32.mxu0 0.0
    %439 = vmatmul.mubr.f32.gmra.mxu0 %v366
    %v440 = vpop.f32.mrf.mxu0
    %v441 = vadd.f32 0.0, %v440
    %v442 = vpop.f32.mrf.mxu0
    %443 = vmatprep.mubr.f32.mxu0 0.0
    %444 = vmatmul.mubr.f32.gmra.mxu0 %v368
    %v445 = vpop.f32.mrf.mxu0
    %v446 = vadd.f32 0.0, %v445
    %v447 = vpop.f32.mrf.mxu0
    %448 = vdwg.mxu0
    %449 = vrot.lane.b32.xlu0 %v268, 120
    %v450 = vpop.permute.xlu0 %449
    %451 = vrot.lane.b32.xlu0 %v273, 120
    %v452 = vpop.permute.xlu0 %451
    %453 = vrot.lane.b32.xlu0 %v268, 88
    %v454 = vpop.permute.xlu0 %453
    %455 = vrot.lane.b32.xlu0 %v273, 88
    %v456 = vpop.permute.xlu0 %455
    %v457 = vsel %vm365, %v450, 0
    %v459 = vsel %vm365, %v452, 0
    %v461 = vsel %vm365, %v454, 0
    %v463 = vsel %vm365, %v456, 0
    %465 = vmatprep.subr.mxu0 0.0
    %466 = vmatpush1.xpose.msra.mxu0 0.0
    %467 = vmatprep.subr.mxu0 0.0
    %468 = vmatpush1.xpose.msra.mxu0 0.0
    %469 = vmatprep.subr.mxu0 0.0
    %470 = vmatpush1.xpose.msra.mxu0 0.0
    %471 = vmatprep.subr.mxu0 0.0
    %472 = vmatpush1.xpose.msra.mxu0 0.0
    %473 = vmatprep.subr.mxu0 0.0
    %474 = vmatpush1.xpose.msra.mxu0 0.0
    %475 = vmatprep.subr.mxu0 0.0
    %476 = vmatpush1.xpose.msra.mxu0 0.0
    %477 = vmatprep.subr.mxu0 0.0
    %478 = vmatpush1.xpose.msra.mxu0 0.0
    %479 = vmatprep.subr.mxu0 0.0
    %480 = vmatpush1.xpose.msra.mxu0 0.0
    %481 = vmatprep.subr.mxu0 0.0
    %482 = vmatpush1.xpose.msra.mxu0 0.0
    %483 = vmatprep.subr.mxu0 0.0
    %484 = vmatpush1.xpose.msra.mxu0 0.0
    %485 = vmatprep.subr.mxu0 0.0
    %486 = vmatpush1.xpose.msra.mxu0 0.0
    %487 = vmatprep.subr.mxu0 0.0
    %488 = vmatpush1.xpose.msra.mxu0 0.0
    %489 = vmatprep.subr.mxu0 0.0
    %490 = vmatpush1.xpose.msra.mxu0 0.0
    %491 = vmatprep.subr.mxu0 0.0
    %492 = vmatpush1.xpose.msra.mxu0 0.0
    %493 = vmatprep.subr.mxu0 0.0
    %494 = vmatpush1.xpose.msra.mxu0 %v463
    %495 = vmatprep.subr.mxu0 0.0
    %496 = vmatpush1.xpose.msra.mxu0 %v461
    %497 = vmatprep.subr.mxu0 0.0
    %498 = vmatpush2.xpose.msra.mxu0 0.0
    %499 = vmatprep.subr.mxu0 0.0
    %500 = vmatpush2.xpose.msra.mxu0 0.0
    %501 = vmatprep.subr.mxu0 0.0
    %502 = vmatpush2.xpose.msra.mxu0 0.0
    %503 = vmatprep.subr.mxu0 0.0
    %504 = vmatpush2.xpose.msra.mxu0 0.0
    %505 = vmatprep.subr.mxu0 0.0
    %506 = vmatpush2.xpose.msra.mxu0 0.0
    %507 = vmatprep.subr.mxu0 0.0
    %508 = vmatpush2.xpose.msra.mxu0 0.0
    %509 = vmatprep.subr.mxu0 0.0
    %510 = vmatpush2.xpose.msra.mxu0 0.0
    %511 = vmatprep.subr.mxu0 0.0
    %512 = vmatpush2.xpose.msra.mxu0 0.0
    %513 = vmatprep.subr.mxu0 0.0
    %514 = vmatpush2.xpose.msra.mxu0 0.0
    %515 = vmatprep.subr.mxu0 0.0
    %516 = vmatpush2.xpose.msra.mxu0 0.0
    %517 = vmatprep.subr.mxu0 0.0
    %518 = vmatpush2.xpose.msra.mxu0 0.0
    %519 = vmatprep.subr.mxu0 0.0
    %520 = vmatpush2.xpose.msra.mxu0 0.0
    %521 = vmatprep.subr.mxu0 0.0
    %522 = vmatpush2.xpose.msra.mxu0 0.0
    %523 = vmatprep.subr.mxu0 0.0
    %524 = vmatpush2.xpose.msra.mxu0 0.0
    %525 = vmatprep.subr.mxu0 0.0
    %526 = vmatpush2.xpose.msra.mxu0 0.0
    %527 = vmatprep.subr.mxu0 0.0
    %528 = vmatpush2.xpose.msra.mxu0 0.0
    %529 = vmatprep.mubr.f32.mxu0 0.0
    %530 = vmatmul.mubr.f32.gmra.mxu0 %v457
    %v531 = vpop.f32.mrf.mxu0
    %v532 = vadd.f32 0.0, %v531
    %v533 = vpop.f32.mrf.mxu0
    %534 = vmatprep.mubr.f32.mxu0 0.0
    %535 = vmatmul.mubr.f32.gmra.mxu0 %v459
    %v536 = vpop.f32.mrf.mxu0
    %v537 = vadd.f32 0.0, %v536
    %v538 = vpop.f32.mrf.mxu0
    %539 = vdwg.mxu0
    %540 = vrot.lane.b32.xlu0 %v268, 112
    %v541 = vpop.permute.xlu0 %540
    %542 = vrot.lane.b32.xlu0 %v273, 112
    %v543 = vpop.permute.xlu0 %542
    %544 = vrot.lane.b32.xlu0 %v268, 80
    %v545 = vpop.permute.xlu0 %544
    %546 = vrot.lane.b32.xlu0 %v273, 80
    %v547 = vpop.permute.xlu0 %546
    %v548 = vsel %vm365, %v541, 0
    %v550 = vsel %vm365, %v543, 0
    %v552 = vsel %vm365, %v545, 0
    %v554 = vsel %vm365, %v547, 0
    %556 = vmatprep.subr.mxu0 0.0
    %557 = vmatpush1.xpose.msra.mxu0 0.0
    %558 = vmatprep.subr.mxu0 0.0
    %559 = vmatpush1.xpose.msra.mxu0 0.0
    %560 = vmatprep.subr.mxu0 0.0
    %561 = vmatpush1.xpose.msra.mxu0 0.0
    %562 = vmatprep.subr.mxu0 0.0
    %563 = vmatpush1.xpose.msra.mxu0 0.0
    %564 = vmatprep.subr.mxu0 0.0
    %565 = vmatpush1.xpose.msra.mxu0 0.0
    %566 = vmatprep.subr.mxu0 0.0
    %567 = vmatpush1.xpose.msra.mxu0 0.0
    %568 = vmatprep.subr.mxu0 0.0
    %569 = vmatpush1.xpose.msra.mxu0 0.0
    %570 = vmatprep.subr.mxu0 0.0
    %571 = vmatpush1.xpose.msra.mxu0 0.0
    %572 = vmatprep.subr.mxu0 0.0
    %573 = vmatpush1.xpose.msra.mxu0 0.0
    %574 = vmatprep.subr.mxu0 0.0
    %575 = vmatpush1.xpose.msra.mxu0 0.0
    %576 = vmatprep.subr.mxu0 0.0
    %577 = vmatpush1.xpose.msra.mxu0 0.0
    %578 = vmatprep.subr.mxu0 0.0
    %579 = vmatpush1.xpose.msra.mxu0 0.0
    %580 = vmatprep.subr.mxu0 0.0
    %581 = vmatpush1.xpose.msra.mxu0 0.0
    %582 = vmatprep.subr.mxu0 0.0
    %583 = vmatpush1.xpose.msra.mxu0 0.0
    %584 = vmatprep.subr.mxu0 0.0
    %585 = vmatpush1.xpose.msra.mxu0 %v554
    %586 = vmatprep.subr.mxu0 0.0
    %587 = vmatpush1.xpose.msra.mxu0 %v552
    %588 = vmatprep.subr.mxu0 0.0
    %589 = vmatpush2.xpose.msra.mxu0 0.0
    %590 = vmatprep.subr.mxu0 0.0
    %591 = vmatpush2.xpose.msra.mxu0 0.0
    %592 = vmatprep.subr.mxu0 0.0
    %593 = vmatpush2.xpose.msra.mxu0 0.0
    %594 = vmatprep.subr.mxu0 0.0
    %595 = vmatpush2.xpose.msra.mxu0 0.0
    %596 = vmatprep.subr.mxu0 0.0
    %597 = vmatpush2.xpose.msra.mxu0 0.0
    %598 = vmatprep.subr.mxu0 0.0
    %599 = vmatpush2.xpose.msra.mxu0 0.0
    %600 = vmatprep.subr.mxu0 0.0
    %601 = vmatpush2.xpose.msra.mxu0 0.0
    %602 = vmatprep.subr.mxu0 0.0
    %603 = vmatpush2.xpose.msra.mxu0 0.0
    %604 = vmatprep.subr.mxu0 0.0
    %605 = vmatpush2.xpose.msra.mxu0 0.0
    %606 = vmatprep.subr.mxu0 0.0
    %607 = vmatpush2.xpose.msra.mxu0 0.0
    %608 = vmatprep.subr.mxu0 0.0
    %609 = vmatpush2.xpose.msra.mxu0 0.0
    %610 = vmatprep.subr.mxu0 0.0
    %611 = vmatpush2.xpose.msra.mxu0 0.0
    %612 = vmatprep.subr.mxu0 0.0
    %613 = vmatpush2.xpose.msra.mxu0 0.0
    %614 = vmatprep.subr.mxu0 0.0
    %615 = vmatpush2.xpose.msra.mxu0 0.0
    %616 = vmatprep.subr.mxu0 0.0
    %617 = vmatpush2.xpose.msra.mxu0 0.0
    %618 = vmatprep.subr.mxu0 0.0
    %619 = vmatpush2.xpose.msra.mxu0 0.0
    %620 = vmatprep.mubr.f32.mxu0 0.0
    %621 = vmatmul.mubr.f32.gmra.mxu0 %v548
    %v622 = vpop.f32.mrf.mxu0
    %v623 = vadd.f32 0.0, %v622
    %v624 = vpop.f32.mrf.mxu0
    %625 = vmatprep.mubr.f32.mxu0 0.0
    %626 = vmatmul.mubr.f32.gmra.mxu0 %v550
    %v627 = vpop.f32.mrf.mxu0
    %v628 = vadd.f32 0.0, %v627
    %v629 = vpop.f32.mrf.mxu0
    %630 = vdwg.mxu0
    %631 = vrot.lane.b32.xlu0 %v268, 104
    %v632 = vpop.permute.xlu0 %631
    %633 = vrot.lane.b32.xlu0 %v273, 104
    %v634 = vpop.permute.xlu0 %633
    %635 = vrot.lane.b32.xlu0 %v268, 72
    %v636 = vpop.permute.xlu0 %635
    %637 = vrot.lane.b32.xlu0 %v273, 72
    %v638 = vpop.permute.xlu0 %637
    %v639 = vsel %vm365, %v632, 0
    %v641 = vsel %vm365, %v634, 0
    %v643 = vsel %vm365, %v636, 0
    %v645 = vsel %vm365, %v638, 0
    %647 = vmatprep.subr.mxu0 0.0
    %648 = vmatpush1.xpose.msra.mxu0 0.0
    %649 = vmatprep.subr.mxu0 0.0
    %650 = vmatpush1.xpose.msra.mxu0 0.0
    %651 = vmatprep.subr.mxu0 0.0
    %652 = vmatpush1.xpose.msra.mxu0 0.0
    %653 = vmatprep.subr.mxu0 0.0
    %654 = vmatpush1.xpose.msra.mxu0 0.0
    %655 = vmatprep.subr.mxu0 0.0
    %656 = vmatpush1.xpose.msra.mxu0 0.0
    %657 = vmatprep.subr.mxu0 0.0
    %658 = vmatpush1.xpose.msra.mxu0 0.0
    %659 = vmatprep.subr.mxu0 0.0
    %660 = vmatpush1.xpose.msra.mxu0 0.0
    %661 = vmatprep.subr.mxu0 0.0
    %662 = vmatpush1.xpose.msra.mxu0 0.0
    %663 = vmatprep.subr.mxu0 0.0
    %664 = vmatpush1.xpose.msra.mxu0 0.0
    %665 = vmatprep.subr.mxu0 0.0
    %666 = vmatpush1.xpose.msra.mxu0 0.0
    %667 = vmatprep.subr.mxu0 0.0
    %668 = vmatpush1.xpose.msra.mxu0 0.0
    %669 = vmatprep.subr.mxu0 0.0
    %670 = vmatpush1.xpose.msra.mxu0 0.0
    %671 = vmatprep.subr.mxu0 0.0
    %672 = vmatpush1.xpose.msra.mxu0 0.0
    %673 = vmatprep.subr.mxu0 0.0
    %674 = vmatpush1.xpose.msra.mxu0 0.0
    %675 = vmatprep.subr.mxu0 0.0
    %676 = vmatpush1.xpose.msra.mxu0 %v645
    %677 = vmatprep.subr.mxu0 0.0
    %678 = vmatpush1.xpose.msra.mxu0 %v643
    %679 = vmatprep.subr.mxu0 0.0
    %680 = vmatpush2.xpose.msra.mxu0 0.0
    %681 = vmatprep.subr.mxu0 0.0
    %682 = vmatpush2.xpose.msra.mxu0 0.0
    %683 = vmatprep.subr.mxu0 0.0
    %684 = vmatpush2.xpose.msra.mxu0 0.0
    %685 = vmatprep.subr.mxu0 0.0
    %686 = vmatpush2.xpose.msra.mxu0 0.0
    %687 = vmatprep.subr.mxu0 0.0
    %688 = vmatpush2.xpose.msra.mxu0 0.0
    %689 = vmatprep.subr.mxu0 0.0
    %690 = vmatpush2.xpose.msra.mxu0 0.0
    %691 = vmatprep.subr.mxu0 0.0
    %692 = vmatpush2.xpose.msra.mxu0 0.0
    %693 = vmatprep.subr.mxu0 0.0
    %694 = vmatpush2.xpose.msra.mxu0 0.0
    %695 = vmatprep.subr.mxu0 0.0
    %696 = vmatpush2.xpose.msra.mxu0 0.0
    %697 = vmatprep.subr.mxu0 0.0
    %698 = vmatpush2.xpose.msra.mxu0 0.0
    %699 = vmatprep.subr.mxu0 0.0
    %700 = vmatpush2.xpose.msra.mxu0 0.0
    %701 = vmatprep.subr.mxu0 0.0
    %702 = vmatpush2.xpose.msra.mxu0 0.0
    %703 = vmatprep.subr.mxu0 0.0
    %704 = vmatpush2.xpose.msra.mxu0 0.0
    %705 = vmatprep.subr.mxu0 0.0
    %706 = vmatpush2.xpose.msra.mxu0 0.0
    %707 = vmatprep.subr.mxu0 0.0
    %708 = vmatpush2.xpose.msra.mxu0 0.0
    %709 = vmatprep.subr.mxu0 0.0
    %710 = vmatpush2.xpose.msra.mxu0 0.0
    %711 = vmatprep.mubr.f32.mxu0 0.0
    %712 = vmatmul.mubr.f32.gmra.mxu0 %v639
    %v713 = vpop.f32.mrf.mxu0
    %v714 = vadd.f32 0.0, %v713
    %v715 = vpop.f32.mrf.mxu0
    %716 = vmatprep.mubr.f32.mxu0 0.0
    %717 = vmatmul.mubr.f32.gmra.mxu0 %v641
    %v718 = vpop.f32.mrf.mxu0
    %v719 = vadd.f32 0.0, %v718
    %v720 = vpop.f32.mrf.mxu0
    %721 = vdwg.mxu0
    %v722 = vadd.f32 %v441, %v165
    %v723 = vadd.f32 %v446, %v166
    %v724 = vadd.f32 %v532, %v167
    %v725 = vadd.f32 %v537, %v168
    %v726 = vadd.f32 %v623, %v169
    %v727 = vadd.f32 %v628, %v170
    %v728 = vadd.f32 %v714, %v171
    %v729 = vadd.f32 %v719, %v172
    %vm730 = vcmask 130048
    %v731 = vsel %vm730, %v722, -inf
    %732 = vmax.xlane.f32.xlu0 %v731
    %v733 = vpop.xlane.xlu0 %732
    %v734 = vsel %vm730, %v723, -inf
    %735 = vmax.xlane.f32.xlu0 %v734
    %v736 = vpop.xlane.xlu0 %735
    %v737 = vsel %vm730, %v724, -inf
    %738 = vmax.xlane.f32.xlu0 %v737
    %v739 = vpop.xlane.xlu0 %738
    %v740 = vsel %vm730, %v725, -inf
    %741 = vmax.xlane.f32.xlu0 %v740
    %v742 = vpop.xlane.xlu0 %741
    %v743 = vsel %vm730, %v726, -inf
    %744 = vmax.xlane.f32.xlu0 %v743
    %v745 = vpop.xlane.xlu0 %744
    %v746 = vsel %vm730, %v727, -inf
    %747 = vmax.xlane.f32.xlu0 %v746
    %v748 = vpop.xlane.xlu0 %747
    %v749 = vsel %vm730, %v728, -inf
    %750 = vmax.xlane.f32.xlu0 %v749
    %v751 = vpop.xlane.xlu0 %750
    %v752 = vsel %vm730, %v729, -inf
    %753 = vmax.xlane.f32.xlu0 %v752
    %v754 = vpop.xlane.xlu0 %753
    %v755 = vsub.f32 %v722, %v733
    %v756 = vsub.f32 %v723, %v736
    %v757 = vsub.f32 %v724, %v739
    %v758 = vsub.f32 %v725, %v742
    %v759 = vsub.f32 %v726, %v745
    %v760 = vsub.f32 %v727, %v748
    %v761 = vsub.f32 %v728, %v751
    %v762 = vsub.f32 %v729, %v754
    %v763 = vmul.f32 %v755, 1.442695
    %v764 = vpow.pop %v763
    %v765 = vmul.f32 %v756, 1.442695
    %v766 = vpow.pop %v765
    %v767 = vmul.f32 %v757, 1.442695
    %v768 = vpow.pop %v767
    %v769 = vmul.f32 %v758, 1.442695
    %v770 = vpow.pop %v769
    %v771 = vmul.f32 %v759, 1.442695
    %v772 = vpow.pop %v771
    %v773 = vmul.f32 %v760, 1.442695
    %v774 = vpow.pop %v773
    %v775 = vmul.f32 %v761, 1.442695
    %v776 = vpow.pop %v775
    %v777 = vmul.f32 %v762, 1.442695
    %v778 = vpow.pop %v777
    %v779 = vsel %vm730, %v764, 0.0
    %780 = vadd.xlane.f32.xlu0 %v779
    %v781 = vpop.xlane.xlu0 %780
    %v782 = vsel %vm730, %v766, 0.0
    %783 = vadd.xlane.f32.xlu0 %v782
    %v784 = vpop.xlane.xlu0 %783
    %v785 = vsel %vm730, %v768, 0.0
    %786 = vadd.xlane.f32.xlu0 %v785
    %v787 = vpop.xlane.xlu0 %786
    %v788 = vsel %vm730, %v770, 0.0
    %789 = vadd.xlane.f32.xlu0 %v788
    %v790 = vpop.xlane.xlu0 %789
    %v791 = vsel %vm730, %v772, 0.0
    %792 = vadd.xlane.f32.xlu0 %v791
    %v793 = vpop.xlane.xlu0 %792
    %v794 = vsel %vm730, %v774, 0.0
    %795 = vadd.xlane.f32.xlu0 %v794
    %v796 = vpop.xlane.xlu0 %795
    %v797 = vsel %vm730, %v776, 0.0
    %798 = vadd.xlane.f32.xlu0 %v797
    %v799 = vpop.xlane.xlu0 %798
    %v800 = vsel %vm730, %v778, 0.0
    %801 = vadd.xlane.f32.xlu0 %v800
    %v802 = vpop.xlane.xlu0 %801
    %v803 = vrcp.pop %v781
    %v804 = vmul.f32 %v764, %v803
    %v805 = vrcp.pop %v784
    %v806 = vmul.f32 %v766, %v805
    %v807 = vrcp.pop %v787
    %v808 = vmul.f32 %v768, %v807
    %v809 = vrcp.pop %v790
    %v810 = vmul.f32 %v770, %v809
    %v811 = vrcp.pop %v793
    %v812 = vmul.f32 %v772, %v811
    %v813 = vrcp.pop %v796
    %v814 = vmul.f32 %v774, %v813
    %v815 = vrcp.pop %v799
    %v816 = vmul.f32 %v776, %v815
    %v817 = vrcp.pop %v802
    %v818 = vmul.f32 %v778, %v817
    %821 = vrot.lane.b32.xlu0 %v351, 96
    %v822 = vpop.permute.xlu0 %821
    %823 = vrot.lane.b32.xlu0 %v356, 96
    %v824 = vpop.permute.xlu0 %823
    %v828 = vsel %vm730, %v808, 0
    %v831 = vsel %vm730, %v810, 0
    %833 = vmatprep.subr.mxu0 0.0
    %834 = vmatpush1.msra.mxu0 0.0
    %835 = vmatprep.subr.mxu0 0.0
    %836 = vmatpush1.msra.mxu0 0.0
    %837 = vmatprep.subr.mxu0 0.0
    %838 = vmatpush1.msra.mxu0 0.0
    %839 = vmatprep.subr.mxu0 0.0
    %840 = vmatpush1.msra.mxu0 0.0
    %841 = vmatprep.subr.mxu0 0.0
    %842 = vmatpush1.msra.mxu0 0.0
    %843 = vmatprep.subr.mxu0 0.0
    %844 = vmatpush1.msra.mxu0 0.0
    %845 = vmatprep.subr.mxu0 0.0
    %846 = vmatpush1.msra.mxu0 0.0
    %847 = vmatprep.subr.mxu0 0.0
    %848 = vmatpush1.msra.mxu0 0.0
    %849 = vmatprep.subr.mxu0 0.0
    %850 = vmatpush1.msra.mxu0 0.0
    %851 = vmatprep.subr.mxu0 0.0
    %852 = vmatpush1.msra.mxu0 0.0
    %853 = vmatprep.subr.mxu0 0.0
    %854 = vmatpush1.msra.mxu0 0.0
    %855 = vmatprep.subr.mxu0 0.0
    %856 = vmatpush1.msra.mxu0 0.0
    %857 = vmatprep.subr.mxu0 0.0
    %858 = vmatpush1.msra.mxu0 0.0
    %859 = vmatprep.subr.mxu0 0.0
    %860 = vmatpush1.msra.mxu0 0.0
    %861 = vmatprep.subr.mxu0 0.0
    %862 = vmatpush1.msra.mxu0 %v824
    %863 = vmatprep.subr.mxu0 0.0
    %864 = vmatpush1.msra.mxu0 %v822
    %865 = vmatprep.subr.mxu0 0.0
    %866 = vmatpush2.msra.mxu0 0.0
    %867 = vmatprep.subr.mxu0 0.0
    %868 = vmatpush2.msra.mxu0 0.0
    %869 = vmatprep.subr.mxu0 0.0
    %870 = vmatpush2.msra.mxu0 0.0
    %871 = vmatprep.subr.mxu0 0.0
    %872 = vmatpush2.msra.mxu0 0.0
    %873 = vmatprep.subr.mxu0 0.0
    %874 = vmatpush2.msra.mxu0 0.0
    %875 = vmatprep.subr.mxu0 0.0
    %876 = vmatpush2.msra.mxu0 0.0
    %877 = vmatprep.subr.mxu0 0.0
    %878 = vmatpush2.msra.mxu0 0.0
    %879 = vmatprep.subr.mxu0 0.0
    %880 = vmatpush2.msra.mxu0 0.0
    %881 = vmatprep.subr.mxu0 0.0
    %882 = vmatpush2.msra.mxu0 0.0
    %883 = vmatprep.subr.mxu0 0.0
    %884 = vmatpush2.msra.mxu0 0.0
    %885 = vmatprep.subr.mxu0 0.0
    %886 = vmatpush2.msra.mxu0 0.0
    %887 = vmatprep.subr.mxu0 0.0
    %888 = vmatpush2.msra.mxu0 0.0
    %889 = vmatprep.subr.mxu0 0.0
    %890 = vmatpush2.msra.mxu0 0.0
    %891 = vmatprep.subr.mxu0 0.0
    %892 = vmatpush2.msra.mxu0 0.0
    %893 = vmatprep.subr.mxu0 0.0
    %894 = vmatpush2.msra.mxu0 0.0
    %895 = vmatprep.subr.mxu0 0.0
    %896 = vmatpush2.msra.mxu0 0.0
    %897 = vmatprep.mubr.f32.mxu0 0.0
    %898 = vmatmul.mubr.f32.gmra.mxu0 %v828
    %v899 = vpop.f32.mrf.mxu0
    %v900 = vadd.f32 0.0, %v899
    %v901 = vpop.f32.mrf.mxu0
    %902 = vmatprep.mubr.f32.mxu0 0.0
    %903 = vmatmul.mubr.f32.gmra.mxu0 %v831
    %v904 = vpop.f32.mrf.mxu0
    %v905 = vadd.f32 0.0, %v904
    %v906 = vpop.f32.mrf.mxu0
    %907 = vdwg.mxu0
    %v909 = vsel %vm730, %v804, 0
    %v912 = vsel %vm730, %v806, 0
    %914 = vmatprep.subr.mxu0 0.0
    %915 = vmatpush1.msra.mxu0 0.0
    %916 = vmatprep.subr.mxu0 0.0
    %917 = vmatpush1.msra.mxu0 0.0
    %918 = vmatprep.subr.mxu0 0.0
    %919 = vmatpush1.msra.mxu0 0.0
    %920 = vmatprep.subr.mxu0 0.0
    %921 = vmatpush1.msra.mxu0 0.0
    %922 = vmatprep.subr.mxu0 0.0
    %923 = vmatpush1.msra.mxu0 0.0
    %924 = vmatprep.subr.mxu0 0.0
    %925 = vmatpush1.msra.mxu0 0.0
    %926 = vmatprep.subr.mxu0 0.0
    %927 = vmatpush1.msra.mxu0 0.0
    %928 = vmatprep.subr.mxu0 0.0
    %929 = vmatpush1.msra.mxu0 0.0
    %930 = vmatprep.subr.mxu0 0.0
    %931 = vmatpush1.msra.mxu0 0.0
    %932 = vmatprep.subr.mxu0 0.0
    %933 = vmatpush1.msra.mxu0 0.0
    %934 = vmatprep.subr.mxu0 0.0
    %935 = vmatpush1.msra.mxu0 0.0
    %936 = vmatprep.subr.mxu0 0.0
    %937 = vmatpush1.msra.mxu0 0.0
    %938 = vmatprep.subr.mxu0 0.0
    %939 = vmatpush1.msra.mxu0 0.0
    %940 = vmatprep.subr.mxu0 0.0
    %941 = vmatpush1.msra.mxu0 0.0
    %942 = vmatprep.subr.mxu0 0.0
    %943 = vmatpush1.msra.mxu0 %v356
    %944 = vmatprep.subr.mxu0 0.0
    %945 = vmatpush1.msra.mxu0 %v351
    %946 = vmatprep.subr.mxu0 0.0
    %947 = vmatpush2.msra.mxu0 0.0
    %948 = vmatprep.subr.mxu0 0.0
    %949 = vmatpush2.msra.mxu0 0.0
    %950 = vmatprep.subr.mxu0 0.0
    %951 = vmatpush2.msra.mxu0 0.0
    %952 = vmatprep.subr.mxu0 0.0
    %953 = vmatpush2.msra.mxu0 0.0
    %954 = vmatprep.subr.mxu0 0.0
    %955 = vmatpush2.msra.mxu0 0.0
    %956 = vmatprep.subr.mxu0 0.0
    %957 = vmatpush2.msra.mxu0 0.0
    %958 = vmatprep.subr.mxu0 0.0
    %959 = vmatpush2.msra.mxu0 0.0
    %960 = vmatprep.subr.mxu0 0.0
    %961 = vmatpush2.msra.mxu0 0.0
    %962 = vmatprep.subr.mxu0 0.0
    %963 = vmatpush2.msra.mxu0 0.0
    %964 = vmatprep.subr.mxu0 0.0
    %965 = vmatpush2.msra.mxu0 0.0
    %966 = vmatprep.subr.mxu0 0.0
    %967 = vmatpush2.msra.mxu0 0.0
    %968 = vmatprep.subr.mxu0 0.0
    %969 = vmatpush2.msra.mxu0 0.0
    %970 = vmatprep.subr.mxu0 0.0
    %971 = vmatpush2.msra.mxu0 0.0
    %972 = vmatprep.subr.mxu0 0.0
    %973 = vmatpush2.msra.mxu0 0.0
    %974 = vmatprep.subr.mxu0 0.0
    %975 = vmatpush2.msra.mxu0 0.0
    %976 = vmatprep.subr.mxu0 0.0
    %977 = vmatpush2.msra.mxu0 0.0
    %978 = vmatprep.mubr.f32.mxu0 0.0
    %979 = vmatmul.mubr.f32.gmra.mxu0 %v909
    %v980 = vpop.f32.mrf.mxu0
    %v981 = vadd.f32 %v900, %v980
    %v982 = vpop.f32.mrf.mxu0
    %983 = vmatprep.mubr.f32.mxu0 0.0
    %984 = vmatmul.mubr.f32.gmra.mxu0 %v912
    %v985 = vpop.f32.mrf.mxu0
    %v986 = vadd.f32 %v905, %v985
    %v987 = vpop.f32.mrf.mxu0
    %988 = vdwg.mxu0
    %989 = vrot.lane.b32.xlu0 %v351, 64
    %v990 = vpop.permute.xlu0 %989
    %991 = vrot.lane.b32.xlu0 %v356, 64
    %v992 = vpop.permute.xlu0 %991
    %v996 = vsel %vm730, %v812, 0
    %v999 = vsel %vm730, %v814, 0
    %1001 = vmatprep.subr.mxu0 0.0
    %1002 = vmatpush1.msra.mxu0 0.0
    %1003 = vmatprep.subr.mxu0 0.0
    %1004 = vmatpush1.msra.mxu0 0.0
    %1005 = vmatprep.subr.mxu0 0.0
    %1006 = vmatpush1.msra.mxu0 0.0
    %1007 = vmatprep.subr.mxu0 0.0
    %1008 = vmatpush1.msra.mxu0 0.0
    %1009 = vmatprep.subr.mxu0 0.0
    %1010 = vmatpush1.msra.mxu0 0.0
    %1011 = vmatprep.subr.mxu0 0.0
    %1012 = vmatpush1.msra.mxu0 0.0
    %1013 = vmatprep.subr.mxu0 0.0
    %1014 = vmatpush1.msra.mxu0 0.0
    %1015 = vmatprep.subr.mxu0 0.0
    %1016 = vmatpush1.msra.mxu0 0.0
    %1017 = vmatprep.subr.mxu0 0.0
    %1018 = vmatpush1.msra.mxu0 0.0
    %1019 = vmatprep.subr.mxu0 0.0
    %1020 = vmatpush1.msra.mxu0 0.0
    %1021 = vmatprep.subr.mxu0 0.0
    %1022 = vmatpush1.msra.mxu0 0.0
    %1023 = vmatprep.subr.mxu0 0.0
    %1024 = vmatpush1.msra.mxu0 0.0
    %1025 = vmatprep.subr.mxu0 0.0
    %1026 = vmatpush1.msra.mxu0 0.0
    %1027 = vmatprep.subr.mxu0 0.0
    %1028 = vmatpush1.msra.mxu0 0.0
    %1029 = vmatprep.subr.mxu0 0.0
    %1030 = vmatpush1.msra.mxu0 %v992
    %1031 = vmatprep.subr.mxu0 0.0
    %1032 = vmatpush1.msra.mxu0 %v990
    %1033 = vmatprep.subr.mxu0 0.0
    %1034 = vmatpush2.msra.mxu0 0.0
    %1035 = vmatprep.subr.mxu0 0.0
    %1036 = vmatpush2.msra.mxu0 0.0
    %1037 = vmatprep.subr.mxu0 0.0
    %1038 = vmatpush2.msra.mxu0 0.0
    %1039 = vmatprep.subr.mxu0 0.0
    %1040 = vmatpush2.msra.mxu0 0.0
    %1041 = vmatprep.subr.mxu0 0.0
    %1042 = vmatpush2.msra.mxu0 0.0
    %1043 = vmatprep.subr.mxu0 0.0
    %1044 = vmatpush2.msra.mxu0 0.0
    %1045 = vmatprep.subr.mxu0 0.0
    %1046 = vmatpush2.msra.mxu0 0.0
    %1047 = vmatprep.subr.mxu0 0.0
    %1048 = vmatpush2.msra.mxu0 0.0
    %1049 = vmatprep.subr.mxu0 0.0
    %1050 = vmatpush2.msra.mxu0 0.0
    %1051 = vmatprep.subr.mxu0 0.0
    %1052 = vmatpush2.msra.mxu0 0.0
    %1053 = vmatprep.subr.mxu0 0.0
    %1054 = vmatpush2.msra.mxu0 0.0
    %1055 = vmatprep.subr.mxu0 0.0
    %1056 = vmatpush2.msra.mxu0 0.0
    %1057 = vmatprep.subr.mxu0 0.0
    %1058 = vmatpush2.msra.mxu0 0.0
    %1059 = vmatprep.subr.mxu0 0.0
    %1060 = vmatpush2.msra.mxu0 0.0
    %1061 = vmatprep.subr.mxu0 0.0
    %1062 = vmatpush2.msra.mxu0 0.0
    %1063 = vmatprep.subr.mxu0 0.0
    %1064 = vmatpush2.msra.mxu0 0.0
    %1065 = vmatprep.mubr.f32.mxu0 0.0
    %1066 = vmatmul.mubr.f32.gmra.mxu0 %v996
    %v1067 = vpop.f32.mrf.mxu0
    %v1068 = vadd.f32 0.0, %v1067
    %v1069 = vpop.f32.mrf.mxu0
    %1070 = vmatprep.mubr.f32.mxu0 0.0
    %1071 = vmatmul.mubr.f32.gmra.mxu0 %v999
    %v1072 = vpop.f32.mrf.mxu0
    %v1073 = vadd.f32 0.0, %v1072
    %v1074 = vpop.f32.mrf.mxu0
    %1075 = vdwg.mxu0
    %v1076 = vadd.f32 %v981, %v1068
    %v1077 = vadd.f32 %v986, %v1073
    %1078 = vrot.lane.b32.xlu0 %v351, 32
    %v1079 = vpop.permute.xlu0 %1078
    %1080 = vrot.lane.b32.xlu0 %v356, 32
    %v1081 = vpop.permute.xlu0 %1080
    %v1085 = vsel %vm730, %v816, 0
    %v1088 = vsel %vm730, %v818, 0
    %1090 = vmatprep.subr.mxu0 0.0
    %1091 = vmatpush1.msra.mxu0 0.0
    %1092 = vmatprep.subr.mxu0 0.0
    %1093 = vmatpush1.msra.mxu0 0.0
    %1094 = vmatprep.subr.mxu0 0.0
    %1095 = vmatpush1.msra.mxu0 0.0
    %1096 = vmatprep.subr.mxu0 0.0
    %1097 = vmatpush1.msra.mxu0 0.0
    %1098 = vmatprep.subr.mxu0 0.0
    %1099 = vmatpush1.msra.mxu0 0.0
    %1100 = vmatprep.subr.mxu0 0.0
    %1101 = vmatpush1.msra.mxu0 0.0
    %1102 = vmatprep.subr.mxu0 0.0
    %1103 = vmatpush1.msra.mxu0 0.0
    %1104 = vmatprep.subr.mxu0 0.0
    %1105 = vmatpush1.msra.mxu0 0.0
    %1106 = vmatprep.subr.mxu0 0.0
    %1107 = vmatpush1.msra.mxu0 0.0
    %1108 = vmatprep.subr.mxu0 0.0
    %1109 = vmatpush1.msra.mxu0 0.0
    %1110 = vmatprep.subr.mxu0 0.0
    %1111 = vmatpush1.msra.mxu0 0.0
    %1112 = vmatprep.subr.mxu0 0.0
    %1113 = vmatpush1.msra.mxu0 0.0
    %1114 = vmatprep.subr.mxu0 0.0
    %1115 = vmatpush1.msra.mxu0 0.0
    %1116 = vmatprep.subr.mxu0 0.0
    %1117 = vmatpush1.msra.mxu0 0.0
    %1118 = vmatprep.subr.mxu0 0.0
    %1119 = vmatpush1.msra.mxu0 %v1081
    %1120 = vmatprep.subr.mxu0 0.0
    %1121 = vmatpush1.msra.mxu0 %v1079
    %1122 = vmatprep.subr.mxu0 0.0
    %1123 = vmatpush2.msra.mxu0 0.0
    %1124 = vmatprep.subr.mxu0 0.0
    %1125 = vmatpush2.msra.mxu0 0.0
    %1126 = vmatprep.subr.mxu0 0.0
    %1127 = vmatpush2.msra.mxu0 0.0
    %1128 = vmatprep.subr.mxu0 0.0
    %1129 = vmatpush2.msra.mxu0 0.0
    %1130 = vmatprep.subr.mxu0 0.0
    %1131 = vmatpush2.msra.mxu0 0.0
    %1132 = vmatprep.subr.mxu0 0.0
    %1133 = vmatpush2.msra.mxu0 0.0
    %1134 = vmatprep.subr.mxu0 0.0
    %1135 = vmatpush2.msra.mxu0 0.0
    %1136 = vmatprep.subr.mxu0 0.0
    %1137 = vmatpush2.msra.mxu0 0.0
    %1138 = vmatprep.subr.mxu0 0.0
    %1139 = vmatpush2.msra.mxu0 0.0
    %1140 = vmatprep.subr.mxu0 0.0
    %1141 = vmatpush2.msra.mxu0 0.0
    %1142 = vmatprep.subr.mxu0 0.0
    %1143 = vmatpush2.msra.mxu0 0.0
    %1144 = vmatprep.subr.mxu0 0.0
    %1145 = vmatpush2.msra.mxu0 0.0
    %1146 = vmatprep.subr.mxu0 0.0
    %1147 = vmatpush2.msra.mxu0 0.0
    %1148 = vmatprep.subr.mxu0 0.0
    %1149 = vmatpush2.msra.mxu0 0.0
    %1150 = vmatprep.subr.mxu0 0.0
    %1151 = vmatpush2.msra.mxu0 0.0
    %1152 = vmatprep.subr.mxu0 0.0
    %1153 = vmatpush2.msra.mxu0 0.0
    %1154 = vmatprep.mubr.f32.mxu0 0.0
    %1155 = vmatmul.mubr.f32.gmra.mxu0 %v1085
    %v1156 = vpop.f32.mrf.mxu0
    %v1157 = vadd.f32 0.0, %v1156
    %v1158 = vpop.f32.mrf.mxu0
    %1159 = vmatprep.mubr.f32.mxu0 0.0
    %1160 = vmatmul.mubr.f32.gmra.mxu0 %v1088
    %v1161 = vpop.f32.mrf.mxu0
    %v1162 = vadd.f32 0.0, %v1161
    %v1163 = vpop.f32.mrf.mxu0
    %1164 = vdwg.mxu0
    %v1165 = vadd.f32 %v1076, %v1157
    %v1166 = vadd.f32 %v1077, %v1162
    %v1167 = vld [vmem:[%s4 + $0x3] sm:$0x1]
    %v1168 = vlaneseq
    %v1169 = vshrl.u32 %v1168, 7
    %v1170 = vsub.s32 0, %v1169
    %v1171 = vrot.slane %v1167, %v1170
    %v1172 = vadd.f32 %v1165, %v1171
    %v1173 = vadd.f32 %v1166, %v1171
    %v1174 = vld [vmem:[%s5] sm:$0x1]
    %v1175 = vld [vmem:[%s5 + $0x1] sm:$0x1]
    %v1176 = vadd.f32 %v173, %v1172
    %v1177 = vadd.f32 %v174, %v1173
    %v1178 = vsel %vm194, %v1176, 0.0
    %1179 = vadd.xlane.f32.xlu0 %v1178
    %v1180 = vpop.xlane.xlu0 %1179
    %v1181 = vsel %vm194, %v1177, 0.0
    %1182 = vadd.xlane.f32.xlu0 %v1181
    %v1183 = vpop.xlane.xlu0 %1182
    %v1184 = vrcp.pop 32.0
    %v1185 = vmul.f32 %v1180, %v1184
    %v1186 = vmul.f32 %v1183, %v1184
    %v1187 = vsub.f32 %v1176, %v1185
    %v1188 = vsub.f32 %v1177, %v1186
    %v1189 = vmul.f32 %v1187, %v1187
    %v1190 = vmul.f32 %v1188, %v1188
    %v1191 = vsel %vm194, %v1189, 0.0
    %1192 = vadd.xlane.f32.xlu0 %v1191
    %v1193 = vpop.xlane.xlu0 %1192
    %v1194 = vsel %vm194, %v1190, 0.0
    %1195 = vadd.xlane.f32.xlu0 %v1194
    %v1196 = vpop.xlane.xlu0 %1195
    %v1197 = vmul.f32 %v1193, %v1184
    %v1198 = vmul.f32 %v1196, %v1184
    %v1199 = vadd.f32 %v1197, 1e-05
    %v1200 = vadd.f32 %v1198, 1e-05
    %v1201 = vrsqrt.pop %v1199
    %v1202 = vrsqrt.pop %v1200
    %v1203 = vmul.f32 %v1187, %v1201
    %v1204 = vmul.f32 %v1188, %v1202
    %v1205 = vlaneseq
    %v1206 = vshrl.u32 %v1205, 7
    %v1207 = vsub.s32 0, %v1206
    %v1208 = vrot.slane %v1174, %v1207
    %v1209 = vmul.f32 %v1203, %v1208
    %v1210 = vmul.f32 %v1204, %v1208
    %v1211 = vlaneseq
    %v1212 = vshrl.u32 %v1211, 7
    %v1213 = vsub.s32 0, %v1212
    %v1214 = vrot.slane %v1175, %v1213
    %v1215 = vadd.f32 %v1209, %v1214
    %v1216 = vadd.f32 %v1210, %v1214
    %v1217 = vld [vmem:[%s1] sm:$0xff]
    %v1218 = vld [vmem:[%s1 + $0x8] sm:$0xff]
    %v1219 = vld [vmem:[%s1 + $0x10] sm:$0xff]
    %1223 = vrot.lane.b32.xlu0 %v1217, 64
    %v1224 = vpop.permute.xlu0 %1223
    %1225 = vrot.lane.b32.xlu0 %v1218, 64
    %v1226 = vpop.permute.xlu0 %1225
    %1227 = vrot.lane.b32.xlu0 %v1219, 64
    %v1228 = vpop.permute.xlu0 %1227
    %v1232 = vadd.f32 %v1217, %v1224
    %v1233 = vadd.f32 %v1218, %v1226
    %v1234 = vadd.f32 %v1219, %v1228
    %v1235 = vld [vmem:[#allocation2] sm:$0xff]
    %v1236 = vld [vmem:[#allocation2 + $0x18] sm:$0xff]
    %v1237 = vld [vmem:[#allocation2 + $0x30] sm:$0xff]
    %v1238 = vld [vmem:[#allocation2 + $0x48] sm:$0xff]
    %v1239 = vld [vmem:[#allocation2 + $0x60] sm:$0xff]
    %v1240 = vld [vmem:[#allocation2 + $0x78] sm:$0xff]
    %v1241 = vld [vmem:[#allocation2 + $0x90] sm:$0xff]
    %v1242 = vld [vmem:[#allocation2 + $0xa8] sm:$0xff]
    %v1243 = vld [vmem:[%s4 + $0x2] sm:$0x1]
    %v1244 = vlaneseq
    %v1245 = vshrl.u32 %v1244, 7
    %v1246 = vsub.s32 0, %v1245
    %v1247 = vrot.slane %v1243, %v1246
    %vm1248 = vcmask 523264
    %v1250 = vsel %vm1248, %v1232, 0
    %v1253 = vsel %vm1248, %v1233, 0
    %v1256 = vsel %vm1248, %v1234, 0
    %1258 = vmatprep.subr.mxu0 0.0
    %1259 = vmatpush1.msra.mxu0 0.0
    %1260 = vmatprep.subr.mxu0 0.0
    %1261 = vmatpush1.msra.mxu0 0.0
    %1262 = vmatprep.subr.mxu0 0.0
    %1263 = vmatpush1.msra.mxu0 0.0
    %1264 = vmatprep.subr.mxu0 0.0
    %1265 = vmatpush1.msra.mxu0 0.0
    %1266 = vmatprep.subr.mxu0 0.0
    %1267 = vmatpush1.msra.mxu0 0.0
    %1268 = vmatprep.subr.mxu0 0.0
    %1269 = vmatpush1.msra.mxu0 0.0
    %1270 = vmatprep.subr.mxu0 0.0
    %1271 = vmatpush1.msra.mxu0 0.0
    %1272 = vmatprep.subr.mxu0 0.0
    %1273 = vmatpush1.msra.mxu0 0.0
    %1274 = vmatprep.subr.mxu0 0.0
    %1275 = vmatpush1.msra.mxu0 %v1242
    %1276 = vmatprep.subr.mxu0 0.0
    %1277 = vmatpush1.msra.mxu0 %v1241
    %1278 = vmatprep.subr.mxu0 0.0
    %1279 = vmatpush1.msra.mxu0 %v1240
    %1280 = vmatprep.subr.mxu0 0.0
    %1281 = vmatpush1.msra.mxu0 %v1239
    %1282 = vmatprep.subr.mxu0 0.0
    %1283 = vmatpush1.msra.mxu0 %v1238
    %1284 = vmatprep.subr.mxu0 0.0
    %1285 = vmatpush1.msra.mxu0 %v1237
    %1286 = vmatprep.subr.mxu0 0.0
    %1287 = vmatpush1.msra.mxu0 %v1236
    %1288 = vmatprep.subr.mxu0 0.0
    %1289 = vmatpush1.msra.mxu0 %v1235
    %1290 = vmatprep.subr.mxu0 0.0
    %1291 = vmatpush2.msra.mxu0 0.0
    %1292 = vmatprep.subr.mxu0 0.0
    %1293 = vmatpush2.msra.mxu0 0.0
    %1294 = vmatprep.subr.mxu0 0.0
    %1295 = vmatpush2.msra.mxu0 0.0
    %1296 = vmatprep.subr.mxu0 0.0
    %1297 = vmatpush2.msra.mxu0 0.0
    %1298 = vmatprep.subr.mxu0 0.0
    %1299 = vmatpush2.msra.mxu0 0.0
    %1300 = vmatprep.subr.mxu0 0.0
    %1301 = vmatpush2.msra.mxu0 0.0
    %1302 = vmatprep.subr.mxu0 0.0
    %1303 = vmatpush2.msra.mxu0 0.0
    %1304 = vmatprep.subr.mxu0 0.0
    %1305 = vmatpush2.msra.mxu0 0.0
    %1306 = vmatprep.subr.mxu0 0.0
    %1307 = vmatpush2.msra.mxu0 0.0
    %1308 = vmatprep.subr.mxu0 0.0
    %1309 = vmatpush2.msra.mxu0 0.0
    %1310 = vmatprep.subr.mxu0 0.0
    %1311 = vmatpush2.msra.mxu0 0.0
    %1312 = vmatprep.subr.mxu0 0.0
    %1313 = vmatpush2.msra.mxu0 0.0
    %1314 = vmatprep.subr.mxu0 0.0
    %1315 = vmatpush2.msra.mxu0 0.0
    %1316 = vmatprep.subr.mxu0 0.0
    %1317 = vmatpush2.msra.mxu0 0.0
    %1318 = vmatprep.subr.mxu0 0.0
    %1319 = vmatpush2.msra.mxu0 0.0
    %1320 = vmatprep.subr.mxu0 0.0
    %1321 = vmatpush2.msra.mxu0 0.0
    %1322 = vmatprep.mubr.f32.mxu0 0.0
    %1323 = vmatmul.mubr.f32.gmra.mxu0 %v1250
    %v1324 = vpop.f32.mrf.mxu0
    %v1325 = vadd.f32 %v1247, %v1324
    %v1326 = vpop.f32.mrf.mxu0
    %1327 = vmatprep.mubr.f32.mxu0 0.0
    %1328 = vmatmul.mubr.f32.gmra.mxu0 %v1253
    %v1329 = vpop.f32.mrf.mxu0
    %v1330 = vadd.f32 %v1247, %v1329
    %v1331 = vpop.f32.mrf.mxu0
    %1332 = vmatprep.mubr.f32.mxu0 0.0
    %1333 = vmatmul.mubr.f32.gmra.mxu0 %v1256
    %v1334 = vpop.f32.mrf.mxu0
    %v1335 = vadd.f32 %v1247, %v1334
    %v1336 = vpop.f32.mrf.mxu0
    %1337 = vdwg.mxu0
    %v1338 = vld [vmem:[#allocation2] sm:$0xff]
    %v1339 = vld [vmem:[#allocation2 + $0x8] sm:$0xff]
    %v1340 = vld [vmem:[#allocation2 + $0x10] sm:$0xff]
    %v1341 = vld [vmem:[#allocation2 + $0x18] sm:$0xff]
    %v1342 = vld [vmem:[#allocation2 + $0x20] sm:$0xff]
    %v1343 = vld [vmem:[#allocation2 + $0x28] sm:$0xff]
    %v1344 = vld [vmem:[#allocation2 + $0x30] sm:$0xff]
    %v1345 = vld [vmem:[#allocation2 + $0x38] sm:$0xff]
    %v1346 = vld [vmem:[#allocation2 + $0x40] sm:$0xff]
    %v1347 = vld [vmem:[#allocation2 + $0x48] sm:$0xff]
    %v1348 = vld [vmem:[#allocation2 + $0x50] sm:$0xff]
    %v1349 = vld [vmem:[#allocation2 + $0x58] sm:$0xff]
    %v1350 = vld [vmem:[#allocation2 + $0x60] sm:$0xff]
    %v1351 = vld [vmem:[#allocation2 + $0x68] sm:$0xff]
    %v1352 = vld [vmem:[#allocation2 + $0x70] sm:$0xff]
    %v1353 = vld [vmem:[#allocation2 + $0x78] sm:$0xff]
    %v1354 = vld [vmem:[#allocation2 + $0x80] sm:$0xff]
    %v1355 = vld [vmem:[#allocation2 + $0x88] sm:$0xff]
    %v1356 = vld [vmem:[#allocation2 + $0x90] sm:$0xff]
    %v1357 = vld [vmem:[#allocation2 + $0x98] sm:$0xff]
    %v1358 = vld [vmem:[#allocation2 + $0xa0] sm:$0xff]
    %v1359 = vld [vmem:[#allocation2 + $0xa8] sm:$0xff]
    %v1360 = vld [vmem:[#allocation2 + $0xb0] sm:$0xff]
    %v1361 = vld [vmem:[#allocation2 + $0xb8] sm:$0xff]
    %1386 = vrot.lane.b32.xlu0 %v1338, 64
    %v1387 = vpop.permute.xlu0 %1386
    %1388 = vrot.lane.b32.xlu0 %v1339, 64
    %v1389 = vpop.permute.xlu0 %1388
    %1390 = vrot.lane.b32.xlu0 %v1340, 64
    %v1391 = vpop.permute.xlu0 %1390
    %1392 = vrot.lane.b32.xlu0 %v1341, 64
    %v1393 = vpop.permute.xlu0 %1392
    %1394 = vrot.lane.b32.xlu0 %v1342, 64
    %v1395 = vpop.permute.xlu0 %1394
    %1396 = vrot.lane.b32.xlu0 %v1343, 64
    %v1397 = vpop.permute.xlu0 %1396
    %1398 = vrot.lane.b32.xlu0 %v1344, 64
    %v1399 = vpop.permute.xlu0 %1398
    %1400 = vrot.lane.b32.xlu0 %v1345, 64
    %v1401 = vpop.permute.xlu0 %1400
    %1402 = vrot.lane.b32.xlu0 %v1346, 64
    %v1403 = vpop.permute.xlu0 %1402
    %1404 = vrot.lane.b32.xlu0 %v1347, 64
    %v1405 = vpop.permute.xlu0 %1404
    %1406 = vrot.lane.b32.xlu0 %v1348, 64
    %v1407 = vpop.permute.xlu0 %1406
    %1408 = vrot.lane.b32.xlu0 %v1349, 64
    %v1409 = vpop.permute.xlu0 %1408
    %1410 = vrot.lane.b32.xlu0 %v1350, 64
    %v1411 = vpop.permute.xlu0 %1410
    %1412 = vrot.lane.b32.xlu0 %v1351, 64
    %v1413 = vpop.permute.xlu0 %1412
    %1414 = vrot.lane.b32.xlu0 %v1352, 64
    %v1415 = vpop.permute.xlu0 %1414
    %1416 = vrot.lane.b32.xlu0 %v1353, 64
    %v1417 = vpop.permute.xlu0 %1416
    %1418 = vrot.lane.b32.xlu0 %v1354, 64
    %v1419 = vpop.permute.xlu0 %1418
    %1420 = vrot.lane.b32.xlu0 %v1355, 64
    %v1421 = vpop.permute.xlu0 %1420
    %1422 = vrot.lane.b32.xlu0 %v1356, 64
    %v1423 = vpop.permute.xlu0 %1422
    %1424 = vrot.lane.b32.xlu0 %v1357, 64
    %v1425 = vpop.permute.xlu0 %1424
    %1426 = vrot.lane.b32.xlu0 %v1358, 64
    %v1427 = vpop.permute.xlu0 %1426
    %1428 = vrot.lane.b32.xlu0 %v1359, 64
    %v1429 = vpop.permute.xlu0 %1428
    %1430 = vrot.lane.b32.xlu0 %v1360, 64
    %v1431 = vpop.permute.xlu0 %1430
    %1432 = vrot.lane.b32.xlu0 %v1361, 64
    %v1433 = vpop.permute.xlu0 %1432
    %v1434 = vsel %vm1248, %v1387, %v1389
    %v1435 = vsel %vm1248, %v1389, %v1391
    %v1436 = vsel %vm1248, %v1393, %v1395
    %v1437 = vsel %vm1248, %v1395, %v1397
    %v1438 = vsel %vm1248, %v1399, %v1401
    %v1439 = vsel %vm1248, %v1401, %v1403
    %v1440 = vsel %vm1248, %v1405, %v1407
    %v1441 = vsel %vm1248, %v1407, %v1409
    %v1442 = vsel %vm1248, %v1411, %v1413
    %v1443 = vsel %vm1248, %v1413, %v1415
    %v1444 = vsel %vm1248, %v1417, %v1419
    %v1445 = vsel %vm1248, %v1419, %v1421
    %v1446 = vsel %vm1248, %v1423, %v1425
    %v1447 = vsel %vm1248, %v1425, %v1427
    %v1448 = vsel %vm1248, %v1429, %v1431
    %v1449 = vsel %vm1248, %v1431, %v1433
    %v1466 = vsel %vm1248, %v1217, 0
    %v1468 = vsel %vm1248, %v1218, 0
    %v1470 = vsel %vm1248, %v1219, 0
    %1472 = vmatprep.subr.mxu0 0.0
    %1473 = vmatpush1.msra.mxu0 0.0
    %1474 = vmatprep.subr.mxu0 0.0
    %1475 = vmatpush1.msra.mxu0 0.0
    %1476 = vmatprep.subr.mxu0 0.0
    %1477 = vmatpush1.msra.mxu0 0.0
    %1478 = vmatprep.subr.mxu0 0.0
    %1479 = vmatpush1.msra.mxu0 0.0
    %1480 = vmatprep.subr.mxu0 0.0
    %1481 = vmatpush1.msra.mxu0 0.0
    %1482 = vmatprep.subr.mxu0 0.0
    %1483 = vmatpush1.msra.mxu0 0.0
    %1484 = vmatprep.subr.mxu0 0.0
    %1485 = vmatpush1.msra.mxu0 0.0
    %1486 = vmatprep.subr.mxu0 0.0
    %1487 = vmatpush1.msra.mxu0 0.0
    %1488 = vmatprep.subr.mxu0 %v1449
    %1489 = vmatpush1.msra.mxu0 %v1448
    %1490 = vmatprep.subr.mxu0 %v1447
    %1491 = vmatpush1.msra.mxu0 %v1446
    %1492 = vmatprep.subr.mxu0 %v1445
    %1493 = vmatpush1.msra.mxu0 %v1444
    %1494 = vmatprep.subr.mxu0 %v1443
    %1495 = vmatpush1.msra.mxu0 %v1442
    %1496 = vmatprep.subr.mxu0 %v1441
    %1497 = vmatpush1.msra.mxu0 %v1440
    %1498 = vmatprep.subr.mxu0 %v1439
    %1499 = vmatpush1.msra.mxu0 %v1438
    %1500 = vmatprep.subr.mxu0 %v1437
    %1501 = vmatpush1.msra.mxu0 %v1436
    %1502 = vmatprep.subr.mxu0 %v1435
    %1503 = vmatpush1.msra.mxu0 %v1434
    %1504 = vmatprep.subr.mxu0 0.0
    %1505 = vmatpush2.msra.mxu0 0.0
    %1506 = vmatprep.subr.mxu0 0.0
    %1507 = vmatpush2.msra.mxu0 0.0
    %1508 = vmatprep.subr.mxu0 0.0
    %1509 = vmatpush2.msra.mxu0 0.0
    %1510 = vmatprep.subr.mxu0 0.0
    %1511 = vmatpush2.msra.mxu0 0.0
    %1512 = vmatprep.subr.mxu0 0.0
    %1513 = vmatpush2.msra.mxu0 0.0
    %1514 = vmatprep.subr.mxu0 0.0
    %1515 = vmatpush2.msra.mxu0 0.0
    %1516 = vmatprep.subr.mxu0 0.0
    %1517 = vmatpush2.msra.mxu0 0.0
    %1518 = vmatprep.subr.mxu0 0.0
    %1519 = vmatpush2.msra.mxu0 0.0
    %1520 = vmatprep.subr.mxu0 0.0
    %1521 = vmatpush2.msra.mxu0 0.0
    %1522 = vmatprep.subr.mxu0 0.0
    %1523 = vmatpush2.msra.mxu0 0.0
    %1524 = vmatprep.subr.mxu0 0.0
    %1525 = vmatpush2.msra.mxu0 0.0
    %1526 = vmatprep.subr.mxu0 0.0
    %1527 = vmatpush2.msra.mxu0 0.0
    %1528 = vmatprep.subr.mxu0 0.0
    %1529 = vmatpush2.msra.mxu0 0.0
    %1530 = vmatprep.subr.mxu0 0.0
    %1531 = vmatpush2.msra.mxu0 0.0
    %1532 = vmatprep.subr.mxu0 0.0
    %1533 = vmatpush2.msra.mxu0 0.0
    %1534 = vmatprep.subr.mxu0 0.0
    %1535 = vmatpush2.msra.mxu0 0.0
    %1536 = vmatprep.mubr.f32.mxu0 0.0
    %1537 = vmatmul.mubr.f32.gmra.mxu0 %v1466
    %v1538 = vpop.f32.mrf.mxu0
    %v1539 = vadd.f32 0.0, %v1538
    %v1540 = vpop.f32.mrf.mxu0
    %v1541 = vadd.f32 0.0, %v1540
    %1542 = vmatprep.mubr.f32.mxu0 0.0
    %1543 = vmatmul.mubr.f32.gmra.mxu0 %v1468
    %v1544 = vpop.f32.mrf.mxu0
    %v1545 = vadd.f32 0.0, %v1544
    %v1546 = vpop.f32.mrf.mxu0
    %v1547 = vadd.f32 0.0, %v1546
    %1548 = vmatprep.mubr.f32.mxu0 0.0
    %1549 = vmatmul.mubr.f32.gmra.mxu0 %v1470
    %v1550 = vpop.f32.mrf.mxu0
    %v1551 = vadd.f32 0.0, %v1550
    %v1552 = vpop.f32.mrf.mxu0
    %v1553 = vadd.f32 0.0, %v1552
    %1554 = vdwg.mxu0
    %v1555 = vadd.f32 %v1215, %v178
    %v1556 = vadd.f32 %v1216, %v180
    %v1557 = vld [vmem:[%s4 + $0x1] sm:$0x1]
    %v1558 = vlaneseq
    %v1559 = vshrl.u32 %v1558, 7
    %v1560 = vsub.s32 0, %v1559
    %v1561 = vrot.slane %v1557, %v1560
    %1566 = vrot.lane.b32.xlu0 %v185, 64
    %v1567 = vpop.permute.xlu0 %1566
    %1568 = vrot.lane.b32.xlu0 %v186, 64
    %v1569 = vpop.permute.xlu0 %1568
    %1570 = vrot.lane.b32.xlu0 %v187, 64
    %v1571 = vpop.permute.xlu0 %1570
    %1572 = vrot.lane.b32.xlu0 %v188, 64
    %v1573 = vpop.permute.xlu0 %1572
    %v1579 = vsel %vm194, %v1555, 0
    %v1582 = vsel %vm194, %v1556, 0
    %1584 = vmatprep.subr.mxu0 0.0
    %1585 = vmatpush1.msra.mxu0 0.0
    %1586 = vmatprep.subr.mxu0 0.0
    %1587 = vmatpush1.msra.mxu0 0.0
    %1588 = vmatprep.subr.mxu0 0.0
    %1589 = vmatpush1.msra.mxu0 0.0
    %1590 = vmatprep.subr.mxu0 0.0
    %1591 = vmatpush1.msra.mxu0 0.0
    %1592 = vmatprep.subr.mxu0 0.0
    %1593 = vmatpush1.msra.mxu0 0.0
    %1594 = vmatprep.subr.mxu0 0.0
    %1595 = vmatpush1.msra.mxu0 0.0
    %1596 = vmatprep.subr.mxu0 0.0
    %1597 = vmatpush1.msra.mxu0 0.0
    %1598 = vmatprep.subr.mxu0 0.0
    %1599 = vmatpush1.msra.mxu0 0.0
    %1600 = vmatprep.subr.mxu0 0.0
    %1601 = vmatpush1.msra.mxu0 0.0
    %1602 = vmatprep.subr.mxu0 0.0
    %1603 = vmatpush1.msra.mxu0 0.0
    %1604 = vmatprep.subr.mxu0 0.0
    %1605 = vmatpush1.msra.mxu0 0.0
    %1606 = vmatprep.subr.mxu0 0.0
    %1607 = vmatpush1.msra.mxu0 0.0
    %1608 = vmatprep.subr.mxu0 0.0
    %1609 = vmatpush1.msra.mxu0 %v1573
    %1610 = vmatprep.subr.mxu0 0.0
    %1611 = vmatpush1.msra.mxu0 %v1571
    %1612 = vmatprep.subr.mxu0 0.0
    %1613 = vmatpush1.msra.mxu0 %v1569
    %1614 = vmatprep.subr.mxu0 0.0
    %1615 = vmatpush1.msra.mxu0 %v1567
    %1616 = vmatprep.subr.mxu0 0.0
    %1617 = vmatpush2.msra.mxu0 0.0
    %1618 = vmatprep.subr.mxu0 0.0
    %1619 = vmatpush2.msra.mxu0 0.0
    %1620 = vmatprep.subr.mxu0 0.0
    %1621 = vmatpush2.msra.mxu0 0.0
    %1622 = vmatprep.subr.mxu0 0.0
    %1623 = vmatpush2.msra.mxu0 0.0
    %1624 = vmatprep.subr.mxu0 0.0
    %1625 = vmatpush2.msra.mxu0 0.0
    %1626 = vmatprep.subr.mxu0 0.0
    %1627 = vmatpush2.msra.mxu0 0.0
    %1628 = vmatprep.subr.mxu0 0.0
    %1629 = vmatpush2.msra.mxu0 0.0
    %1630 = vmatprep.subr.mxu0 0.0
    %1631 = vmatpush2.msra.mxu0 0.0
    %1632 = vmatprep.subr.mxu0 0.0
    %1633 = vmatpush2.msra.mxu0 0.0
    %1634 = vmatprep.subr.mxu0 0.0
    %1635 = vmatpush2.msra.mxu0 0.0
    %1636 = vmatprep.subr.mxu0 0.0
    %1637 = vmatpush2.msra.mxu0 0.0
    %1638 = vmatprep.subr.mxu0 0.0
    %1639 = vmatpush2.msra.mxu0 0.0
    %1640 = vmatprep.subr.mxu0 0.0
    %1641 = vmatpush2.msra.mxu0 0.0
    %1642 = vmatprep.subr.mxu0 0.0
    %1643 = vmatpush2.msra.mxu0 0.0
    %1644 = vmatprep.subr.mxu0 0.0
    %1645 = vmatpush2.msra.mxu0 0.0
    %1646 = vmatprep.subr.mxu0 0.0
    %1647 = vmatpush2.msra.mxu0 0.0
    %1648 = vmatprep.mubr.f32.mxu0 0.0
    %1649 = vmatmul.mubr.f32.gmra.mxu0 %v1579
    %v1650 = vpop.f32.mrf.mxu0
    %v1651 = vadd.f32 %v1561, %v1650
    %v1652 = vpop.f32.mrf.mxu0
    %1653 = vmatprep.mubr.f32.mxu0 0.0
    %1654 = vmatmul.mubr.f32.gmra.mxu0 %v1582
    %v1655 = vpop.f32.mrf.mxu0
    %v1656 = vadd.f32 %v1561, %v1655
    %v1657 = vpop.f32.mrf.mxu0
    %1658 = vdwg.mxu0
    %v1660 = vsel %vm365, %v1651, 0
    %v1663 = vsel %vm365, %v1656, 0
    %v1666 = vsel %vm365, %v1325, 0
    %v1669 = vsel %vm365, %v1330, 0
    %v1672 = vsel %vm365, %v1335, 0
    %1674 = vmatprep.subr.mxu0 0.0
    %1675 = vmatpush1.xpose.msra.mxu0 0.0
    %1676 = vmatprep.subr.mxu0 0.0
    %1677 = vmatpush1.xpose.msra.mxu0 0.0
    %1678 = vmatprep.subr.mxu0 0.0
    %1679 = vmatpush1.xpose.msra.mxu0 0.0
    %1680 = vmatprep.subr.mxu0 0.0
    %1681 = vmatpush1.xpose.msra.mxu0 0.0
    %1682 = vmatprep.subr.mxu0 0.0
    %1683 = vmatpush1.xpose.msra.mxu0 0.0
    %1684 = vmatprep.subr.mxu0 0.0
    %1685 = vmatpush1.xpose.msra.mxu0 0.0
    %1686 = vmatprep.subr.mxu0 0.0
    %1687 = vmatpush1.xpose.msra.mxu0 0.0
    %1688 = vmatprep.subr.mxu0 0.0
    %1689 = vmatpush1.xpose.msra.mxu0 0.0
    %1690 = vmatprep.subr.mxu0 0.0
    %1691 = vmatpush1.xpose.msra.mxu0 0.0
    %1692 = vmatprep.subr.mxu0 0.0
    %1693 = vmatpush1.xpose.msra.mxu0 0.0
    %1694 = vmatprep.subr.mxu0 0.0
    %1695 = vmatpush1.xpose.msra.mxu0 0.0
    %1696 = vmatprep.subr.mxu0 0.0
    %1697 = vmatpush1.xpose.msra.mxu0 0.0
    %1698 = vmatprep.subr.mxu0 0.0
    %1699 = vmatpush1.xpose.msra.mxu0 0.0
    %1700 = vmatprep.subr.mxu0 0.0
    %1701 = vmatpush1.xpose.msra.mxu0 %v1672
    %1702 = vmatprep.subr.mxu0 0.0
    %1703 = vmatpush1.xpose.msra.mxu0 %v1669
    %1704 = vmatprep.subr.mxu0 0.0
    %1705 = vmatpush1.xpose.msra.mxu0 %v1666
    %1706 = vmatprep.subr.mxu0 0.0
    %1707 = vmatpush2.xpose.msra.mxu0 0.0
    %1708 = vmatprep.subr.mxu0 0.0
    %1709 = vmatpush2.xpose.msra.mxu0 0.0
    %1710 = vmatprep.subr.mxu0 0.0
    %1711 = vmatpush2.xpose.msra.mxu0 0.0
    %1712 = vmatprep.subr.mxu0 0.0
    %1713 = vmatpush2.xpose.msra.mxu0 0.0
    %1714 = vmatprep.subr.mxu0 0.0
    %1715 = vmatpush2.xpose.msra.mxu0 0.0
    %1716 = vmatprep.subr.mxu0 0.0
    %1717 = vmatpush2.xpose.msra.mxu0 0.0
    %1718 = vmatprep.subr.mxu0 0.0
    %1719 = vmatpush2.xpose.msra.mxu0 0.0
    %1720 = vmatprep.subr.mxu0 0.0
    %1721 = vmatpush2.xpose.msra.mxu0 0.0
    %1722 = vmatprep.subr.mxu0 0.0
    %1723 = vmatpush2.xpose.msra.mxu0 0.0
    %1724 = vmatprep.subr.mxu0 0.0
    %1725 = vmatpush2.xpose.msra.mxu0 0.0
    %1726 = vmatprep.subr.mxu0 0.0
    %1727 = vmatpush2.xpose.msra.mxu0 0.0
    %1728 = vmatprep.subr.mxu0 0.0
    %1729 = vmatpush2.xpose.msra.mxu0 0.0
    %1730 = vmatprep.subr.mxu0 0.0
    %1731 = vmatpush2.xpose.msra.mxu0 0.0
    %1732 = vmatprep.subr.mxu0 0.0
    %1733 = vmatpush2.xpose.msra.mxu0 0.0
    %1734 = vmatprep.subr.mxu0 0.0
    %1735 = vmatpush2.xpose.msra.mxu0 0.0
    %1736 = vmatprep.subr.mxu0 0.0
    %1737 = vmatpush2.xpose.msra.mxu0 0.0
    %1738 = vmatprep.mubr.f32.mxu0 0.0
    %1739 = vmatmul.mubr.f32.gmra.mxu0 %v1660
    %v1740 = vpop.f32.mrf.mxu0
    %v1741 = vadd.f32 0.0, %v1740
    %v1742 = vpop.f32.mrf.mxu0
    %1743 = vmatprep.mubr.f32.mxu0 0.0
    %1744 = vmatmul.mubr.f32.gmra.mxu0 %v1663
    %v1745 = vpop.f32.mrf.mxu0
    %v1746 = vadd.f32 0.0, %v1745
    %v1747 = vpop.f32.mrf.mxu0
    %1748 = vdwg.mxu0
    %1749 = vrot.lane.b32.xlu0 %v1651, 120
    %v1750 = vpop.permute.xlu0 %1749
    %1751 = vrot.lane.b32.xlu0 %v1656, 120
    %v1752 = vpop.permute.xlu0 %1751
    %1753 = vrot.lane.b32.xlu0 %v1325, 120
    %v1754 = vpop.permute.xlu0 %1753
    %1755 = vrot.lane.b32.xlu0 %v1330, 120
    %v1756 = vpop.permute.xlu0 %1755
    %1757 = vrot.lane.b32.xlu0 %v1335, 120
    %v1758 = vpop.permute.xlu0 %1757
    %v1759 = vsel %vm365, %v1750, 0
    %v1761 = vsel %vm365, %v1752, 0
    %v1763 = vsel %vm365, %v1754, 0
    %v1765 = vsel %vm365, %v1756, 0
    %v1767 = vsel %vm365, %v1758, 0
    %1769 = vmatprep.subr.mxu0 0.0
    %1770 = vmatpush1.xpose.msra.mxu0 0.0
    %1771 = vmatprep.subr.mxu0 0.0
    %1772 = vmatpush1.xpose.msra.mxu0 0.0
    %1773 = vmatprep.subr.mxu0 0.0
    %1774 = vmatpush1.xpose.msra.mxu0 0.0
    %1775 = vmatprep.subr.mxu0 0.0
    %1776 = vmatpush1.xpose.msra.mxu0 0.0
    %1777 = vmatprep.subr.mxu0 0.0
    %1778 = vmatpush1.xpose.msra.mxu0 0.0
    %1779 = vmatprep.subr.mxu0 0.0
    %1780 = vmatpush1.xpose.msra.mxu0 0.0
    %1781 = vmatprep.subr.mxu0 0.0
    %1782 = vmatpush1.xpose.msra.mxu0 0.0
    %1783 = vmatprep.subr.mxu0 0.0
    %1784 = vmatpush1.xpose.msra.mxu0 0.0
    %1785 = vmatprep.subr.mxu0 0.0
    %1786 = vmatpush1.xpose.msra.mxu0 0.0
    %1787 = vmatprep.subr.mxu0 0.0
    %1788 = vmatpush1.xpose.msra.mxu0 0.0
    %1789 = vmatprep.subr.mxu0 0.0
    %1790 = vmatpush1.xpose.msra.mxu0 0.0
    %1791 = vmatprep.subr.mxu0 0.0
    %1792 = vmatpush1.xpose.msra.mxu0 0.0
    %1793 = vmatprep.subr.mxu0 0.0
    %1794 = vmatpush1.xpose.msra.mxu0 0.0
    %1795 = vmatprep.subr.mxu0 0.0
    %1796 = vmatpush1.xpose.msra.mxu0 %v1767
    %1797 = vmatprep.subr.mxu0 0.0
    %1798 = vmatpush1.xpose.msra.mxu0 %v1765
    %1799 = vmatprep.subr.mxu0 0.0
    %1800 = vmatpush1.xpose.msra.mxu0 %v1763
    %1801 = vmatprep.subr.mxu0 0.0
    %1802 = vmatpush2.xpose.msra.mxu0 0.0
    %1803 = vmatprep.subr.mxu0 0.0
    %1804 = vmatpush2.xpose.msra.mxu0 0.0
    %1805 = vmatprep.subr.mxu0 0.0
    %1806 = vmatpush2.xpose.msra.mxu0 0.0
    %1807 = vmatprep.subr.mxu0 0.0
    %1808 = vmatpush2.xpose.msra.mxu0 0.0
    %1809 = vmatprep.subr.mxu0 0.0
    %1810 = vmatpush2.xpose.msra.mxu0 0.0
    %1811 = vmatprep.subr.mxu0 0.0
    %1812 = vmatpush2.xpose.msra.mxu0 0.0
    %1813 = vmatprep.subr.mxu0 0.0
    %1814 = vmatpush2.xpose.msra.mxu0 0.0
    %1815 = vmatprep.subr.mxu0 0.0
    %1816 = vmatpush2.xpose.msra.mxu0 0.0
    %1817 = vmatprep.subr.mxu0 0.0
    %1818 = vmatpush2.xpose.msra.mxu0 0.0
    %1819 = vmatprep.subr.mxu0 0.0
    %1820 = vmatpush2.xpose.msra.mxu0 0.0
    %1821 = vmatprep.subr.mxu0 0.0
    %1822 = vmatpush2.xpose.msra.mxu0 0.0
    %1823 = vmatprep.subr.mxu0 0.0
    %1824 = vmatpush2.xpose.msra.mxu0 0.0
    %1825 = vmatprep.subr.mxu0 0.0
    %1826 = vmatpush2.xpose.msra.mxu0 0.0
    %1827 = vmatprep.subr.mxu0 0.0
    %1828 = vmatpush2.xpose.msra.mxu0 0.0
    %1829 = vmatprep.subr.mxu0 0.0
    %1830 = vmatpush2.xpose.msra.mxu0 0.0
    %1831 = vmatprep.subr.mxu0 0.0
    %1832 = vmatpush2.xpose.msra.mxu0 0.0
    %1833 = vmatprep.mubr.f32.mxu0 0.0
    %1834 = vmatmul.mubr.f32.gmra.mxu0 %v1759
    %v1835 = vpop.f32.mrf.mxu0
    %v1836 = vadd.f32 0.0, %v1835
    %v1837 = vpop.f32.mrf.mxu0
    %1838 = vmatprep.mubr.f32.mxu0 0.0
    %1839 = vmatmul.mubr.f32.gmra.mxu0 %v1761
    %v1840 = vpop.f32.mrf.mxu0
    %v1841 = vadd.f32 0.0, %v1840
    %v1842 = vpop.f32.mrf.mxu0
    %1843 = vdwg.mxu0
    %1844 = vrot.lane.b32.xlu0 %v1651, 112
    %v1845 = vpop.permute.xlu0 %1844
    %1846 = vrot.lane.b32.xlu0 %v1656, 112
    %v1847 = vpop.permute.xlu0 %1846
    %1848 = vrot.lane.b32.xlu0 %v1325, 112
    %v1849 = vpop.permute.xlu0 %1848
    %1850 = vrot.lane.b32.xlu0 %v1330, 112
    %v1851 = vpop.permute.xlu0 %1850
    %1852 = vrot.lane.b32.xlu0 %v1335, 112
    %v1853 = vpop.permute.xlu0 %1852
    %v1854 = vsel %vm365, %v1845, 0
    %v1856 = vsel %vm365, %v1847, 0
    %v1858 = vsel %vm365, %v1849, 0
    %v1860 = vsel %vm365, %v1851, 0
    %v1862 = vsel %vm365, %v1853, 0
    %1864 = vmatprep.subr.mxu0 0.0
    %1865 = vmatpush1.xpose.msra.mxu0 0.0
    %1866 = vmatprep.subr.mxu0 0.0
    %1867 = vmatpush1.xpose.msra.mxu0 0.0
    %1868 = vmatprep.subr.mxu0 0.0
    %1869 = vmatpush1.xpose.msra.mxu0 0.0
    %1870 = vmatprep.subr.mxu0 0.0
    %1871 = vmatpush1.xpose.msra.mxu0 0.0
    %1872 = vmatprep.subr.mxu0 0.0
    %1873 = vmatpush1.xpose.msra.mxu0 0.0
    %1874 = vmatprep.subr.mxu0 0.0
    %1875 = vmatpush1.xpose.msra.mxu0 0.0
    %1876 = vmatprep.subr.mxu0 0.0
    %1877 = vmatpush1.xpose.msra.mxu0 0.0
    %1878 = vmatprep.subr.mxu0 0.0
    %1879 = vmatpush1.xpose.msra.mxu0 0.0
    %1880 = vmatprep.subr.mxu0 0.0
    %1881 = vmatpush1.xpose.msra.mxu0 0.0
    %1882 = vmatprep.subr.mxu0 0.0
    %1883 = vmatpush1.xpose.msra.mxu0 0.0
    %1884 = vmatprep.subr.mxu0 0.0
    %1885 = vmatpush1.xpose.msra.mxu0 0.0
    %1886 = vmatprep.subr.mxu0 0.0
    %1887 = vmatpush1.xpose.msra.mxu0 0.0
    %1888 = vmatprep.subr.mxu0 0.0
    %1889 = vmatpush1.xpose.msra.mxu0 0.0
    %1890 = vmatprep.subr.mxu0 0.0
    %1891 = vmatpush1.xpose.msra.mxu0 %v1862
    %1892 = vmatprep.subr.mxu0 0.0
    %1893 = vmatpush1.xpose.msra.mxu0 %v1860
    %1894 = vmatprep.subr.mxu0 0.0
    %1895 = vmatpush1.xpose.msra.mxu0 %v1858
    %1896 = vmatprep.subr.mxu0 0.0
    %1897 = vmatpush2.xpose.msra.mxu0 0.0
    %1898 = vmatprep.subr.mxu0 0.0
    %1899 = vmatpush2.xpose.msra.mxu0 0.0
    %1900 = vmatprep.subr.mxu0 0.0
    %1901 = vmatpush2.xpose.msra.mxu0 0.0
    %1902 = vmatprep.subr.mxu0 0.0
    %1903 = vmatpush2.xpose.msra.mxu0 0.0
    %1904 = vmatprep.subr.mxu0 0.0
    %1905 = vmatpush2.xpose.msra.mxu0 0.0
    %1906 = vmatprep.subr.mxu0 0.0
    %1907 = vmatpush2.xpose.msra.mxu0 0.0
    %1908 = vmatprep.subr.mxu0 0.0
    %1909 = vmatpush2.xpose.msra.mxu0 0.0
    %1910 = vmatprep.subr.mxu0 0.0
    %1911 = vmatpush2.xpose.msra.mxu0 0.0
    %1912 = vmatprep.subr.mxu0 0.0
    %1913 = vmatpush2.xpose.msra.mxu0 0.0
    %1914 = vmatprep.subr.mxu0 0.0
    %1915 = vmatpush2.xpose.msra.mxu0 0.0
    %1916 = vmatprep.subr.mxu0 0.0
    %1917 = vmatpush2.xpose.msra.mxu0 0.0
    %1918 = vmatprep.subr.mxu0 0.0
    %1919 = vmatpush2.xpose.msra.mxu0 0.0
    %1920 = vmatprep.subr.mxu0 0.0
    %1921 = vmatpush2.xpose.msra.mxu0 0.0
    %1922 = vmatprep.subr.mxu0 0.0
    %1923 = vmatpush2.xpose.msra.mxu0 0.0
    %1924 = vmatprep.subr.mxu0 0.0
    %1925 = vmatpush2.xpose.msra.mxu0 0.0
    %1926 = vmatprep.subr.mxu0 0.0
    %1927 = vmatpush2.xpose.msra.mxu0 0.0
    %1928 = vmatprep.mubr.f32.mxu0 0.0
    %1929 = vmatmul.mubr.f32.gmra.mxu0 %v1854
    %v1930 = vpop.f32.mrf.mxu0
    %v1931 = vadd.f32 0.0, %v1930
    %v1932 = vpop.f32.mrf.mxu0
    %1933 = vmatprep.mubr.f32.mxu0 0.0
    %1934 = vmatmul.mubr.f32.gmra.mxu0 %v1856
    %v1935 = vpop.f32.mrf.mxu0
    %v1936 = vadd.f32 0.0, %v1935
    %v1937 = vpop.f32.mrf.mxu0
    %1938 = vdwg.mxu0
    %1939 = vrot.lane.b32.xlu0 %v1651, 104
    %v1940 = vpop.permute.xlu0 %1939
    %1941 = vrot.lane.b32.xlu0 %v1656, 104
    %v1942 = vpop.permute.xlu0 %1941
    %1943 = vrot.lane.b32.xlu0 %v1325, 104
    %v1944 = vpop.permute.xlu0 %1943
    %1945 = vrot.lane.b32.xlu0 %v1330, 104
    %v1946 = vpop.permute.xlu0 %1945
    %1947 = vrot.lane.b32.xlu0 %v1335, 104
    %v1948 = vpop.permute.xlu0 %1947
    %v1949 = vsel %vm365, %v1940, 0
    %v1951 = vsel %vm365, %v1942, 0
    %v1953 = vsel %vm365, %v1944, 0
    %v1955 = vsel %vm365, %v1946, 0
    %v1957 = vsel %vm365, %v1948, 0
    %1959 = vmatprep.subr.mxu0 0.0
    %1960 = vmatpush1.xpose.msra.mxu0 0.0
    %1961 = vmatprep.subr.mxu0 0.0
    %1962 = vmatpush1.xpose.msra.mxu0 0.0
    %1963 = vmatprep.subr.mxu0 0.0
    %1964 = vmatpush1.xpose.msra.mxu0 0.0
    %1965 = vmatprep.subr.mxu0 0.0
    %1966 = vmatpush1.xpose.msra.mxu0 0.0
    %1967 = vmatprep.subr.mxu0 0.0
    %1968 = vmatpush1.xpose.msra.mxu0 0.0
    %1969 = vmatprep.subr.mxu0 0.0
    %1970 = vmatpush1.xpose.msra.mxu0 0.0
    %1971 = vmatprep.subr.mxu0 0.0
    %1972 = vmatpush1.xpose.msra.mxu0 0.0
    %1973 = vmatprep.subr.mxu0 0.0
    %1974 = vmatpush1.xpose.msra.mxu0 0.0
    %1975 = vmatprep.subr.mxu0 0.0
    %1976 = vmatpush1.xpose.msra.mxu0 0.0
    %1977 = vmatprep.subr.mxu0 0.0
    %1978 = vmatpush1.xpose.msra.mxu0 0.0
    %1979 = vmatprep.subr.mxu0 0.0
    %1980 = vmatpush1.xpose.msra.mxu0 0.0
    %1981 = vmatprep.subr.mxu0 0.0
    %1982 = vmatpush1.xpose.msra.mxu0 0.0
    %1983 = vmatprep.subr.mxu0 0.0
    %1984 = vmatpush1.xpose.msra.mxu0 0.0
    %1985 = vmatprep.subr.mxu0 0.0
    %1986 = vmatpush1.xpose.msra.mxu0 %v1957
    %1987 = vmatprep.subr.mxu0 0.0
    %1988 = vmatpush1.xpose.msra.mxu0 %v1955
    %1989 = vmatprep.subr.mxu0 0.0
    %1990 = vmatpush1.xpose.msra.mxu0 %v1953
    %1991 = vmatprep.subr.mxu0 0.0
    %1992 = vmatpush2.xpose.msra.mxu0 0.0
    %1993 = vmatprep.subr.mxu0 0.0
    %1994 = vmatpush2.xpose.msra.mxu0 0.0
    %1995 = vmatprep.subr.mxu0 0.0
    %1996 = vmatpush2.xpose.msra.mxu0 0.0
    %1997 = vmatprep.subr.mxu0 0.0
    %1998 = vmatpush2.xpose.msra.mxu0 0.0
    %1999 = vmatprep.subr.mxu0 0.0
    %2000 = vmatpush2.xpose.msra.mxu0 0.0
    %2001 = vmatprep.subr.mxu0 0.0
    %2002 = vmatpush2.xpose.msra.mxu0 0.0
    %2003 = vmatprep.subr.mxu0 0.0
    %2004 = vmatpush2.xpose.msra.mxu0 0.0
    %2005 = vmatprep.subr.mxu0 0.0
    %2006 = vmatpush2.xpose.msra.mxu0 0.0
    %2007 = vmatprep.subr.mxu0 0.0
    %2008 = vmatpush2.xpose.msra.mxu0 0.0
    %2009 = vmatprep.subr.mxu0 0.0
    %2010 = vmatpush2.xpose.msra.mxu0 0.0
    %2011 = vmatprep.subr.mxu0 0.0
    %2012 = vmatpush2.xpose.msra.mxu0 0.0
    %2013 = vmatprep.subr.mxu0 0.0
    %2014 = vmatpush2.xpose.msra.mxu0 0.0
    %2015 = vmatprep.subr.mxu0 0.0
    %2016 = vmatpush2.xpose.msra.mxu0 0.0
    %2017 = vmatprep.subr.mxu0 0.0
    %2018 = vmatpush2.xpose.msra.mxu0 0.0
    %2019 = vmatprep.subr.mxu0 0.0
    %2020 = vmatpush2.xpose.msra.mxu0 0.0
    %2021 = vmatprep.subr.mxu0 0.0
    %2022 = vmatpush2.xpose.msra.mxu0 0.0
    %2023 = vmatprep.mubr.f32.mxu0 0.0
    %2024 = vmatmul.mubr.f32.gmra.mxu0 %v1949
    %v2025 = vpop.f32.mrf.mxu0
    %v2026 = vadd.f32 0.0, %v2025
    %v2027 = vpop.f32.mrf.mxu0
    %2028 = vmatprep.mubr.f32.mxu0 0.0
    %2029 = vmatmul.mubr.f32.gmra.mxu0 %v1951
    %v2030 = vpop.f32.mrf.mxu0
    %v2031 = vadd.f32 0.0, %v2030
    %v2032 = vpop.f32.mrf.mxu0
    %2033 = vdwg.mxu0
    %v2034 = vadd.f32 %v1741, %v165
    %v2035 = vadd.f32 %v1746, %v166
    %v2036 = vadd.f32 %v1836, %v167
    %v2037 = vadd.f32 %v1841, %v168
    %v2038 = vadd.f32 %v1931, %v169
    %v2039 = vadd.f32 %v1936, %v170
    %v2040 = vadd.f32 %v2026, %v171
    %v2041 = vadd.f32 %v2031, %v172
    %vm2042 = vcmask 195584
    %v2043 = vsel %vm2042, %v2034, -inf
    %2044 = vmax.xlane.f32.xlu0 %v2043
    %v2045 = vpop.xlane.xlu0 %2044
    %v2046 = vsel %vm2042, %v2035, -inf
    %2047 = vmax.xlane.f32.xlu0 %v2046
    %v2048 = vpop.xlane.xlu0 %2047
    %v2049 = vsel %vm2042, %v2036, -inf
    %2050 = vmax.xlane.f32.xlu0 %v2049
    %v2051 = vpop.xlane.xlu0 %2050
    %v2052 = vsel %vm2042, %v2037, -inf
    %2053 = vmax.xlane.f32.xlu0 %v2052
    %v2054 = vpop.xlane.xlu0 %2053
    %v2055 = vsel %vm2042, %v2038, -inf
    %2056 = vmax.xlane.f32.xlu0 %v2055
    %v2057 = vpop.xlane.xlu0 %2056
    %v2058 = vsel %vm2042, %v2039, -inf
    %2059 = vmax.xlane.f32.xlu0 %v2058
    %v2060 = vpop.xlane.xlu0 %2059
    %v2061 = vsel %vm2042, %v2040, -inf
    %2062 = vmax.xlane.f32.xlu0 %v2061
    %v2063 = vpop.xlane.xlu0 %2062
    %v2064 = vsel %vm2042, %v2041, -inf
    %2065 = vmax.xlane.f32.xlu0 %v2064
    %v2066 = vpop.xlane.xlu0 %2065
    %v2067 = vsub.f32 %v2034, %v2045
    %v2068 = vsub.f32 %v2035, %v2048
    %v2069 = vsub.f32 %v2036, %v2051
    %v2070 = vsub.f32 %v2037, %v2054
    %v2071 = vsub.f32 %v2038, %v2057
    %v2072 = vsub.f32 %v2039, %v2060
    %v2073 = vsub.f32 %v2040, %v2063
    %v2074 = vsub.f32 %v2041, %v2066
    %v2075 = vmul.f32 %v2067, 1.442695
    %v2076 = vpow.pop %v2075
    %v2077 = vmul.f32 %v2068, 1.442695
    %v2078 = vpow.pop %v2077
    %v2079 = vmul.f32 %v2069, 1.442695
    %v2080 = vpow.pop %v2079
    %v2081 = vmul.f32 %v2070, 1.442695
    %v2082 = vpow.pop %v2081
    %v2083 = vmul.f32 %v2071, 1.442695
    %v2084 = vpow.pop %v2083
    %v2085 = vmul.f32 %v2072, 1.442695
    %v2086 = vpow.pop %v2085
    %v2087 = vmul.f32 %v2073, 1.442695
    %v2088 = vpow.pop %v2087
    %v2089 = vmul.f32 %v2074, 1.442695
    %v2090 = vpow.pop %v2089
    %v2091 = vsel %vm2042, %v2076, 0.0
    %2092 = vadd.xlane.f32.xlu0 %v2091
    %v2093 = vpop.xlane.xlu0 %2092
    %v2094 = vsel %vm2042, %v2078, 0.0
    %2095 = vadd.xlane.f32.xlu0 %v2094
    %v2096 = vpop.xlane.xlu0 %2095
    %v2097 = vsel %vm2042, %v2080, 0.0
    %2098 = vadd.xlane.f32.xlu0 %v2097
    %v2099 = vpop.xlane.xlu0 %2098
    %v2100 = vsel %vm2042, %v2082, 0.0
    %2101 = vadd.xlane.f32.xlu0 %v2100
    %v2102 = vpop.xlane.xlu0 %2101
    %v2103 = vsel %vm2042, %v2084, 0.0
    %2104 = vadd.xlane.f32.xlu0 %v2103
    %v2105 = vpop.xlane.xlu0 %2104
    %v2106 = vsel %vm2042, %v2086, 0.0
    %2107 = vadd.xlane.f32.xlu0 %v2106
    %v2108 = vpop.xlane.xlu0 %2107
    %v2109 = vsel %vm2042, %v2088, 0.0
    %2110 = vadd.xlane.f32.xlu0 %v2109
    %v2111 = vpop.xlane.xlu0 %2110
    %v2112 = vsel %vm2042, %v2090, 0.0
    %2113 = vadd.xlane.f32.xlu0 %v2112
    %v2114 = vpop.xlane.xlu0 %2113
    %v2115 = vrcp.pop %v2093
    %v2116 = vmul.f32 %v2076, %v2115
    %v2117 = vrcp.pop %v2096
    %v2118 = vmul.f32 %v2078, %v2117
    %v2119 = vrcp.pop %v2099
    %v2120 = vmul.f32 %v2080, %v2119
    %v2121 = vrcp.pop %v2102
    %v2122 = vmul.f32 %v2082, %v2121
    %v2123 = vrcp.pop %v2105
    %v2124 = vmul.f32 %v2084, %v2123
    %v2125 = vrcp.pop %v2108
    %v2126 = vmul.f32 %v2086, %v2125
    %v2127 = vrcp.pop %v2111
    %v2128 = vmul.f32 %v2088, %v2127
    %v2129 = vrcp.pop %v2114
    %v2130 = vmul.f32 %v2090, %v2129
    %2134 = vrot.lane.b32.xlu0 %v1539, 96
    %v2135 = vpop.permute.xlu0 %2134
    %2136 = vrot.lane.b32.xlu0 %v1545, 96
    %v2137 = vpop.permute.xlu0 %2136
    %2138 = vrot.lane.b32.xlu0 %v1551, 96
    %v2139 = vpop.permute.xlu0 %2138
    %v2144 = vsel %vm2042, %v2120, 0
    %v2147 = vsel %vm2042, %v2122, 0
    %2149 = vmatprep.subr.mxu0 0.0
    %2150 = vmatpush1.msra.mxu0 0.0
    %2151 = vmatprep.subr.mxu0 0.0
    %2152 = vmatpush1.msra.mxu0 0.0
    %2153 = vmatprep.subr.mxu0 0.0
    %2154 = vmatpush1.msra.mxu0 0.0
    %2155 = vmatprep.subr.mxu0 0.0
    %2156 = vmatpush1.msra.mxu0 0.0
    %2157 = vmatprep.subr.mxu0 0.0
    %2158 = vmatpush1.msra.mxu0 0.0
    %2159 = vmatprep.subr.mxu0 0.0
    %2160 = vmatpush1.msra.mxu0 0.0
    %2161 = vmatprep.subr.mxu0 0.0
    %2162 = vmatpush1.msra.mxu0 0.0
    %2163 = vmatprep.subr.mxu0 0.0
    %2164 = vmatpush1.msra.mxu0 0.0
    %2165 = vmatprep.subr.mxu0 0.0
    %2166 = vmatpush1.msra.mxu0 0.0
    %2167 = vmatprep.subr.mxu0 0.0
    %2168 = vmatpush1.msra.mxu0 0.0
    %2169 = vmatprep.subr.mxu0 0.0
    %2170 = vmatpush1.msra.mxu0 0.0
    %2171 = vmatprep.subr.mxu0 0.0
    %2172 = vmatpush1.msra.mxu0 0.0
    %2173 = vmatprep.subr.mxu0 0.0
    %2174 = vmatpush1.msra.mxu0 0.0
    %2175 = vmatprep.subr.mxu0 0.0
    %2176 = vmatpush1.msra.mxu0 %v2139
    %2177 = vmatprep.subr.mxu0 0.0
    %2178 = vmatpush1.msra.mxu0 %v2137
    %2179 = vmatprep.subr.mxu0 0.0
    %2180 = vmatpush1.msra.mxu0 %v2135
    %2181 = vmatprep.subr.mxu0 0.0
    %2182 = vmatpush2.msra.mxu0 0.0
    %2183 = vmatprep.subr.mxu0 0.0
    %2184 = vmatpush2.msra.mxu0 0.0
    %2185 = vmatprep.subr.mxu0 0.0
    %2186 = vmatpush2.msra.mxu0 0.0
    %2187 = vmatprep.subr.mxu0 0.0
    %2188 = vmatpush2.msra.mxu0 0.0
    %2189 = vmatprep.subr.mxu0 0.0
    %2190 = vmatpush2.msra.mxu0 0.0
    %2191 = vmatprep.subr.mxu0 0.0
    %2192 = vmatpush2.msra.mxu0 0.0
    %2193 = vmatprep.subr.mxu0 0.0
    %2194 = vmatpush2.msra.mxu0 0.0
    %2195 = vmatprep.subr.mxu0 0.0
    %2196 = vmatpush2.msra.mxu0 0.0
    %2197 = vmatprep.subr.mxu0 0.0
    %2198 = vmatpush2.msra.mxu0 0.0
    %2199 = vmatprep.subr.mxu0 0.0
    %2200 = vmatpush2.msra.mxu0 0.0
    %2201 = vmatprep.subr.mxu0 0.0
    %2202 = vmatpush2.msra.mxu0 0.0
    %2203 = vmatprep.subr.mxu0 0.0
    %2204 = vmatpush2.msra.mxu0 0.0
    %2205 = vmatprep.subr.mxu0 0.0
    %2206 = vmatpush2.msra.mxu0 0.0
    %2207 = vmatprep.subr.mxu0 0.0
    %2208 = vmatpush2.msra.mxu0 0.0
    %2209 = vmatprep.subr.mxu0 0.0
    %2210 = vmatpush2.msra.mxu0 0.0
    %2211 = vmatprep.subr.mxu0 0.0
    %2212 = vmatpush2.msra.mxu0 0.0
    %2213 = vmatprep.mubr.f32.mxu0 0.0
    %2214 = vmatmul.mubr.f32.gmra.mxu0 %v2144
    %v2215 = vpop.f32.mrf.mxu0
    %v2216 = vadd.f32 0.0, %v2215
    %v2217 = vpop.f32.mrf.mxu0
    %2218 = vmatprep.mubr.f32.mxu0 0.0
    %2219 = vmatmul.mubr.f32.gmra.mxu0 %v2147
    %v2220 = vpop.f32.mrf.mxu0
    %v2221 = vadd.f32 0.0, %v2220
    %v2222 = vpop.f32.mrf.mxu0
    %2223 = vdwg.mxu0
    %v2225 = vsel %vm2042, %v2116, 0
    %v2228 = vsel %vm2042, %v2118, 0
    %2230 = vmatprep.subr.mxu0 0.0
    %2231 = vmatpush1.msra.mxu0 0.0
    %2232 = vmatprep.subr.mxu0 0.0
    %2233 = vmatpush1.msra.mxu0 0.0
    %2234 = vmatprep.subr.mxu0 0.0
    %2235 = vmatpush1.msra.mxu0 0.0
    %2236 = vmatprep.subr.mxu0 0.0
    %2237 = vmatpush1.msra.mxu0 0.0
    %2238 = vmatprep.subr.mxu0 0.0
    %2239 = vmatpush1.msra.mxu0 0.0
    %2240 = vmatprep.subr.mxu0 0.0
    %2241 = vmatpush1.msra.mxu0 0.0
    %2242 = vmatprep.subr.mxu0 0.0
    %2243 = vmatpush1.msra.mxu0 0.0
    %2244 = vmatprep.subr.mxu0 0.0
    %2245 = vmatpush1.msra.mxu0 0.0
    %2246 = vmatprep.subr.mxu0 0.0
    %2247 = vmatpush1.msra.mxu0 0.0
    %2248 = vmatprep.subr.mxu0 0.0
    %2249 = vmatpush1.msra.mxu0 0.0
    %2250 = vmatprep.subr.mxu0 0.0
    %2251 = vmatpush1.msra.mxu0 0.0
    %2252 = vmatprep.subr.mxu0 0.0
    %2253 = vmatpush1.msra.mxu0 0.0
    %2254 = vmatprep.subr.mxu0 0.0
    %2255 = vmatpush1.msra.mxu0 0.0
    %2256 = vmatprep.subr.mxu0 0.0
    %2257 = vmatpush1.msra.mxu0 %v1551
    %2258 = vmatprep.subr.mxu0 0.0
    %2259 = vmatpush1.msra.mxu0 %v1545
    %2260 = vmatprep.subr.mxu0 0.0
    %2261 = vmatpush1.msra.mxu0 %v1539
    %2262 = vmatprep.subr.mxu0 0.0
    %2263 = vmatpush2.msra.mxu0 0.0
    %2264 = vmatprep.subr.mxu0 0.0
    %2265 = vmatpush2.msra.mxu0 0.0
    %2266 = vmatprep.subr.mxu0 0.0
    %2267 = vmatpush2.msra.mxu0 0.0
    %2268 = vmatprep.subr.mxu0 0.0
    %2269 = vmatpush2.msra.mxu0 0.0
    %2270 = vmatprep.subr.mxu0 0.0
    %2271 = vmatpush2.msra.mxu0 0.0
    %2272 = vmatprep.subr.mxu0 0.0
    %2273 = vmatpush2.msra.mxu0 0.0
    %2274 = vmatprep.subr.mxu0 0.0
    %2275 = vmatpush2.msra.mxu0 0.0
    %2276 = vmatprep.subr.mxu0 0.0
    %2277 = vmatpush2.msra.mxu0 0.0
    %2278 = vmatprep.subr.mxu0 0.0
    %2279 = vmatpush2.msra.mxu0 0.0
    %2280 = vmatprep.subr.mxu0 0.0
    %2281 = vmatpush2.msra.mxu0 0.0
    %2282 = vmatprep.subr.mxu0 0.0
    %2283 = vmatpush2.msra.mxu0 0.0
    %2284 = vmatprep.subr.mxu0 0.0
    %2285 = vmatpush2.msra.mxu0 0.0
    %2286 = vmatprep.subr.mxu0 0.0
    %2287 = vmatpush2.msra.mxu0 0.0
    %2288 = vmatprep.subr.mxu0 0.0
    %2289 = vmatpush2.msra.mxu0 0.0
    %2290 = vmatprep.subr.mxu0 0.0
    %2291 = vmatpush2.msra.mxu0 0.0
    %2292 = vmatprep.subr.mxu0 0.0
    %2293 = vmatpush2.msra.mxu0 0.0
    %2294 = vmatprep.mubr.f32.mxu0 0.0
    %2295 = vmatmul.mubr.f32.gmra.mxu0 %v2225
    %v2296 = vpop.f32.mrf.mxu0
    %v2297 = vadd.f32 %v2216, %v2296
    %v2298 = vpop.f32.mrf.mxu0
    %2299 = vmatprep.mubr.f32.mxu0 0.0
    %2300 = vmatmul.mubr.f32.gmra.mxu0 %v2228
    %v2301 = vpop.f32.mrf.mxu0
    %v2302 = vadd.f32 %v2221, %v2301
    %v2303 = vpop.f32.mrf.mxu0
    %2304 = vdwg.mxu0
    %2305 = vrot.lane.b32.xlu0 %v1539, 64
    %v2306 = vpop.permute.xlu0 %2305
    %2307 = vrot.lane.b32.xlu0 %v1545, 64
    %v2308 = vpop.permute.xlu0 %2307
    %2309 = vrot.lane.b32.xlu0 %v1551, 64
    %v2310 = vpop.permute.xlu0 %2309
    %v2315 = vsel %vm2042, %v2124, 0
    %v2318 = vsel %vm2042, %v2126, 0
    %2320 = vmatprep.subr.mxu0 0.0
    %2321 = vmatpush1.msra.mxu0 0.0
    %2322 = vmatprep.subr.mxu0 0.0
    %2323 = vmatpush1.msra.mxu0 0.0
    %2324 = vmatprep.subr.mxu0 0.0
    %2325 = vmatpush1.msra.mxu0 0.0
    %2326 = vmatprep.subr.mxu0 0.0
    %2327 = vmatpush1.msra.mxu0 0.0
    %2328 = vmatprep.subr.mxu0 0.0
    %2329 = vmatpush1.msra.mxu0 0.0
    %2330 = vmatprep.subr.mxu0 0.0
    %2331 = vmatpush1.msra.mxu0 0.0
    %2332 = vmatprep.subr.mxu0 0.0
    %2333 = vmatpush1.msra.mxu0 0.0
    %2334 = vmatprep.subr.mxu0 0.0
    %2335 = vmatpush1.msra.mxu0 0.0
    %2336 = vmatprep.subr.mxu0 0.0
    %2337 = vmatpush1.msra.mxu0 0.0
    %2338 = vmatprep.subr.mxu0 0.0
    %2339 = vmatpush1.msra.mxu0 0.0
    %2340 = vmatprep.subr.mxu0 0.0
    %2341 = vmatpush1.msra.mxu0 0.0
    %2342 = vmatprep.subr.mxu0 0.0
    %2343 = vmatpush1.msra.mxu0 0.0
    %2344 = vmatprep.subr.mxu0 0.0
    %2345 = vmatpush1.msra.mxu0 0.0
    %2346 = vmatprep.subr.mxu0 0.0
    %2347 = vmatpush1.msra.mxu0 %v2310
    %2348 = vmatprep.subr.mxu0 0.0
    %2349 = vmatpush1.msra.mxu0 %v2308
    %2350 = vmatprep.subr.mxu0 0.0
    %2351 = vmatpush1.msra.mxu0 %v2306
    %2352 = vmatprep.subr.mxu0 0.0
    %2353 = vmatpush2.msra.mxu0 0.0
    %2354 = vmatprep.subr.mxu0 0.0
    %2355 = vmatpush2.msra.mxu0 0.0
    %2356 = vmatprep.subr.mxu0 0.0
    %2357 = vmatpush2.msra.mxu0 0.0
    %2358 = vmatprep.subr.mxu0 0.0
    %2359 = vmatpush2.msra.mxu0 0.0
    %2360 = vmatprep.subr.mxu0 0.0
    %2361 = vmatpush2.msra.mxu0 0.0
    %2362 = vmatprep.subr.mxu0 0.0
    %2363 = vmatpush2.msra.mxu0 0.0
    %2364 = vmatprep.subr.mxu0 0.0
    %2365 = vmatpush2.msra.mxu0 0.0
    %2366 = vmatprep.subr.mxu0 0.0
    %2367 = vmatpush2.msra.mxu0 0.0
    %2368 = vmatprep.subr.mxu0 0.0
    %2369 = vmatpush2.msra.mxu0 0.0
    %2370 = vmatprep.subr.mxu0 0.0
    %2371 = vmatpush2.msra.mxu0 0.0
    %2372 = vmatprep.subr.mxu0 0.0
    %2373 = vmatpush2.msra.mxu0 0.0
    %2374 = vmatprep.subr.mxu0 0.0
    %2375 = vmatpush2.msra.mxu0 0.0
    %2376 = vmatprep.subr.mxu0 0.0
    %2377 = vmatpush2.msra.mxu0 0.0
    %2378 = vmatprep.subr.mxu0 0.0
    %2379 = vmatpush2.msra.mxu0 0.0
    %2380 = vmatprep.subr.mxu0 0.0
    %2381 = vmatpush2.msra.mxu0 0.0
    %2382 = vmatprep.subr.mxu0 0.0
    %2383 = vmatpush2.msra.mxu0 0.0
    %2384 = vmatprep.mubr.f32.mxu0 0.0
    %2385 = vmatmul.mubr.f32.gmra.mxu0 %v2315
    %v2386 = vpop.f32.mrf.mxu0
    %v2387 = vadd.f32 0.0, %v2386
    %v2388 = vpop.f32.mrf.mxu0
    %2389 = vmatprep.mubr.f32.mxu0 0.0
    %2390 = vmatmul.mubr.f32.gmra.mxu0 %v2318
    %v2391 = vpop.f32.mrf.mxu0
    %v2392 = vadd.f32 0.0, %v2391
    %v2393 = vpop.f32.mrf.mxu0
    %2394 = vdwg.mxu0
    %v2395 = vadd.f32 %v2297, %v2387
    %v2396 = vadd.f32 %v2302, %v2392
    %2397 = vrot.lane.b32.xlu0 %v1539, 32
    %v2398 = vpop.permute.xlu0 %2397
    %2399 = vrot.lane.b32.xlu0 %v1545, 32
    %v2400 = vpop.permute.xlu0 %2399
    %2401 = vrot.lane.b32.xlu0 %v1551, 32
    %v2402 = vpop.permute.xlu0 %2401
    %v2407 = vsel %vm2042, %v2128, 0
    %v2410 = vsel %vm2042, %v2130, 0
    %2412 = vmatprep.subr.mxu0 0.0
    %2413 = vmatpush1.msra.mxu0 0.0
    %2414 = vmatprep.subr.mxu0 0.0
    %2415 = vmatpush1.msra.mxu0 0.0
    %2416 = vmatprep.subr.mxu0 0.0
    %2417 = vmatpush1.msra.mxu0 0.0
    %2418 = vmatprep.subr.mxu0 0.0
    %2419 = vmatpush1.msra.mxu0 0.0
    %2420 = vmatprep.subr.mxu0 0.0
    %2421 = vmatpush1.msra.mxu0 0.0
    %2422 = vmatprep.subr.mxu0 0.0
    %2423 = vmatpush1.msra.mxu0 0.0
    %2424 = vmatprep.subr.mxu0 0.0
    %2425 = vmatpush1.msra.mxu0 0.0
    %2426 = vmatprep.subr.mxu0 0.0
    %2427 = vmatpush1.msra.mxu0 0.0
    %2428 = vmatprep.subr.mxu0 0.0
    %2429 = vmatpush1.msra.mxu0 0.0
    %2430 = vmatprep.subr.mxu0 0.0
    %2431 = vmatpush1.msra.mxu0 0.0
    %2432 = vmatprep.subr.mxu0 0.0
    %2433 = vmatpush1.msra.mxu0 0.0
    %2434 = vmatprep.subr.mxu0 0.0
    %2435 = vmatpush1.msra.mxu0 0.0
    %2436 = vmatprep.subr.mxu0 0.0
    %2437 = vmatpush1.msra.mxu0 0.0
    %2438 = vmatprep.subr.mxu0 0.0
    %2439 = vmatpush1.msra.mxu0 %v2402
    %2440 = vmatprep.subr.mxu0 0.0
    %2441 = vmatpush1.msra.mxu0 %v2400
    %2442 = vmatprep.subr.mxu0 0.0
    %2443 = vmatpush1.msra.mxu0 %v2398
    %2444 = vmatprep.subr.mxu0 0.0
    %2445 = vmatpush2.msra.mxu0 0.0
    %2446 = vmatprep.subr.mxu0 0.0
    %2447 = vmatpush2.msra.mxu0 0.0
    %2448 = vmatprep.subr.mxu0 0.0
    %2449 = vmatpush2.msra.mxu0 0.0
    %2450 = vmatprep.subr.mxu0 0.0
    %2451 = vmatpush2.msra.mxu0 0.0
    %2452 = vmatprep.subr.mxu0 0.0
    %2453 = vmatpush2.msra.mxu0 0.0
    %2454 = vmatprep.subr.mxu0 0.0
    %2455 = vmatpush2.msra.mxu0 0.0
    %2456 = vmatprep.subr.mxu0 0.0
    %2457 = vmatpush2.msra.mxu0 0.0
    %2458 = vmatprep.subr.mxu0 0.0
    %2459 = vmatpush2.msra.mxu0 0.0
    %2460 = vmatprep.subr.mxu0 0.0
    %2461 = vmatpush2.msra.mxu0 0.0
    %2462 = vmatprep.subr.mxu0 0.0
    %2463 = vmatpush2.msra.mxu0 0.0
    %2464 = vmatprep.subr.mxu0 0.0
    %2465 = vmatpush2.msra.mxu0 0.0
    %2466 = vmatprep.subr.mxu0 0.0
    %2467 = vmatpush2.msra.mxu0 0.0
    %2468 = vmatprep.subr.mxu0 0.0
    %2469 = vmatpush2.msra.mxu0 0.0
    %2470 = vmatprep.subr.mxu0 0.0
    %2471 = vmatpush2.msra.mxu0 0.0
    %2472 = vmatprep.subr.mxu0 0.0
    %2473 = vmatpush2.msra.mxu0 0.0
    %2474 = vmatprep.subr.mxu0 0.0
    %2475 = vmatpush2.msra.mxu0 0.0
    %2476 = vmatprep.mubr.f32.mxu0 0.0
    %2477 = vmatmul.mubr.f32.gmra.mxu0 %v2407
    %v2478 = vpop.f32.mrf.mxu0
    %v2479 = vadd.f32 0.0, %v2478
    %v2480 = vpop.f32.mrf.mxu0
    %2481 = vmatprep.mubr.f32.mxu0 0.0
    %2482 = vmatmul.mubr.f32.gmra.mxu0 %v2410
    %v2483 = vpop.f32.mrf.mxu0
    %v2484 = vadd.f32 0.0, %v2483
    %v2485 = vpop.f32.mrf.mxu0
    %2486 = vdwg.mxu0
    %v2487 = vadd.f32 %v2395, %v2479
    %v2488 = vadd.f32 %v2396, %v2484
    %v2489 = vld [vmem:[%s4 + $0x4] sm:$0x1]
    %v2490 = vlaneseq
    %v2491 = vshrl.u32 %v2490, 7
    %v2492 = vsub.s32 0, %v2491
    %v2493 = vrot.slane %v2489, %v2492
    %v2494 = vadd.f32 %v2487, %v2493
    %v2495 = vadd.f32 %v2488, %v2493
    %v2496 = vld [vmem:[%s5 + $0x2] sm:$0x1]
    %v2497 = vld [vmem:[%s5 + $0x3] sm:$0x1]
    %v2498 = vadd.f32 %v1215, %v2494
    %v2499 = vadd.f32 %v1216, %v2495
    %v2500 = vsel %vm194, %v2498, 0.0
    %2501 = vadd.xlane.f32.xlu0 %v2500
    %v2502 = vpop.xlane.xlu0 %2501
    %v2503 = vsel %vm194, %v2499, 0.0
    %2504 = vadd.xlane.f32.xlu0 %v2503
    %v2505 = vpop.xlane.xlu0 %2504
    %v2506 = vmul.f32 %v2502, %v1184
    %v2507 = vmul.f32 %v2505, %v1184
    %v2508 = vsub.f32 %v2498, %v2506
    %v2509 = vsub.f32 %v2499, %v2507
    %v2510 = vmul.f32 %v2508, %v2508
    %v2511 = vmul.f32 %v2509, %v2509
    %v2512 = vsel %vm194, %v2510, 0.0
    %2513 = vadd.xlane.f32.xlu0 %v2512
    %v2514 = vpop.xlane.xlu0 %2513
    %v2515 = vsel %vm194, %v2511, 0.0
    %2516 = vadd.xlane.f32.xlu0 %v2515
    %v2517 = vpop.xlane.xlu0 %2516
    %v2518 = vmul.f32 %v2514, %v1184
    %v2519 = vmul.f32 %v2517, %v1184
    %v2520 = vadd.f32 %v2518, 1e-05
    %v2521 = vadd.f32 %v2519, 1e-05
    %v2522 = vrsqrt.pop %v2520
    %v2523 = vrsqrt.pop %v2521
    %v2524 = vmul.f32 %v2508, %v2522
    %v2525 = vmul.f32 %v2509, %v2523
    %v2526 = vlaneseq
    %v2527 = vshrl.u32 %v2526, 7
    %v2528 = vsub.s32 0, %v2527
    %v2529 = vrot.slane %v2496, %v2528
    %v2530 = vmul.f32 %v2524, %v2529
    %v2531 = vmul.f32 %v2525, %v2529
    %v2532 = vlaneseq
    %v2533 = vshrl.u32 %v2532, 7
    %v2534 = vsub.s32 0, %v2533
    %v2535 = vrot.slane %v2497, %v2534
    %v2536 = vadd.f32 %v2530, %v2535
    %v2537 = vadd.f32 %v2531, %v2535
    %v2538 = vadd.f32 %v2536, %v178
    %v2539 = vadd.f32 %v2537, %v180
    %2540 = vrot.lane.b32.xlu0 %v185, 32
    %v2541 = vpop.permute.xlu0 %2540
    %2542 = vrot.lane.b32.xlu0 %v186, 32
    %v2543 = vpop.permute.xlu0 %2542
    %2544 = vrot.lane.b32.xlu0 %v187, 32
    %v2545 = vpop.permute.xlu0 %2544
    %2546 = vrot.lane.b32.xlu0 %v188, 32
    %v2547 = vpop.permute.xlu0 %2546
    %2553 = vrot.lane.b32.xlu0 %v1561, 96
    %v2554 = vpop.permute.xlu0 %2553
    %v2557 = vsel %vm194, %v2538, 0
    %v2560 = vsel %vm194, %v2539, 0
    %2562 = vmatprep.subr.mxu0 0.0
    %2563 = vmatpush1.msra.mxu0 0.0
    %2564 = vmatprep.subr.mxu0 0.0
    %2565 = vmatpush1.msra.mxu0 0.0
    %2566 = vmatprep.subr.mxu0 0.0
    %2567 = vmatpush1.msra.mxu0 0.0
    %2568 = vmatprep.subr.mxu0 0.0
    %2569 = vmatpush1.msra.mxu0 0.0
    %2570 = vmatprep.subr.mxu0 0.0
    %2571 = vmatpush1.msra.mxu0 0.0
    %2572 = vmatprep.subr.mxu0 0.0
    %2573 = vmatpush1.msra.mxu0 0.0
    %2574 = vmatprep.subr.mxu0 0.0
    %2575 = vmatpush1.msra.mxu0 0.0
    %2576 = vmatprep.subr.mxu0 0.0
    %2577 = vmatpush1.msra.mxu0 0.0
    %2578 = vmatprep.subr.mxu0 0.0
    %2579 = vmatpush1.msra.mxu0 0.0
    %2580 = vmatprep.subr.mxu0 0.0
    %2581 = vmatpush1.msra.mxu0 0.0
    %2582 = vmatprep.subr.mxu0 0.0
    %2583 = vmatpush1.msra.mxu0 0.0
    %2584 = vmatprep.subr.mxu0 0.0
    %2585 = vmatpush1.msra.mxu0 0.0
    %2586 = vmatprep.subr.mxu0 0.0
    %2587 = vmatpush1.msra.mxu0 %v2547
    %2588 = vmatprep.subr.mxu0 0.0
    %2589 = vmatpush1.msra.mxu0 %v2545
    %2590 = vmatprep.subr.mxu0 0.0
    %2591 = vmatpush1.msra.mxu0 %v2543
    %2592 = vmatprep.subr.mxu0 0.0
    %2593 = vmatpush1.msra.mxu0 %v2541
    %2594 = vmatprep.subr.mxu0 0.0
    %2595 = vmatpush2.msra.mxu0 0.0
    %2596 = vmatprep.subr.mxu0 0.0
    %2597 = vmatpush2.msra.mxu0 0.0
    %2598 = vmatprep.subr.mxu0 0.0
    %2599 = vmatpush2.msra.mxu0 0.0
    %2600 = vmatprep.subr.mxu0 0.0
    %2601 = vmatpush2.msra.mxu0 0.0
    %2602 = vmatprep.subr.mxu0 0.0
    %2603 = vmatpush2.msra.mxu0 0.0
    %2604 = vmatprep.subr.mxu0 0.0
    %2605 = vmatpush2.msra.mxu0 0.0
    %2606 = vmatprep.subr.mxu0 0.0
    %2607 = vmatpush2.msra.mxu0 0.0
    %2608 = vmatprep.subr.mxu0 0.0
    %2609 = vmatpush2.msra.mxu0 0.0
    %2610 = vmatprep.subr.mxu0 0.0
    %2611 = vmatpush2.msra.mxu0 0.0
    %2612 = vmatprep.subr.mxu0 0.0
    %2613 = vmatpush2.msra.mxu0 0.0
    %2614 = vmatprep.subr.mxu0 0.0
    %2615 = vmatpush2.msra.mxu0 0.0
    %2616 = vmatprep.subr.mxu0 0.0
    %2617 = vmatpush2.msra.mxu0 0.0
    %2618 = vmatprep.subr.mxu0 0.0
    %2619 = vmatpush2.msra.mxu0 0.0
    %2620 = vmatprep.subr.mxu0 0.0
    %2621 = vmatpush2.msra.mxu0 0.0
    %2622 = vmatprep.subr.mxu0 0.0
    %2623 = vmatpush2.msra.mxu0 0.0
    %2624 = vmatprep.subr.mxu0 0.0
    %2625 = vmatpush2.msra.mxu0 0.0
    %2626 = vmatprep.mubr.f32.mxu0 0.0
    %2627 = vmatmul.mubr.f32.gmra.mxu0 %v2557
    %v2628 = vpop.f32.mrf.mxu0
    %v2629 = vadd.f32 %v2554, %v2628
    %v2630 = vpop.f32.mrf.mxu0
    %2631 = vmatprep.mubr.f32.mxu0 0.0
    %2632 = vmatmul.mubr.f32.gmra.mxu0 %v2560
    %v2633 = vpop.f32.mrf.mxu0
    %v2634 = vadd.f32 %v2554, %v2633
    %v2635 = vpop.f32.mrf.mxu0
    %2636 = vdwg.mxu0
    %2637 = vrot.lane.b32.xlu0 %v1325, 96
    %v2638 = vpop.permute.xlu0 %2637
    %2639 = vrot.lane.b32.xlu0 %v1330, 96
    %v2640 = vpop.permute.xlu0 %2639
    %2641 = vrot.lane.b32.xlu0 %v1335, 96
    %v2642 = vpop.permute.xlu0 %2641
    %v2644 = vsel %vm365, %v2629, 0
    %v2647 = vsel %vm365, %v2634, 0
    %v2649 = vsel %vm365, %v2638, 0
    %v2651 = vsel %vm365, %v2640, 0
    %v2653 = vsel %vm365, %v2642, 0
    %2655 = vmatprep.subr.mxu0 0.0
    %2656 = vmatpush1.xpose.msra.mxu0 0.0
    %2657 = vmatprep.subr.mxu0 0.0
    %2658 = vmatpush1.xpose.msra.mxu0 0.0
    %2659 = vmatprep.subr.mxu0 0.0
    %2660 = vmatpush1.xpose.msra.mxu0 0.0
    %2661 = vmatprep.subr.mxu0 0.0
    %2662 = vmatpush1.xpose.msra.mxu0 0.0
    %2663 = vmatprep.subr.mxu0 0.0
    %2664 = vmatpush1.xpose.msra.mxu0 0.0
    %2665 = vmatprep.subr.mxu0 0.0
    %2666 = vmatpush1.xpose.msra.mxu0 0.0
    %2667 = vmatprep.subr.mxu0 0.0
    %2668 = vmatpush1.xpose.msra.mxu0 0.0
    %2669 = vmatprep.subr.mxu0 0.0
    %2670 = vmatpush1.xpose.msra.mxu0 0.0
    %2671 = vmatprep.subr.mxu0 0.0
    %2672 = vmatpush1.xpose.msra.mxu0 0.0
    %2673 = vmatprep.subr.mxu0 0.0
    %2674 = vmatpush1.xpose.msra.mxu0 0.0
    %2675 = vmatprep.subr.mxu0 0.0
    %2676 = vmatpush1.xpose.msra.mxu0 0.0
    %2677 = vmatprep.subr.mxu0 0.0
    %2678 = vmatpush1.xpose.msra.mxu0 0.0
    %2679 = vmatprep.subr.mxu0 0.0
    %2680 = vmatpush1.xpose.msra.mxu0 0.0
    %2681 = vmatprep.subr.mxu0 0.0
    %2682 = vmatpush1.xpose.msra.mxu0 %v2653
    %2683 = vmatprep.subr.mxu0 0.0
    %2684 = vmatpush1.xpose.msra.mxu0 %v2651
    %2685 = vmatprep.subr.mxu0 0.0
    %2686 = vmatpush1.xpose.msra.mxu0 %v2649
    %2687 = vmatprep.subr.mxu0 0.0
    %2688 = vmatpush2.xpose.msra.mxu0 0.0
    %2689 = vmatprep.subr.mxu0 0.0
    %2690 = vmatpush2.xpose.msra.mxu0 0.0
    %2691 = vmatprep.subr.mxu0 0.0
    %2692 = vmatpush2.xpose.msra.mxu0 0.0
    %2693 = vmatprep.subr.mxu0 0.0
    %2694 = vmatpush2.xpose.msra.mxu0 0.0
    %2695 = vmatprep.subr.mxu0 0.0
    %2696 = vmatpush2.xpose.msra.mxu0 0.0
    %2697 = vmatprep.subr.mxu0 0.0
    %2698 = vmatpush2.xpose.msra.mxu0 0.0
    %2699 = vmatprep.subr.mxu0 0.0
    %2700 = vmatpush2.xpose.msra.mxu0 0.0
    %2701 = vmatprep.subr.mxu0 0.0
    %2702 = vmatpush2.xpose.msra.mxu0 0.0
    %2703 = vmatprep.subr.mxu0 0.0
    %2704 = vmatpush2.xpose.msra.mxu0 0.0
    %2705 = vmatprep.subr.mxu0 0.0
    %2706 = vmatpush2.xpose.msra.mxu0 0.0
    %2707 = vmatprep.subr.mxu0 0.0
    %2708 = vmatpush2.xpose.msra.mxu0 0.0
    %2709 = vmatprep.subr.mxu0 0.0
    %2710 = vmatpush2.xpose.msra.mxu0 0.0
    %2711 = vmatprep.subr.mxu0 0.0
    %2712 = vmatpush2.xpose.msra.mxu0 0.0
    %2713 = vmatprep.subr.mxu0 0.0
    %2714 = vmatpush2.xpose.msra.mxu0 0.0
    %2715 = vmatprep.subr.mxu0 0.0
    %2716 = vmatpush2.xpose.msra.mxu0 0.0
    %2717 = vmatprep.subr.mxu0 0.0
    %2718 = vmatpush2.xpose.msra.mxu0 0.0
    %2719 = vmatprep.mubr.f32.mxu0 0.0
    %2720 = vmatmul.mubr.f32.gmra.mxu0 %v2644
    %v2721 = vpop.f32.mrf.mxu0
    %v2722 = vadd.f32 0.0, %v2721
    %v2723 = vpop.f32.mrf.mxu0
    %2724 = vmatprep.mubr.f32.mxu0 0.0
    %2725 = vmatmul.mubr.f32.gmra.mxu0 %v2647
    %v2726 = vpop.f32.mrf.mxu0
    %v2727 = vadd.f32 0.0, %v2726
    %v2728 = vpop.f32.mrf.mxu0
    %2729 = vdwg.mxu0
    %2730 = vrot.lane.b32.xlu0 %v2629, 120
    %v2731 = vpop.permute.xlu0 %2730
    %2732 = vrot.lane.b32.xlu0 %v2634, 120
    %v2733 = vpop.permute.xlu0 %2732
    %2734 = vrot.lane.b32.xlu0 %v1325, 88
    %v2735 = vpop.permute.xlu0 %2734
    %2736 = vrot.lane.b32.xlu0 %v1330, 88
    %v2737 = vpop.permute.xlu0 %2736
    %2738 = vrot.lane.b32.xlu0 %v1335, 88
    %v2739 = vpop.permute.xlu0 %2738
    %v2740 = vsel %vm365, %v2731, 0
    %v2742 = vsel %vm365, %v2733, 0
    %v2744 = vsel %vm365, %v2735, 0
    %v2746 = vsel %vm365, %v2737, 0
    %v2748 = vsel %vm365, %v2739, 0
    %2750 = vmatprep.subr.mxu0 0.0
    %2751 = vmatpush1.xpose.msra.mxu0 0.0
    %2752 = vmatprep.subr.mxu0 0.0
    %2753 = vmatpush1.xpose.msra.mxu0 0.0
    %2754 = vmatprep.subr.mxu0 0.0
    %2755 = vmatpush1.xpose.msra.mxu0 0.0
    %2756 = vmatprep.subr.mxu0 0.0
    %2757 = vmatpush1.xpose.msra.mxu0 0.0
    %2758 = vmatprep.subr.mxu0 0.0
    %2759 = vmatpush1.xpose.msra.mxu0 0.0
    %2760 = vmatprep.subr.mxu0 0.0
    %2761 = vmatpush1.xpose.msra.mxu0 0.0
    %2762 = vmatprep.subr.mxu0 0.0
    %2763 = vmatpush1.xpose.msra.mxu0 0.0
    %2764 = vmatprep.subr.mxu0 0.0
    %2765 = vmatpush1.xpose.msra.mxu0 0.0
    %2766 = vmatprep.subr.mxu0 0.0
    %2767 = vmatpush1.xpose.msra.mxu0 0.0
    %2768 = vmatprep.subr.mxu0 0.0
    %2769 = vmatpush1.xpose.msra.mxu0 0.0
    %2770 = vmatprep.subr.mxu0 0.0
    %2771 = vmatpush1.xpose.msra.mxu0 0.0
    %2772 = vmatprep.subr.mxu0 0.0
    %2773 = vmatpush1.xpose.msra.mxu0 0.0
    %2774 = vmatprep.subr.mxu0 0.0
    %2775 = vmatpush1.xpose.msra.mxu0 0.0
    %2776 = vmatprep.subr.mxu0 0.0
    %2777 = vmatpush1.xpose.msra.mxu0 %v2748
    %2778 = vmatprep.subr.mxu0 0.0
    %2779 = vmatpush1.xpose.msra.mxu0 %v2746
    %2780 = vmatprep.subr.mxu0 0.0
    %2781 = vmatpush1.xpose.msra.mxu0 %v2744
    %2782 = vmatprep.subr.mxu0 0.0
    %2783 = vmatpush2.xpose.msra.mxu0 0.0
    %2784 = vmatprep.subr.mxu0 0.0
    %2785 = vmatpush2.xpose.msra.mxu0 0.0
    %2786 = vmatprep.subr.mxu0 0.0
    %2787 = vmatpush2.xpose.msra.mxu0 0.0
    %2788 = vmatprep.subr.mxu0 0.0
    %2789 = vmatpush2.xpose.msra.mxu0 0.0
    %2790 = vmatprep.subr.mxu0 0.0
    %2791 = vmatpush2.xpose.msra.mxu0 0.0
    %2792 = vmatprep.subr.mxu0 0.0
    %2793 = vmatpush2.xpose.msra.mxu0 0.0
    %2794 = vmatprep.subr.mxu0 0.0
    %2795 = vmatpush2.xpose.msra.mxu0 0.0
    %2796 = vmatprep.subr.mxu0 0.0
    %2797 = vmatpush2.xpose.msra.mxu0 0.0
    %2798 = vmatprep.subr.mxu0 0.0
    %2799 = vmatpush2.xpose.msra.mxu0 0.0
    %2800 = vmatprep.subr.mxu0 0.0
    %2801 = vmatpush2.xpose.msra.mxu0 0.0
    %2802 = vmatprep.subr.mxu0 0.0
    %2803 = vmatpush2.xpose.msra.mxu0 0.0
    %2804 = vmatprep.subr.mxu0 0.0
    %2805 = vmatpush2.xpose.msra.mxu0 0.0
    %2806 = vmatprep.subr.mxu0 0.0
    %2807 = vmatpush2.xpose.msra.mxu0 0.0
    %2808 = vmatprep.subr.mxu0 0.0
    %2809 = vmatpush2.xpose.msra.mxu0 0.0
    %2810 = vmatprep.subr.mxu0 0.0
    %2811 = vmatpush2.xpose.msra.mxu0 0.0
    %2812 = vmatprep.subr.mxu0 0.0
    %2813 = vmatpush2.xpose.msra.mxu0 0.0
    %2814 = vmatprep.mubr.f32.mxu0 0.0
    %2815 = vmatmul.mubr.f32.gmra.mxu0 %v2740
    %v2816 = vpop.f32.mrf.mxu0
    %v2817 = vadd.f32 0.0, %v2816
    %v2818 = vpop.f32.mrf.mxu0
    %2819 = vmatprep.mubr.f32.mxu0 0.0
    %2820 = vmatmul.mubr.f32.gmra.mxu0 %v2742
    %v2821 = vpop.f32.mrf.mxu0
    %v2822 = vadd.f32 0.0, %v2821
    %v2823 = vpop.f32.mrf.mxu0
    %2824 = vdwg.mxu0
    %2825 = vrot.lane.b32.xlu0 %v2629, 112
    %v2826 = vpop.permute.xlu0 %2825
    %2827 = vrot.lane.b32.xlu0 %v2634, 112
    %v2828 = vpop.permute.xlu0 %2827
    %2829 = vrot.lane.b32.xlu0 %v1325, 80
    %v2830 = vpop.permute.xlu0 %2829
    %2831 = vrot.lane.b32.xlu0 %v1330, 80
    %v2832 = vpop.permute.xlu0 %2831
    %2833 = vrot.lane.b32.xlu0 %v1335, 80
    %v2834 = vpop.permute.xlu0 %2833
    %v2835 = vsel %vm365, %v2826, 0
    %v2837 = vsel %vm365, %v2828, 0
    %v2839 = vsel %vm365, %v2830, 0
    %v2841 = vsel %vm365, %v2832, 0
    %v2843 = vsel %vm365, %v2834, 0
    %2845 = vmatprep.subr.mxu0 0.0
    %2846 = vmatpush1.xpose.msra.mxu0 0.0
    %2847 = vmatprep.subr.mxu0 0.0
    %2848 = vmatpush1.xpose.msra.mxu0 0.0
    %2849 = vmatprep.subr.mxu0 0.0
    %2850 = vmatpush1.xpose.msra.mxu0 0.0
    %2851 = vmatprep.subr.mxu0 0.0
    %2852 = vmatpush1.xpose.msra.mxu0 0.0
    %2853 = vmatprep.subr.mxu0 0.0
    %2854 = vmatpush1.xpose.msra.mxu0 0.0
    %2855 = vmatprep.subr.mxu0 0.0
    %2856 = vmatpush1.xpose.msra.mxu0 0.0
    %2857 = vmatprep.subr.mxu0 0.0
    %2858 = vmatpush1.xpose.msra.mxu0 0.0
    %2859 = vmatprep.subr.mxu0 0.0
    %2860 = vmatpush1.xpose.msra.mxu0 0.0
    %2861 = vmatprep.subr.mxu0 0.0
    %2862 = vmatpush1.xpose.msra.mxu0 0.0
    %2863 = vmatprep.subr.mxu0 0.0
    %2864 = vmatpush1.xpose.msra.mxu0 0.0
    %2865 = vmatprep.subr.mxu0 0.0
    %2866 = vmatpush1.xpose.msra.mxu0 0.0
    %2867 = vmatprep.subr.mxu0 0.0
    %2868 = vmatpush1.xpose.msra.mxu0 0.0
    %2869 = vmatprep.subr.mxu0 0.0
    %2870 = vmatpush1.xpose.msra.mxu0 0.0
    %2871 = vmatprep.subr.mxu0 0.0
    %2872 = vmatpush1.xpose.msra.mxu0 %v2843
    %2873 = vmatprep.subr.mxu0 0.0
    %2874 = vmatpush1.xpose.msra.mxu0 %v2841
    %2875 = vmatprep.subr.mxu0 0.0
    %2876 = vmatpush1.xpose.msra.mxu0 %v2839
    %2877 = vmatprep.subr.mxu0 0.0
    %2878 = vmatpush2.xpose.msra.mxu0 0.0
    %2879 = vmatprep.subr.mxu0 0.0
    %2880 = vmatpush2.xpose.msra.mxu0 0.0
    %2881 = vmatprep.subr.mxu0 0.0
    %2882 = vmatpush2.xpose.msra.mxu0 0.0
    %2883 = vmatprep.subr.mxu0 0.0
    %2884 = vmatpush2.xpose.msra.mxu0 0.0
    %2885 = vmatprep.subr.mxu0 0.0
    %2886 = vmatpush2.xpose.msra.mxu0 0.0
    %2887 = vmatprep.subr.mxu0 0.0
    %2888 = vmatpush2.xpose.msra.mxu0 0.0
    %2889 = vmatprep.subr.mxu0 0.0
    %2890 = vmatpush2.xpose.msra.mxu0 0.0
    %2891 = vmatprep.subr.mxu0 0.0
    %2892 = vmatpush2.xpose.msra.mxu0 0.0
    %2893 = vmatprep.subr.mxu0 0.0
    %2894 = vmatpush2.xpose.msra.mxu0 0.0
    %2895 = vmatprep.subr.mxu0 0.0
    %2896 = vmatpush2.xpose.msra.mxu0 0.0
    %2897 = vmatprep.subr.mxu0 0.0
    %2898 = vmatpush2.xpose.msra.mxu0 0.0
    %2899 = vmatprep.subr.mxu0 0.0
    %2900 = vmatpush2.xpose.msra.mxu0 0.0
    %2901 = vmatprep.subr.mxu0 0.0
    %2902 = vmatpush2.xpose.msra.mxu0 0.0
    %2903 = vmatprep.subr.mxu0 0.0
    %2904 = vmatpush2.xpose.msra.mxu0 0.0
    %2905 = vmatprep.subr.mxu0 0.0
    %2906 = vmatpush2.xpose.msra.mxu0 0.0
    %2907 = vmatprep.subr.mxu0 0.0
    %2908 = vmatpush2.xpose.msra.mxu0 0.0
    %2909 = vmatprep.mubr.f32.mxu0 0.0
    %2910 = vmatmul.mubr.f32.gmra.mxu0 %v2835
    %v2911 = vpop.f32.mrf.mxu0
    %v2912 = vadd.f32 0.0, %v2911
    %v2913 = vpop.f32.mrf.mxu0
    %2914 = vmatprep.mubr.f32.mxu0 0.0
    %2915 = vmatmul.mubr.f32.gmra.mxu0 %v2837
    %v2916 = vpop.f32.mrf.mxu0
    %v2917 = vadd.f32 0.0, %v2916
    %v2918 = vpop.f32.mrf.mxu0
    %2919 = vdwg.mxu0
    %2920 = vrot.lane.b32.xlu0 %v2629, 104
    %v2921 = vpop.permute.xlu0 %2920
    %2922 = vrot.lane.b32.xlu0 %v2634, 104
    %v2923 = vpop.permute.xlu0 %2922
    %2924 = vrot.lane.b32.xlu0 %v1325, 72
    %v2925 = vpop.permute.xlu0 %2924
    %2926 = vrot.lane.b32.xlu0 %v1330, 72
    %v2927 = vpop.permute.xlu0 %2926
    %2928 = vrot.lane.b32.xlu0 %v1335, 72
    %v2929 = vpop.permute.xlu0 %2928
    %v2930 = vsel %vm365, %v2921, 0
    %v2932 = vsel %vm365, %v2923, 0
    %v2934 = vsel %vm365, %v2925, 0
    %v2936 = vsel %vm365, %v2927, 0
    %v2938 = vsel %vm365, %v2929, 0
    %2940 = vmatprep.subr.mxu0 0.0
    %2941 = vmatpush1.xpose.msra.mxu0 0.0
    %2942 = vmatprep.subr.mxu0 0.0
    %2943 = vmatpush1.xpose.msra.mxu0 0.0
    %2944 = vmatprep.subr.mxu0 0.0
    %2945 = vmatpush1.xpose.msra.mxu0 0.0
    %2946 = vmatprep.subr.mxu0 0.0
    %2947 = vmatpush1.xpose.msra.mxu0 0.0
    %2948 = vmatprep.subr.mxu0 0.0
    %2949 = vmatpush1.xpose.msra.mxu0 0.0
    %2950 = vmatprep.subr.mxu0 0.0
    %2951 = vmatpush1.xpose.msra.mxu0 0.0
    %2952 = vmatprep.subr.mxu0 0.0
    %2953 = vmatpush1.xpose.msra.mxu0 0.0
    %2954 = vmatprep.subr.mxu0 0.0
    %2955 = vmatpush1.xpose.msra.mxu0 0.0
    %2956 = vmatprep.subr.mxu0 0.0
    %2957 = vmatpush1.xpose.msra.mxu0 0.0
    %2958 = vmatprep.subr.mxu0 0.0
    %2959 = vmatpush1.xpose.msra.mxu0 0.0
    %2960 = vmatprep.subr.mxu0 0.0
    %2961 = vmatpush1.xpose.msra.mxu0 0.0
    %2962 = vmatprep.subr.mxu0 0.0
    %2963 = vmatpush1.xpose.msra.mxu0 0.0
    %2964 = vmatprep.subr.mxu0 0.0
    %2965 = vmatpush1.xpose.msra.mxu0 0.0
    %2966 = vmatprep.subr.mxu0 0.0
    %2967 = vmatpush1.xpose.msra.mxu0 %v2938
    %2968 = vmatprep.subr.mxu0 0.0
    %2969 = vmatpush1.xpose.msra.mxu0 %v2936
    %2970 = vmatprep.subr.mxu0 0.0
    %2971 = vmatpush1.xpose.msra.mxu0 %v2934
    %2972 = vmatprep.subr.mxu0 0.0
    %2973 = vmatpush2.xpose.msra.mxu0 0.0
    %2974 = vmatprep.subr.mxu0 0.0
    %2975 = vmatpush2.xpose.msra.mxu0 0.0
    %2976 = vmatprep.subr.mxu0 0.0
    %2977 = vmatpush2.xpose.msra.mxu0 0.0
    %2978 = vmatprep.subr.mxu0 0.0
    %2979 = vmatpush2.xpose.msra.mxu0 0.0
    %2980 = vmatprep.subr.mxu0 0.0
    %2981 = vmatpush2.xpose.msra.mxu0 0.0
    %2982 = vmatprep.subr.mxu0 0.0
    %2983 = vmatpush2.xpose.msra.mxu0 0.0
    %2984 = vmatprep.subr.mxu0 0.0
    %2985 = vmatpush2.xpose.msra.mxu0 0.0
    %2986 = vmatprep.subr.mxu0 0.0
    %2987 = vmatpush2.xpose.msra.mxu0 0.0
    %2988 = vmatprep.subr.mxu0 0.0
    %2989 = vmatpush2.xpose.msra.mxu0 0.0
    %2990 = vmatprep.subr.mxu0 0.0
    %2991 = vmatpush2.xpose.msra.mxu0 0.0
    %2992 = vmatprep.subr.mxu0 0.0
    %2993 = vmatpush2.xpose.msra.mxu0 0.0
    %2994 = vmatprep.subr.mxu0 0.0
    %2995 = vmatpush2.xpose.msra.mxu0 0.0
    %2996 = vmatprep.subr.mxu0 0.0
    %2997 = vmatpush2.xpose.msra.mxu0 0.0
    %2998 = vmatprep.subr.mxu0 0.0
    %2999 = vmatpush2.xpose.msra.mxu0 0.0
    %3000 = vmatprep.subr.mxu0 0.0
    %3001 = vmatpush2.xpose.msra.mxu0 0.0
    %3002 = vmatprep.subr.mxu0 0.0
    %3003 = vmatpush2.xpose.msra.mxu0 0.0
    %3004 = vmatprep.mubr.f32.mxu0 0.0
    %3005 = vmatmul.mubr.f32.gmra.mxu0 %v2930
    %v3006 = vpop.f32.mrf.mxu0
    %v3007 = vadd.f32 0.0, %v3006
    %v3008 = vpop.f32.mrf.mxu0
    %3009 = vmatprep.mubr.f32.mxu0 0.0
    %3010 = vmatmul.mubr.f32.gmra.mxu0 %v2932
    %v3011 = vpop.f32.mrf.mxu0
    %v3012 = vadd.f32 0.0, %v3011
    %v3013 = vpop.f32.mrf.mxu0
    %3014 = vdwg.mxu0
    %v3015 = vadd.f32 %v2722, %v165
    %v3016 = vadd.f32 %v2727, %v166
    %v3017 = vadd.f32 %v2817, %v167
    %v3018 = vadd.f32 %v2822, %v168
    %v3019 = vadd.f32 %v2912, %v169
    %v3020 = vadd.f32 %v2917, %v170
    %v3021 = vadd.f32 %v3007, %v171
    %v3022 = vadd.f32 %v3012, %v172
    %v3023 = vsel %vm2042, %v3015, -inf
    %3024 = vmax.xlane.f32.xlu0 %v3023
    %v3025 = vpop.xlane.xlu0 %3024
    %v3026 = vsel %vm2042, %v3016, -inf
    %3027 = vmax.xlane.f32.xlu0 %v3026
    %v3028 = vpop.xlane.xlu0 %3027
    %v3029 = vsel %vm2042, %v3017, -inf
    %3030 = vmax.xlane.f32.xlu0 %v3029
    %v3031 = vpop.xlane.xlu0 %3030
    %v3032 = vsel %vm2042, %v3018, -inf
    %3033 = vmax.xlane.f32.xlu0 %v3032
    %v3034 = vpop.xlane.xlu0 %3033
    %v3035 = vsel %vm2042, %v3019, -inf
    %3036 = vmax.xlane.f32.xlu0 %v3035
    %v3037 = vpop.xlane.xlu0 %3036
    %v3038 = vsel %vm2042, %v3020, -inf
    %3039 = vmax.xlane.f32.xlu0 %v3038
    %v3040 = vpop.xlane.xlu0 %3039
    %v3041 = vsel %vm2042, %v3021, -inf
    %3042 = vmax.xlane.f32.xlu0 %v3041
    %v3043 = vpop.xlane.xlu0 %3042
    %v3044 = vsel %vm2042, %v3022, -inf
    %3045 = vmax.xlane.f32.xlu0 %v3044
    %v3046 = vpop.xlane.xlu0 %3045
    %v3047 = vsub.f32 %v3015, %v3025
    %v3048 = vsub.f32 %v3016, %v3028
    %v3049 = vsub.f32 %v3017, %v3031
    %v3050 = vsub.f32 %v3018, %v3034
    %v3051 = vsub.f32 %v3019, %v3037
    %v3052 = vsub.f32 %v3020, %v3040
    %v3053 = vsub.f32 %v3021, %v3043
    %v3054 = vsub.f32 %v3022, %v3046
    %v3055 = vmul.f32 %v3047, 1.442695
    %v3056 = vpow.pop %v3055
    %v3057 = vmul.f32 %v3048, 1.442695
    %v3058 = vpow.pop %v3057
    %v3059 = vmul.f32 %v3049, 1.442695
    %v3060 = vpow.pop %v3059
    %v3061 = vmul.f32 %v3050, 1.442695
    %v3062 = vpow.pop %v3061
    %v3063 = vmul.f32 %v3051, 1.442695
    %v3064 = vpow.pop %v3063
    %v3065 = vmul.f32 %v3052, 1.442695
    %v3066 = vpow.pop %v3065
    %v3067 = vmul.f32 %v3053, 1.442695
    %v3068 = vpow.pop %v3067
    %v3069 = vmul.f32 %v3054, 1.442695
    %v3070 = vpow.pop %v3069
    %v3071 = vsel %vm2042, %v3056, 0.0
    %3072 = vadd.xlane.f32.xlu0 %v3071
    %v3073 = vpop.xlane.xlu0 %3072
    %v3074 = vsel %vm2042, %v3058, 0.0
    %3075 = vadd.xlane.f32.xlu0 %v3074
    %v3076 = vpop.xlane.xlu0 %3075
    %v3077 = vsel %vm2042, %v3060, 0.0
    %3078 = vadd.xlane.f32.xlu0 %v3077
    %v3079 = vpop.xlane.xlu0 %3078
    %v3080 = vsel %vm2042, %v3062, 0.0
    %3081 = vadd.xlane.f32.xlu0 %v3080
    %v3082 = vpop.xlane.xlu0 %3081
    %v3083 = vsel %vm2042, %v3064, 0.0
    %3084 = vadd.xlane.f32.xlu0 %v3083
    %v3085 = vpop.xlane.xlu0 %3084
    %v3086 = vsel %vm2042, %v3066, 0.0
    %3087 = vadd.xlane.f32.xlu0 %v3086
    %v3088 = vpop.xlane.xlu0 %3087
    %v3089 = vsel %vm2042, %v3068, 0.0
    %3090 = vadd.xlane.f32.xlu0 %v3089
    %v3091 = vpop.xlane.xlu0 %3090
    %v3092 = vsel %vm2042, %v3070, 0.0
    %3093 = vadd.xlane.f32.xlu0 %v3092
    %v3094 = vpop.xlane.xlu0 %3093
    %v3095 = vrcp.pop %v3073
    %v3096 = vmul.f32 %v3056, %v3095
    %v3097 = vrcp.pop %v3076
    %v3098 = vmul.f32 %v3058, %v3097
    %v3099 = vrcp.pop %v3079
    %v3100 = vmul.f32 %v3060, %v3099
    %v3101 = vrcp.pop %v3082
    %v3102 = vmul.f32 %v3062, %v3101
    %v3103 = vrcp.pop %v3085
    %v3104 = vmul.f32 %v3064, %v3103
    %v3105 = vrcp.pop %v3088
    %v3106 = vmul.f32 %v3066, %v3105
    %v3107 = vrcp.pop %v3091
    %v3108 = vmul.f32 %v3068, %v3107
    %v3109 = vrcp.pop %v3094
    %v3110 = vmul.f32 %v3070, %v3109
    %3114 = vrot.lane.b32.xlu0 %v1541, 96
    %v3115 = vpop.permute.xlu0 %3114
    %3116 = vrot.lane.b32.xlu0 %v1547, 96
    %v3117 = vpop.permute.xlu0 %3116
    %3118 = vrot.lane.b32.xlu0 %v1553, 96
    %v3119 = vpop.permute.xlu0 %3118
    %v3124 = vsel %vm2042, %v3100, 0
    %v3127 = vsel %vm2042, %v3102, 0
    %3129 = vmatprep.subr.mxu0 0.0
    %3130 = vmatpush1.msra.mxu0 0.0
    %3131 = vmatprep.subr.mxu0 0.0
    %3132 = vmatpush1.msra.mxu0 0.0
    %3133 = vmatprep.subr.mxu0 0.0
    %3134 = vmatpush1.msra.mxu0 0.0
    %3135 = vmatprep.subr.mxu0 0.0
    %3136 = vmatpush1.msra.mxu0 0.0
    %3137 = vmatprep.subr.mxu0 0.0
    %3138 = vmatpush1.msra.mxu0 0.0
    %3139 = vmatprep.subr.mxu0 0.0
    %3140 = vmatpush1.msra.mxu0 0.0
    %3141 = vmatprep.subr.mxu0 0.0
    %3142 = vmatpush1.msra.mxu0 0.0
    %3143 = vmatprep.subr.mxu0 0.0
    %3144 = vmatpush1.msra.mxu0 0.0
    %3145 = vmatprep.subr.mxu0 0.0
    %3146 = vmatpush1.msra.mxu0 0.0
    %3147 = vmatprep.subr.mxu0 0.0
    %3148 = vmatpush1.msra.mxu0 0.0
    %3149 = vmatprep.subr.mxu0 0.0
    %3150 = vmatpush1.msra.mxu0 0.0
    %3151 = vmatprep.subr.mxu0 0.0
    %3152 = vmatpush1.msra.mxu0 0.0
    %3153 = vmatprep.subr.mxu0 0.0
    %3154 = vmatpush1.msra.mxu0 0.0
    %3155 = vmatprep.subr.mxu0 0.0
    %3156 = vmatpush1.msra.mxu0 %v3119
    %3157 = vmatprep.subr.mxu0 0.0
    %3158 = vmatpush1.msra.mxu0 %v3117
    %3159 = vmatprep.subr.mxu0 0.0
    %3160 = vmatpush1.msra.mxu0 %v3115
    %3161 = vmatprep.subr.mxu0 0.0
    %3162 = vmatpush2.msra.mxu0 0.0
    %3163 = vmatprep.subr.mxu0 0.0
    %3164 = vmatpush2.msra.mxu0 0.0
    %3165 = vmatprep.subr.mxu0 0.0
    %3166 = vmatpush2.msra.mxu0 0.0
    %3167 = vmatprep.subr.mxu0 0.0
    %3168 = vmatpush2.msra.mxu0 0.0
    %3169 = vmatprep.subr.mxu0 0.0
    %3170 = vmatpush2.msra.mxu0 0.0
    %3171 = vmatprep.subr.mxu0 0.0
    %3172 = vmatpush2.msra.mxu0 0.0
    %3173 = vmatprep.subr.mxu0 0.0
    %3174 = vmatpush2.msra.mxu0 0.0
    %3175 = vmatprep.subr.mxu0 0.0
    %3176 = vmatpush2.msra.mxu0 0.0
    %3177 = vmatprep.subr.mxu0 0.0
    %3178 = vmatpush2.msra.mxu0 0.0
    %3179 = vmatprep.subr.mxu0 0.0
    %3180 = vmatpush2.msra.mxu0 0.0
    %3181 = vmatprep.subr.mxu0 0.0
    %3182 = vmatpush2.msra.mxu0 0.0
    %3183 = vmatprep.subr.mxu0 0.0
    %3184 = vmatpush2.msra.mxu0 0.0
    %3185 = vmatprep.subr.mxu0 0.0
    %3186 = vmatpush2.msra.mxu0 0.0
    %3187 = vmatprep.subr.mxu0 0.0
    %3188 = vmatpush2.msra.mxu0 0.0
    %3189 = vmatprep.subr.mxu0 0.0
    %3190 = vmatpush2.msra.mxu0 0.0
    %3191 = vmatprep.subr.mxu0 0.0
    %3192 = vmatpush2.msra.mxu0 0.0
    %3193 = vmatprep.mubr.f32.mxu0 0.0
    %3194 = vmatmul.mubr.f32.gmra.mxu0 %v3124
    %v3195 = vpop.f32.mrf.mxu0
    %v3196 = vadd.f32 0.0, %v3195
    %v3197 = vpop.f32.mrf.mxu0
    %3198 = vmatprep.mubr.f32.mxu0 0.0
    %3199 = vmatmul.mubr.f32.gmra.mxu0 %v3127
    %v3200 = vpop.f32.mrf.mxu0
    %v3201 = vadd.f32 0.0, %v3200
    %v3202 = vpop.f32.mrf.mxu0
    %3203 = vdwg.mxu0
    %v3205 = vsel %vm2042, %v3096, 0
    %v3208 = vsel %vm2042, %v3098, 0
    %3210 = vmatprep.subr.mxu0 0.0
    %3211 = vmatpush1.msra.mxu0 0.0
    %3212 = vmatprep.subr.mxu0 0.0
    %3213 = vmatpush1.msra.mxu0 0.0
    %3214 = vmatprep.subr.mxu0 0.0
    %3215 = vmatpush1.msra.mxu0 0.0
    %3216 = vmatprep.subr.mxu0 0.0
    %3217 = vmatpush1.msra.mxu0 0.0
    %3218 = vmatprep.subr.mxu0 0.0
    %3219 = vmatpush1.msra.mxu0 0.0
    %3220 = vmatprep.subr.mxu0 0.0
    %3221 = vmatpush1.msra.mxu0 0.0
    %3222 = vmatprep.subr.mxu0 0.0
    %3223 = vmatpush1.msra.mxu0 0.0
    %3224 = vmatprep.subr.mxu0 0.0
    %3225 = vmatpush1.msra.mxu0 0.0
    %3226 = vmatprep.subr.mxu0 0.0
    %3227 = vmatpush1.msra.mxu0 0.0
    %3228 = vmatprep.subr.mxu0 0.0
    %3229 = vmatpush1.msra.mxu0 0.0
    %3230 = vmatprep.subr.mxu0 0.0
    %3231 = vmatpush1.msra.mxu0 0.0
    %3232 = vmatprep.subr.mxu0 0.0
    %3233 = vmatpush1.msra.mxu0 0.0
    %3234 = vmatprep.subr.mxu0 0.0
    %3235 = vmatpush1.msra.mxu0 0.0
    %3236 = vmatprep.subr.mxu0 0.0
    %3237 = vmatpush1.msra.mxu0 %v1553
    %3238 = vmatprep.subr.mxu0 0.0
    %3239 = vmatpush1.msra.mxu0 %v1547
    %3240 = vmatprep.subr.mxu0 0.0
    %3241 = vmatpush1.msra.mxu0 %v1541
    %3242 = vmatprep.subr.mxu0 0.0
    %3243 = vmatpush2.msra.mxu0 0.0
    %3244 = vmatprep.subr.mxu0 0.0
    %3245 = vmatpush2.msra.mxu0 0.0
    %3246 = vmatprep.subr.mxu0 0.0
    %3247 = vmatpush2.msra.mxu0 0.0
    %3248 = vmatprep.subr.mxu0 0.0
    %3249 = vmatpush2.msra.mxu0 0.0
    %3250 = vmatprep.subr.mxu0 0.0
    %3251 = vmatpush2.msra.mxu0 0.0
    %3252 = vmatprep.subr.mxu0 0.0
    %3253 = vmatpush2.msra.mxu0 0.0
    %3254 = vmatprep.subr.mxu0 0.0
    %3255 = vmatpush2.msra.mxu0 0.0
    %3256 = vmatprep.subr.mxu0 0.0
    %3257 = vmatpush2.msra.mxu0 0.0
    %3258 = vmatprep.subr.mxu0 0.0
    %3259 = vmatpush2.msra.mxu0 0.0
    %3260 = vmatprep.subr.mxu0 0.0
    %3261 = vmatpush2.msra.mxu0 0.0
    %3262 = vmatprep.subr.mxu0 0.0
    %3263 = vmatpush2.msra.mxu0 0.0
    %3264 = vmatprep.subr.mxu0 0.0
    %3265 = vmatpush2.msra.mxu0 0.0
    %3266 = vmatprep.subr.mxu0 0.0
    %3267 = vmatpush2.msra.mxu0 0.0
    %3268 = vmatprep.subr.mxu0 0.0
    %3269 = vmatpush2.msra.mxu0 0.0
    %3270 = vmatprep.subr.mxu0 0.0
    %3271 = vmatpush2.msra.mxu0 0.0
    %3272 = vmatprep.subr.mxu0 0.0
    %3273 = vmatpush2.msra.mxu0 0.0
    %3274 = vmatprep.mubr.f32.mxu0 0.0
    %3275 = vmatmul.mubr.f32.gmra.mxu0 %v3205
    %v3276 = vpop.f32.mrf.mxu0
    %v3277 = vadd.f32 %v3196, %v3276
    %v3278 = vpop.f32.mrf.mxu0
    %3279 = vmatprep.mubr.f32.mxu0 0.0
    %3280 = vmatmul.mubr.f32.gmra.mxu0 %v3208
    %v3281 = vpop.f32.mrf.mxu0
    %v3282 = vadd.f32 %v3201, %v3281
    %v3283 = vpop.f32.mrf.mxu0
    %3284 = vdwg.mxu0
    %3285 = vrot.lane.b32.xlu0 %v1541, 64
    %v3286 = vpop.permute.xlu0 %3285
    %3287 = vrot.lane.b32.xlu0 %v1547, 64
    %v3288 = vpop.permute.xlu0 %3287
    %3289 = vrot.lane.b32.xlu0 %v1553, 64
    %v3290 = vpop.permute.xlu0 %3289
    %v3295 = vsel %vm2042, %v3104, 0
    %v3298 = vsel %vm2042, %v3106, 0
    %3300 = vmatprep.subr.mxu0 0.0
    %3301 = vmatpush1.msra.mxu0 0.0
    %3302 = vmatprep.subr.mxu0 0.0
    %3303 = vmatpush1.msra.mxu0 0.0
    %3304 = vmatprep.subr.mxu0 0.0
    %3305 = vmatpush1.msra.mxu0 0.0
    %3306 = vmatprep.subr.mxu0 0.0
    %3307 = vmatpush1.msra.mxu0 0.0
    %3308 = vmatprep.subr.mxu0 0.0
    %3309 = vmatpush1.msra.mxu0 0.0
    %3310 = vmatprep.subr.mxu0 0.0
    %3311 = vmatpush1.msra.mxu0 0.0
    %3312 = vmatprep.subr.mxu0 0.0
    %3313 = vmatpush1.msra.mxu0 0.0
    %3314 = vmatprep.subr.mxu0 0.0
    %3315 = vmatpush1.msra.mxu0 0.0
    %3316 = vmatprep.subr.mxu0 0.0
    %3317 = vmatpush1.msra.mxu0 0.0
    %3318 = vmatprep.subr.mxu0 0.0
    %3319 = vmatpush1.msra.mxu0 0.0
    %3320 = vmatprep.subr.mxu0 0.0
    %3321 = vmatpush1.msra.mxu0 0.0
    %3322 = vmatprep.subr.mxu0 0.0
    %3323 = vmatpush1.msra.mxu0 0.0
    %3324 = vmatprep.subr.mxu0 0.0
    %3325 = vmatpush1.msra.mxu0 0.0
    %3326 = vmatprep.subr.mxu0 0.0
    %3327 = vmatpush1.msra.mxu0 %v3290
    %3328 = vmatprep.subr.mxu0 0.0
    %3329 = vmatpush1.msra.mxu0 %v3288
    %3330 = vmatprep.subr.mxu0 0.0
    %3331 = vmatpush1.msra.mxu0 %v3286
    %3332 = vmatprep.subr.mxu0 0.0
    %3333 = vmatpush2.msra.mxu0 0.0
    %3334 = vmatprep.subr.mxu0 0.0
    %3335 = vmatpush2.msra.mxu0 0.0
    %3336 = vmatprep.subr.mxu0 0.0
    %3337 = vmatpush2.msra.mxu0 0.0
    %3338 = vmatprep.subr.mxu0 0.0
    %3339 = vmatpush2.msra.mxu0 0.0
    %3340 = vmatprep.subr.mxu0 0.0
    %3341 = vmatpush2.msra.mxu0 0.0
    %3342 = vmatprep.subr.mxu0 0.0
    %3343 = vmatpush2.msra.mxu0 0.0
    %3344 = vmatprep.subr.mxu0 0.0
    %3345 = vmatpush2.msra.mxu0 0.0
    %3346 = vmatprep.subr.mxu0 0.0
    %3347 = vmatpush2.msra.mxu0 0.0
    %3348 = vmatprep.subr.mxu0 0.0
    %3349 = vmatpush2.msra.mxu0 0.0
    %3350 = vmatprep.subr.mxu0 0.0
    %3351 = vmatpush2.msra.mxu0 0.0
    %3352 = vmatprep.subr.mxu0 0.0
    %3353 = vmatpush2.msra.mxu0 0.0
    %3354 = vmatprep.subr.mxu0 0.0
    %3355 = vmatpush2.msra.mxu0 0.0
    %3356 = vmatprep.subr.mxu0 0.0
    %3357 = vmatpush2.msra.mxu0 0.0
    %3358 = vmatprep.subr.mxu0 0.0
    %3359 = vmatpush2.msra.mxu0 0.0
    %3360 = vmatprep.subr.mxu0 0.0
    %3361 = vmatpush2.msra.mxu0 0.0
    %3362 = vmatprep.subr.mxu0 0.0
    %3363 = vmatpush2.msra.mxu0 0.0
    %3364 = vmatprep.mubr.f32.mxu0 0.0
    %3365 = vmatmul.mubr.f32.gmra.mxu0 %v3295
    %v3366 = vpop.f32.mrf.mxu0
    %v3367 = vadd.f32 0.0, %v3366
    %v3368 = vpop.f32.mrf.mxu0
    %3369 = vmatprep.mubr.f32.mxu0 0.0
    %3370 = vmatmul.mubr.f32.gmra.mxu0 %v3298
    %v3371 = vpop.f32.mrf.mxu0
    %v3372 = vadd.f32 0.0, %v3371
    %v3373 = vpop.f32.mrf.mxu0
    %3374 = vdwg.mxu0
    %v3375 = vadd.f32 %v3277, %v3367
    %v3376 = vadd.f32 %v3282, %v3372
    %3377 = vrot.lane.b32.xlu0 %v1541, 32
    %v3378 = vpop.permute.xlu0 %3377
    %3379 = vrot.lane.b32.xlu0 %v1547, 32
    %v3380 = vpop.permute.xlu0 %3379
    %3381 = vrot.lane.b32.xlu0 %v1553, 32
    %v3382 = vpop.permute.xlu0 %3381
    %v3387 = vsel %vm2042, %v3108, 0
    %v3390 = vsel %vm2042, %v3110, 0
    %3392 = vmatprep.subr.mxu0 0.0
    %3393 = vmatpush1.msra.mxu0 0.0
    %3394 = vmatprep.subr.mxu0 0.0
    %3395 = vmatpush1.msra.mxu0 0.0
    %3396 = vmatprep.subr.mxu0 0.0
    %3397 = vmatpush1.msra.mxu0 0.0
    %3398 = vmatprep.subr.mxu0 0.0
    %3399 = vmatpush1.msra.mxu0 0.0
    %3400 = vmatprep.subr.mxu0 0.0
    %3401 = vmatpush1.msra.mxu0 0.0
    %3402 = vmatprep.subr.mxu0 0.0
    %3403 = vmatpush1.msra.mxu0 0.0
    %3404 = vmatprep.subr.mxu0 0.0
    %3405 = vmatpush1.msra.mxu0 0.0
    %3406 = vmatprep.subr.mxu0 0.0
    %3407 = vmatpush1.msra.mxu0 0.0
    %3408 = vmatprep.subr.mxu0 0.0
    %3409 = vmatpush1.msra.mxu0 0.0
    %3410 = vmatprep.subr.mxu0 0.0
    %3411 = vmatpush1.msra.mxu0 0.0
    %3412 = vmatprep.subr.mxu0 0.0
    %3413 = vmatpush1.msra.mxu0 0.0
    %3414 = vmatprep.subr.mxu0 0.0
    %3415 = vmatpush1.msra.mxu0 0.0
    %3416 = vmatprep.subr.mxu0 0.0
    %3417 = vmatpush1.msra.mxu0 0.0
    %3418 = vmatprep.subr.mxu0 0.0
    %3419 = vmatpush1.msra.mxu0 %v3382
    %3420 = vmatprep.subr.mxu0 0.0
    %3421 = vmatpush1.msra.mxu0 %v3380
    %3422 = vmatprep.subr.mxu0 0.0
    %3423 = vmatpush1.msra.mxu0 %v3378
    %3424 = vmatprep.subr.mxu0 0.0
    %3425 = vmatpush2.msra.mxu0 0.0
    %3426 = vmatprep.subr.mxu0 0.0
    %3427 = vmatpush2.msra.mxu0 0.0
    %3428 = vmatprep.subr.mxu0 0.0
    %3429 = vmatpush2.msra.mxu0 0.0
    %3430 = vmatprep.subr.mxu0 0.0
    %3431 = vmatpush2.msra.mxu0 0.0
    %3432 = vmatprep.subr.mxu0 0.0
    %3433 = vmatpush2.msra.mxu0 0.0
    %3434 = vmatprep.subr.mxu0 0.0
    %3435 = vmatpush2.msra.mxu0 0.0
    %3436 = vmatprep.subr.mxu0 0.0
    %3437 = vmatpush2.msra.mxu0 0.0
    %3438 = vmatprep.subr.mxu0 0.0
    %3439 = vmatpush2.msra.mxu0 0.0
    %3440 = vmatprep.subr.mxu0 0.0
    %3441 = vmatpush2.msra.mxu0 0.0
    %3442 = vmatprep.subr.mxu0 0.0
    %3443 = vmatpush2.msra.mxu0 0.0
    %3444 = vmatprep.subr.mxu0 0.0
    %3445 = vmatpush2.msra.mxu0 0.0
    %3446 = vmatprep.subr.mxu0 0.0
    %3447 = vmatpush2.msra.mxu0 0.0
    %3448 = vmatprep.subr.mxu0 0.0
    %3449 = vmatpush2.msra.mxu0 0.0
    %3450 = vmatprep.subr.mxu0 0.0
    %3451 = vmatpush2.msra.mxu0 0.0
    %3452 = vmatprep.subr.mxu0 0.0
    %3453 = vmatpush2.msra.mxu0 0.0
    %3454 = vmatprep.subr.mxu0 0.0
    %3455 = vmatpush2.msra.mxu0 0.0
    %3456 = vmatprep.mubr.f32.mxu0 0.0
    %3457 = vmatmul.mubr.f32.gmra.mxu0 %v3387
    %v3458 = vpop.f32.mrf.mxu0
    %v3459 = vadd.f32 0.0, %v3458
    %v3460 = vpop.f32.mrf.mxu0
    %3461 = vmatprep.mubr.f32.mxu0 0.0
    %3462 = vmatmul.mubr.f32.gmra.mxu0 %v3390
    %v3463 = vpop.f32.mrf.mxu0
    %v3464 = vadd.f32 0.0, %v3463
    %v3465 = vpop.f32.mrf.mxu0
    %3466 = vdwg.mxu0
    %v3467 = vadd.f32 %v3375, %v3459
    %v3468 = vadd.f32 %v3376, %v3464
    %3470 = vrot.lane.b32.xlu0 %v2493, 96
    %v3471 = vpop.permute.xlu0 %3470
    %v3473 = vadd.f32 %v3467, %v3471
    %v3474 = vadd.f32 %v3468, %v3471
    %v3475 = vld [vmem:[%s5 + $0x4] sm:$0x1]
    %v3476 = vld [vmem:[%s5 + $0x5] sm:$0x1]
    %v3477 = vadd.f32 %v2536, %v3473
    %v3478 = vadd.f32 %v2537, %v3474
    %v3479 = vsel %vm194, %v3477, 0.0
    %3480 = vadd.xlane.f32.xlu0 %v3479
    %v3481 = vpop.xlane.xlu0 %3480
    %v3482 = vsel %vm194, %v3478, 0.0
    %3483 = vadd.xlane.f32.xlu0 %v3482
    %v3484 = vpop.xlane.xlu0 %3483
    %v3485 = vmul.f32 %v3481, %v1184
    %v3486 = vmul.f32 %v3484, %v1184
    %v3487 = vsub.f32 %v3477, %v3485
    %v3488 = vsub.f32 %v3478, %v3486
    %v3489 = vmul.f32 %v3487, %v3487
    %v3490 = vmul.f32 %v3488, %v3488
    %v3491 = vsel %vm194, %v3489, 0.0
    %3492 = vadd.xlane.f32.xlu0 %v3491
    %v3493 = vpop.xlane.xlu0 %3492
    %v3494 = vsel %vm194, %v3490, 0.0
    %3495 = vadd.xlane.f32.xlu0 %v3494
    %v3496 = vpop.xlane.xlu0 %3495
    %v3497 = vmul.f32 %v3493, %v1184
    %v3498 = vmul.f32 %v3496, %v1184
    %v3499 = vadd.f32 %v3497, 1e-05
    %v3500 = vadd.f32 %v3498, 1e-05
    %v3501 = vrsqrt.pop %v3499
    %v3502 = vrsqrt.pop %v3500
    %v3503 = vmul.f32 %v3487, %v3501
    %v3504 = vmul.f32 %v3488, %v3502
    %v3505 = vlaneseq
    %v3506 = vshrl.u32 %v3505, 7
    %v3507 = vsub.s32 0, %v3506
    %v3508 = vrot.slane %v3475, %v3507
    %v3509 = vmul.f32 %v3503, %v3508
    %v3510 = vmul.f32 %v3504, %v3508
    %v3511 = vlaneseq
    %v3512 = vshrl.u32 %v3511, 7
    %v3513 = vsub.s32 0, %v3512
    %v3514 = vrot.slane %v3476, %v3513
    %v3515 = vadd.f32 %v3509, %v3514
    %v3516 = vadd.f32 %v3510, %v3514
    %v3517 = vld [vmem:[%s2 + $0x10] sm:$0xff]
    %v3518 = vld [vmem:[%s2 + $0x28] sm:$0xff]
    %v3519 = vld [vmem:[%s2 + $0x40] sm:$0xff]
    %v3520 = vld [vmem:[%s2 + $0x58] sm:$0xff]
    %v3521 = vld [vmem:[%s4 + $0x5] sm:$0x1]
    %v3522 = vlaneseq
    %v3523 = vshrl.u32 %v3522, 7
    %v3524 = vsub.s32 0, %v3523
    %v3525 = vrot.slane %v3521, %v3524
    %v3527 = vsel %vm194, %v3515, 0
    %v3530 = vsel %vm194, %v3516, 0
    %3532 = vmatprep.subr.mxu0 0.0
    %3533 = vmatpush1.msra.mxu0 0.0
    %3534 = vmatprep.subr.mxu0 0.0
    %3535 = vmatpush1.msra.mxu0 0.0
    %3536 = vmatprep.subr.mxu0 0.0
    %3537 = vmatpush1.msra.mxu0 0.0
    %3538 = vmatprep.subr.mxu0 0.0
    %3539 = vmatpush1.msra.mxu0 0.0
    %3540 = vmatprep.subr.mxu0 0.0
    %3541 = vmatpush1.msra.mxu0 0.0
    %3542 = vmatprep.subr.mxu0 0.0
    %3543 = vmatpush1.msra.mxu0 0.0
    %3544 = vmatprep.subr.mxu0 0.0
    %3545 = vmatpush1.msra.mxu0 0.0
    %3546 = vmatprep.subr.mxu0 0.0
    %3547 = vmatpush1.msra.mxu0 0.0
    %3548 = vmatprep.subr.mxu0 0.0
    %3549 = vmatpush1.msra.mxu0 0.0
    %3550 = vmatprep.subr.mxu0 0.0
    %3551 = vmatpush1.msra.mxu0 0.0
    %3552 = vmatprep.subr.mxu0 0.0
    %3553 = vmatpush1.msra.mxu0 0.0
    %3554 = vmatprep.subr.mxu0 0.0
    %3555 = vmatpush1.msra.mxu0 0.0
    %3556 = vmatprep.subr.mxu0 0.0
    %3557 = vmatpush1.msra.mxu0 %v3520
    %3558 = vmatprep.subr.mxu0 0.0
    %3559 = vmatpush1.msra.mxu0 %v3519
    %3560 = vmatprep.subr.mxu0 0.0
    %3561 = vmatpush1.msra.mxu0 %v3518
    %3562 = vmatprep.subr.mxu0 0.0
    %3563 = vmatpush1.msra.mxu0 %v3517
    %3564 = vmatprep.subr.mxu0 0.0
    %3565 = vmatpush2.msra.mxu0 0.0
    %3566 = vmatprep.subr.mxu0 0.0
    %3567 = vmatpush2.msra.mxu0 0.0
    %3568 = vmatprep.subr.mxu0 0.0
    %3569 = vmatpush2.msra.mxu0 0.0
    %3570 = vmatprep.subr.mxu0 0.0
    %3571 = vmatpush2.msra.mxu0 0.0
    %3572 = vmatprep.subr.mxu0 0.0
    %3573 = vmatpush2.msra.mxu0 0.0
    %3574 = vmatprep.subr.mxu0 0.0
    %3575 = vmatpush2.msra.mxu0 0.0
    %3576 = vmatprep.subr.mxu0 0.0
    %3577 = vmatpush2.msra.mxu0 0.0
    %3578 = vmatprep.subr.mxu0 0.0
    %3579 = vmatpush2.msra.mxu0 0.0
    %3580 = vmatprep.subr.mxu0 0.0
    %3581 = vmatpush2.msra.mxu0 0.0
    %3582 = vmatprep.subr.mxu0 0.0
    %3583 = vmatpush2.msra.mxu0 0.0
    %3584 = vmatprep.subr.mxu0 0.0
    %3585 = vmatpush2.msra.mxu0 0.0
    %3586 = vmatprep.subr.mxu0 0.0
    %3587 = vmatpush2.msra.mxu0 0.0
    %3588 = vmatprep.subr.mxu0 0.0
    %3589 = vmatpush2.msra.mxu0 0.0
    %3590 = vmatprep.subr.mxu0 0.0
    %3591 = vmatpush2.msra.mxu0 0.0
    %3592 = vmatprep.subr.mxu0 0.0
    %3593 = vmatpush2.msra.mxu0 0.0
    %3594 = vmatprep.subr.mxu0 0.0
    %3595 = vmatpush2.msra.mxu0 0.0
    %3596 = vmatprep.mubr.f32.mxu0 0.0
    %3597 = vmatmul.mubr.f32.gmra.mxu0 %v3527
    %v3598 = vpop.f32.mrf.mxu0
    %v3599 = vadd.f32 %v3525, %v3598
    %v3600 = vpop.f32.mrf.mxu0
    %3601 = vmatprep.mubr.f32.mxu0 0.0
    %3602 = vmatmul.mubr.f32.gmra.mxu0 %v3530
    %v3603 = vpop.f32.mrf.mxu0
    %v3604 = vadd.f32 %v3525, %v3603
    %v3605 = vpop.f32.mrf.mxu0
    %3606 = vdwg.mxu0
    %v3607 = vmax.f32 %v3599, 0.0
    %v3608 = vmax.f32 %v3604, 0.0
    %v3609 = vld [vmem:[%s4 + $0x6] sm:$0x1]
    %v3610 = vlaneseq
    %v3611 = vshrl.u32 %v3610, 7
    %v3612 = vsub.s32 0, %v3611
    %v3613 = vrot.slane %v3609, %v3612
    %v3623 = vsel %vm1248, %v3607, 0
    %v3626 = vsel %vm1248, %v3608, 0
    %3628 = vmatprep.subr.mxu0 0.0
    %3629 = vmatpush1.msra.mxu0 0.0
    %3630 = vmatprep.subr.mxu0 0.0
    %3631 = vmatpush1.msra.mxu0 0.0
    %3632 = vmatprep.subr.mxu0 0.0
    %3633 = vmatpush1.msra.mxu0 0.0
    %3634 = vmatprep.subr.mxu0 0.0
    %3635 = vmatpush1.msra.mxu0 0.0
    %3636 = vmatprep.subr.mxu0 0.0
    %3637 = vmatpush1.msra.mxu0 0.0
    %3638 = vmatprep.subr.mxu0 0.0
    %3639 = vmatpush1.msra.mxu0 0.0
    %3640 = vmatprep.subr.mxu0 0.0
    %3641 = vmatpush1.msra.mxu0 0.0
    %3642 = vmatprep.subr.mxu0 0.0
    %3643 = vmatpush1.msra.mxu0 0.0
    %3644 = vmatprep.subr.mxu0 0.0
    %3645 = vmatpush1.msra.mxu0 %v1433
    %3646 = vmatprep.subr.mxu0 0.0
    %3647 = vmatpush1.msra.mxu0 %v1427
    %3648 = vmatprep.subr.mxu0 0.0
    %3649 = vmatpush1.msra.mxu0 %v1421
    %3650 = vmatprep.subr.mxu0 0.0
    %3651 = vmatpush1.msra.mxu0 %v1415
    %3652 = vmatprep.subr.mxu0 0.0
    %3653 = vmatpush1.msra.mxu0 %v1409
    %3654 = vmatprep.subr.mxu0 0.0
    %3655 = vmatpush1.msra.mxu0 %v1403
    %3656 = vmatprep.subr.mxu0 0.0
    %3657 = vmatpush1.msra.mxu0 %v1397
    %3658 = vmatprep.subr.mxu0 0.0
    %3659 = vmatpush1.msra.mxu0 %v1391
    %3660 = vmatprep.subr.mxu0 0.0
    %3661 = vmatpush2.msra.mxu0 0.0
    %3662 = vmatprep.subr.mxu0 0.0
    %3663 = vmatpush2.msra.mxu0 0.0
    %3664 = vmatprep.subr.mxu0 0.0
    %3665 = vmatpush2.msra.mxu0 0.0
    %3666 = vmatprep.subr.mxu0 0.0
    %3667 = vmatpush2.msra.mxu0 0.0
    %3668 = vmatprep.subr.mxu0 0.0
    %3669 = vmatpush2.msra.mxu0 0.0
    %3670 = vmatprep.subr.mxu0 0.0
    %3671 = vmatpush2.msra.mxu0 0.0
    %3672 = vmatprep.subr.mxu0 0.0
    %3673 = vmatpush2.msra.mxu0 0.0
    %3674 = vmatprep.subr.mxu0 0.0
    %3675 = vmatpush2.msra.mxu0 0.0
    %3676 = vmatprep.subr.mxu0 0.0
    %3677 = vmatpush2.msra.mxu0 0.0
    %3678 = vmatprep.subr.mxu0 0.0
    %3679 = vmatpush2.msra.mxu0 0.0
    %3680 = vmatprep.subr.mxu0 0.0
    %3681 = vmatpush2.msra.mxu0 0.0
    %3682 = vmatprep.subr.mxu0 0.0
    %3683 = vmatpush2.msra.mxu0 0.0
    %3684 = vmatprep.subr.mxu0 0.0
    %3685 = vmatpush2.msra.mxu0 0.0
    %3686 = vmatprep.subr.mxu0 0.0
    %3687 = vmatpush2.msra.mxu0 0.0
    %3688 = vmatprep.subr.mxu0 0.0
    %3689 = vmatpush2.msra.mxu0 0.0
    %3690 = vmatprep.subr.mxu0 0.0
    %3691 = vmatpush2.msra.mxu0 0.0
    %3692 = vmatprep.mubr.f32.mxu0 0.0
    %3693 = vmatmul.mubr.f32.gmra.mxu0 %v3623
    %v3694 = vpop.f32.mrf.mxu0
    %v3695 = vadd.f32 %v3613, %v3694
    %v3696 = vpop.f32.mrf.mxu0
    %3697 = vmatprep.mubr.f32.mxu0 0.0
    %3698 = vmatmul.mubr.f32.gmra.mxu0 %v3626
    %v3699 = vpop.f32.mrf.mxu0
    %v3700 = vadd.f32 %v3613, %v3699
    %v3701 = vpop.f32.mrf.mxu0
    %3702 = vdwg.mxu0
    %v3703 = vld [vmem:[%s5 + $0x6] sm:$0x1]
    %v3704 = vld [vmem:[%s5 + $0x7] sm:$0x1]
    %v3705 = vadd.f32 %v3515, %v3695
    %v3706 = vadd.f32 %v3516, %v3700
    %v3707 = vsel %vm194, %v3705, 0.0
    %3708 = vadd.xlane.f32.xlu0 %v3707
    %v3709 = vpop.xlane.xlu0 %3708
    %v3710 = vsel %vm194, %v3706, 0.0
    %3711 = vadd.xlane.f32.xlu0 %v3710
    %v3712 = vpop.xlane.xlu0 %3711
    %v3713 = vmul.f32 %v3709, %v1184
    %v3714 = vmul.f32 %v3712, %v1184
    %v3715 = vsub.f32 %v3705, %v3713
    %v3716 = vsub.f32 %v3706, %v3714
    %v3717 = vmul.f32 %v3715, %v3715
    %v3718 = vmul.f32 %v3716, %v3716
    %v3719 = vsel %vm194, %v3717, 0.0
    %3720 = vadd.xlane.f32.xlu0 %v3719
    %v3721 = vpop.xlane.xlu0 %3720
    %v3722 = vsel %vm194, %v3718, 0.0
    %3723 = vadd.xlane.f32.xlu0 %v3722
    %v3724 = vpop.xlane.xlu0 %3723
    %v3725 = vmul.f32 %v3721, %v1184
    %v3726 = vmul.f32 %v3724, %v1184
    %v3727 = vadd.f32 %v3725, 1e-05
    %v3728 = vadd.f32 %v3726, 1e-05
    %v3729 = vrsqrt.pop %v3727
    %v3730 = vrsqrt.pop %v3728
    %v3731 = vmul.f32 %v3715, %v3729
    %v3732 = vmul.f32 %v3716, %v3730
    %v3733 = vlaneseq
    %v3734 = vshrl.u32 %v3733, 7
    %v3735 = vsub.s32 0, %v3734
    %v3736 = vrot.slane %v3703, %v3735
    %v3737 = vmul.f32 %v3731, %v3736
    %v3738 = vmul.f32 %v3732, %v3736
    %v3739 = vlaneseq
    %v3740 = vshrl.u32 %v3739, 7
    %v3741 = vsub.s32 0, %v3740
    %v3742 = vrot.slane %v3704, %v3741
    %v3743 = vadd.f32 %v3737, %v3742
    %v3744 = vadd.f32 %v3738, %v3742
    %3745 = vst.msk [vmem:[#allocation5] sm:$0xff] %vm194, %v3743
    %3746 = vst.msk [vmem:[#allocation5 + $0x8] sm:$0xff] %vm194, %v3744
    // Predicated region
    $region30: #{attn_layer_forward.1} parent=1 // pred_check
      _
    $region31: #{attn_layer_forward.1} parent=1 // pred_check_branch
      %3748 = sbr.rel (0) target = $region33
    $region32: #{attn_layer_forward.1} parent=1 // pred_region
      %s3750 = ssub.s32 256, 256
      %3751 = vsyncadd [#allocation4], %s3750
      %s3752 = sshll.u32 [#allocation5], 4
      %s3753 = int_to_ptr.vmem [resolvable:$true] %s3752
      %3758 = dma.vmem_to_hbm [thread:$0]  %s3753, 256, %s6, [#allocation4], 128, 128, 8
    $region33: #{attn_layer_forward.1} parent=1 // pred_fallthru
      _
    // Predicated region
    $region34: #{attn_layer_forward.1} parent=1 // pred_check
      _
    $region35: #{attn_layer_forward.1} parent=1 // pred_check_branch
      %3760 = sbr.rel (0) target = $region37
    $region36: #{attn_layer_forward.1} parent=1 // pred_region
      %3761 = dma.done [#allocation4], 256
    $region37: #{attn_layer_forward.1} parent=1 // pred_fallthru
      _
    %3762 = vsyncpa [#allocation3], 1
    %3763 = vsyncpa [#allocation4], 1

</llo_original>
